<compile_context>
chip_gen: v7x
topology: tpu7x:2x2x1
jax: 0.10.0
libtpu: 0.0.40
codegen_flags: <defaults>
</compile_context>

<pallas_src>
import functools
import math

import jax
import jax.numpy as jnp
import numpy as np
from jax.experimental import pallas as pl
from jax.experimental.pallas import tpu as pltpu  # noqa: F401  (TPU backend assumed)


# ----------------------------- fused Pallas kernel ------------------------- #

def _encode_objects_kernel(emb_ref, gather_ref,
                           wqkv_ref, bqkv_ref, wo_ref, bo_ref,
                           ln1w_ref, ln1b_ref, w1_ref, b1_ref,
                           w2_ref, b2_ref, ln2w_ref, ln2b_ref,
                           o_ref, *, batch, object_size, num_heads, num_layers):
    B, S = batch, object_size
    N, D = emb_ref.shape
    hd = D // num_heads
    scale = 1.0 / math.sqrt(hd)

    # --- 1) L2-normalize per-object embeddings (F.normalize, dim=-1) -------- #
    emb = emb_ref[...].astype(jnp.float32)                                    # (N, D)
    inv = jax.lax.rsqrt(jnp.maximum(jnp.sum(emb * emb, -1, keepdims=True), 1e-24))
    emb = emb * inv

    # --- 2) Pack into padded (B*S, D) via static one-hot gather matmul ------ #
    x = jnp.dot(gather_ref[...], emb, preferred_element_type=jnp.float32)     # (B*S, D)

    def layer_norm(y, w, b):
        mu = jnp.mean(y, axis=-1, keepdims=True)
        var = jnp.mean((y - mu) ** 2, axis=-1, keepdims=True)
        return (y - mu) * jax.lax.rsqrt(var + 1e-5) * w + b

    # --- 3) Transformer encoder layers (post-LN, ReLU FFN), unrolled -------- #
    for l in range(num_layers):
        # fused QKV projection on the flattened batch (pre-transposed weights)
        qkv = jnp.dot(x, wqkv_ref[l], preferred_element_type=jnp.float32) + bqkv_ref[l]
        q = qkv[:, 0 * D:1 * D].reshape(B, S, D)
        k = qkv[:, 1 * D:2 * D].reshape(B, S, D)
        v = qkv[:, 2 * D:3 * D].reshape(B, S, D)

        # batch-batched attention, statically unrolled over heads
        heads = []
        for h in range(num_heads):
            sl = slice(h * hd, (h + 1) * hd)
            qh, kh, vh = q[:, :, sl], k[:, :, sl], v[:, :, sl]
            s = jnp.einsum('bqd,bkd->bqk', qh, kh,
                           preferred_element_type=jnp.float32) * scale        # (B, S, S)
            s = s - jnp.max(s, axis=-1, keepdims=True)
            p = jnp.exp(s)
            p = p / jnp.sum(p, axis=-1, keepdims=True)
            heads.append(jnp.einsum('bqk,bkd->bqd', p, vh,
                                    preferred_element_type=jnp.float32))       # (B, S, hd)

        # single fused output projection over all heads
        attn = jnp.concatenate(heads, axis=-1).reshape(B * S, D)
        attn = jnp.dot(attn, wo_ref[l], preferred_element_type=jnp.float32) + bo_ref[l]

        # residual + LayerNorm 1
        x = layer_norm(x + attn, ln1w_ref[l], ln1b_ref[l])

        # feed-forward (D -> 2D -> D), ReLU, on the flattened batch
        h1 = jnp.dot(x, w1_ref[l], preferred_element_type=jnp.float32) + b1_ref[l]
        h1 = jnp.maximum(h1, 0.0)
        h2 = jnp.dot(h1, w2_ref[l], preferred_element_type=jnp.float32) + b2_ref[l]

        # residual + LayerNorm 2
        x = layer_norm(x + h2, ln2w_ref[l], ln2b_ref[l])

    # --- 4) max over objects, then L2-normalize ------------------------------ #
    rows = []
    for i in range(B):                                   # static unroll over batch
        rows.append(jnp.max(x[i * S:(i + 1) * S, :], axis=0, keepdims=True))   # (1, D)
    g = jnp.concatenate(rows, axis=0)                                          # (B, D)
    inv = jax.lax.rsqrt(jnp.maximum(jnp.sum(g * g, -1, keepdims=True), 1e-24))
    o_ref[...] = (g * inv).astype(o_ref.dtype)


# ----------------------------- module wrapper ------------------------------ #

def init_layer_params(key, embed_dim, seed_scale=0.1):
    ff = 2 * embed_dim
    ks = jax.random.split(key, 8)
    return dict(
        wqkv=jax.random.normal(ks[0], (3 * embed_dim, embed_dim), jnp.float32) * seed_scale,
        bqkv=jax.random.normal(ks[1], (1, 3 * embed_dim), jnp.float32) * seed_scale,
        wo=jax.random.normal(ks[2], (embed_dim, embed_dim), jnp.float32) * seed_scale,
        bo=jax.random.normal(ks[3], (1, embed_dim), jnp.float32) * seed_scale,
        ln1w=jnp.ones((1, embed_dim), jnp.float32),
        ln1b=jnp.zeros((1, embed_dim), jnp.float32),
        w1=jax.random.normal(ks[4], (ff, embed_dim), jnp.float32) * seed_scale,
        b1=jax.random.normal(ks[5], (1, ff), jnp.float32) * seed_scale,
        w2=jax.random.normal(ks[6], (embed_dim, ff), jnp.float32) * seed_scale,
        b2=jax.random.normal(ks[7], (1, embed_dim), jnp.float32) * seed_scale,
        ln2w=jnp.ones((1, embed_dim), jnp.float32),
        ln2b=jnp.zeros((1, embed_dim), jnp.float32),
    )


def encode_objects_pallas(embeddings, counts, layer_params, object_size, num_heads):
    """Mirror of CellRetrievalNetwork.encode_objects for F_Global.

    embeddings: (N, D) flat per-object embeddings (ObjectEncoder output).
    counts:     python list of per-sample object counts (sum == N).
    """
    N, D = embeddings.shape
    B = len(counts)
    S = object_size
    L = len(layer_params)

    # Static one-hot packing matrix (counts are trace-time python ints): row
    # i*S + j of F_Global picks original-embedding row start_i + j (or zero pad).
    G = np.zeros((B * S, N), np.float32)
    start = 0
    for i, c in enumerate(counts):
        n = min(c, S)
        for j in range(n):
            G[i * S + j, start + j] = 1.0
        start += c
    gather = jnp.asarray(G)

    # Pre-transpose + layer-stack weights host-side (no in-kernel transposes).
    def stack(key, transpose=False):
        ws = [lp[key].T if transpose else lp[key] for lp in layer_params]
        return jnp.stack(ws)

    wqkv_t = stack("wqkv", True)     # (L, D, 3D)
    bqkv = stack("bqkv")             # (L, 1, 3D)
    wo_t = stack("wo", True)         # (L, D, D)
    bo = stack("bo")                 # (L, 1, D)
    ln1w, ln1b = stack("ln1w"), stack("ln1b")
    w1_t = stack("w1", True)         # (L, D, 2D)
    b1 = stack("b1")                 # (L, 1, 2D)
    w2_t = stack("w2", True)         # (L, 2D, D)
    b2 = stack("b2")
    ln2w, ln2b = stack("ln2w"), stack("ln2b")

    kernel = functools.partial(
        _encode_objects_kernel,
        batch=B, object_size=S, num_heads=num_heads, num_layers=L)

    return pl.pallas_call(
        kernel,
        out_shape=jax.ShapeDtypeStruct((B, D), embeddings.dtype),
    )(embeddings, gather, wqkv_t, bqkv, wo_t, bo,
      ln1w, ln1b, w1_t, b1, w2_t, b2, ln2w, ln2b)


# ----------------------------- pure-JAX reference -------------------------- #

def _ref_layer(x, lp, num_heads):
    D = x.shape[-1]
    hd = D // num_heads

    def ln(y, w, b):
        mu = jnp.mean(y, axis=-1, keepdims=True)
        var = jnp.mean((y - mu) ** 2, axis=-1, keepdims=True)
        return (y - mu) / jnp.sqrt(var + 1e-5) * w + b

    qkv = x @ lp["wqkv"].T + lp["bqkv"][0]
    q, k, v = qkv[:, :D], qkv[:, D:2 * D], qkv[:, 2 * D:]
    heads = []
    for h in range(num_heads):
        sl = slice(h * hd, (h + 1) * hd)
        s = (q[:, sl] @ k[:, sl].T) / math.sqrt(hd)
        heads.append(jax.nn.softmax(s, axis=-1) @ v[:, sl])
    a = jnp.concatenate(heads, axis=-1) @ lp["wo"].T + lp["bo"][0]
    x = ln(x + a, lp["ln1w"][0], lp["ln1b"][0])
    h1 = jnp.maximum(x @ lp["w1"].T + lp["b1"][0], 0.0)
    x = ln(x + h1 @ lp["w2"].T + lp["b2"][0], lp["ln2w"][0], lp["ln2b"][0])
    return x


def ref_encode_objects(embeddings, counts, layer_params, object_size, num_heads):
    def normalize(x):
        return x / jnp.maximum(jnp.linalg.norm(x, axis=-1, keepdims=True), 1e-12)

    B = len(counts)
    D = embeddings.shape[-1]
    emb_n = normalize(embeddings)
    F = jnp.zeros((B, object_size, D), embeddings.dtype)
    start = 0
    for i, c in enumerate(counts):
        n = min(c, object_size)
        F = jax.lax.dynamic_update_slice(F, emb_n[start:start + n][None], (i, 0, 0))
        start += c
    for lp in layer_params:
        F = jax.vmap(lambda xs: _ref_layer(xs, lp, num_heads))(F)
    return normalize(jnp.max(F, axis=1))


# --------------------------------- main ------------------------------------ #

if __name__ == "__main__":
    # Small config consistent with the module's __init__:
    #   coarse_embed_dim=32, object_size=8,
    #   object_inter_module_num_heads=4, object_inter_module_num_layers=2.
    embed_dim = 32
    object_size = 8
    num_heads = 4
    num_layers = 2
    counts = [5, 3]                 # per-sample object counts (batch = 2)
    total_objects = sum(counts)

    key = jax.random.PRNGKey(0)
    k_emb, k_params = jax.random.split(key)

    # Stand-in for ObjectEncoder output: flat per-object embeddings (N, D).
    embeddings = jax.random.normal(k_emb, (total_objects, embed_dim), jnp.float32)

    layer_params = [
        init_layer_params(k, embed_dim)
        for k in jax.random.split(k_params, num_layers)
    ]

    out = encode_objects_pallas(embeddings, counts, layer_params, object_size, num_heads)
    out = jax.block_until_ready(out)

    ref = ref_encode_objects(embeddings, counts, layer_params, object_size, num_heads)
    np.testing.assert_allclose(np.asarray(out), np.asarray(ref), rtol=1e-4, atol=1e-5)

    print("KERNEL_OK")
</pallas_src>

<mosaic_0001>
module attributes {stable_mosaic.version = 11 : i64} {
  func.func @_encode_objects_kernel(%arg0: memref<8x32xf32, #tpu.memory_space<vmem>>, %arg1: memref<16x8xf32, #tpu.memory_space<vmem>>, %arg2: memref<2x32x96xf32, #tpu.memory_space<vmem>>, %arg3: memref<2x1x96xf32, #tpu.memory_space<vmem>>, %arg4: memref<2x32x32xf32, #tpu.memory_space<vmem>>, %arg5: memref<2x1x32xf32, #tpu.memory_space<vmem>>, %arg6: memref<2x1x32xf32, #tpu.memory_space<vmem>>, %arg7: memref<2x1x32xf32, #tpu.memory_space<vmem>>, %arg8: memref<2x32x64xf32, #tpu.memory_space<vmem>>, %arg9: memref<2x1x64xf32, #tpu.memory_space<vmem>>, %arg10: memref<2x64x32xf32, #tpu.memory_space<vmem>>, %arg11: memref<2x1x32xf32, #tpu.memory_space<vmem>>, %arg12: memref<2x1x32xf32, #tpu.memory_space<vmem>>, %arg13: memref<2x1x32xf32, #tpu.memory_space<vmem>>, %arg14: memref<2x32xf32, #tpu.memory_space<vmem>>) attributes {dimension_semantics = [], scalar_prefetch = 0 : i64, scratch_operands = 0 : i64, tpu.core_type = #tpu.core_type<tc>} {
    %c0 = arith.constant 0 : index
    %c0_0 = arith.constant 0 : index
    %0 = vector.load %arg0[%c0, %c0_0] : memref<8x32xf32, #tpu.memory_space<vmem>>, vector<8x32xf32>
    %1 = arith.mulf %0, %0 : vector<8x32xf32>
    %cst = arith.constant dense<0.000000e+00> : vector<8xf32>
    %2 = vector.multi_reduction <add>, %1, %cst [1] : vector<8x32xf32> to vector<8xf32>
    %3 = vector.shape_cast %2 : vector<8xf32> to vector<8x1xf32>
    %cst_1 = arith.constant 1.000000e-24 : f32
    %4 = vector.broadcast %cst_1 : f32 to vector<8x1xf32>
    %5 = arith.maximumf %3, %4 : vector<8x1xf32>
    %6 = math.rsqrt %5 : vector<8x1xf32>
    %7 = vector.broadcast %6 : vector<8x1xf32> to vector<8x32xf32>
    %8 = arith.mulf %0, %7 : vector<8x32xf32>
    %c0_2 = arith.constant 0 : index
    %c0_3 = arith.constant 0 : index
    %9 = vector.load %arg1[%c0_2, %c0_3] : memref<16x8xf32, #tpu.memory_space<vmem>>, vector<16x8xf32>
    %cst_4 = arith.constant dense<0.000000e+00> : vector<16x32xf32>
    %10 = tpu.matmul %9, %8, %cst_4 {dimension_numbers = #tpu.dot_dimension_numbers<[1], [0], [0], [1], [0, 0, 1, 1], [], []>} : vector<16x8xf32>, vector<8x32xf32>, vector<16x32xf32> -> vector<16x32xf32>
    %c0_5 = arith.constant 0 : index
    %c0_6 = arith.constant 0 : index
    %c0_7 = arith.constant 0 : index
    %11 = vector.load %arg2[%c0_5, %c0_6, %c0_7] : memref<2x32x96xf32, #tpu.memory_space<vmem>>, vector<1x32x96xf32>
    %12 = vector.shape_cast %11 : vector<1x32x96xf32> to vector<32x96xf32>
    %cst_8 = arith.constant dense<0.000000e+00> : vector<16x96xf32>
    %13 = tpu.matmul %10, %12, %cst_8 {dimension_numbers = #tpu.dot_dimension_numbers<[1], [0], [0], [1], [0, 0, 1, 1], [], []>} : vector<16x32xf32>, vector<32x96xf32>, vector<16x96xf32> -> vector<16x96xf32>
    %c0_9 = arith.constant 0 : index
    %c0_10 = arith.constant 0 : index
    %c0_11 = arith.constant 0 : index
    %14 = vector.load %arg3[%c0_9, %c0_10, %c0_11] : memref<2x1x96xf32, #tpu.memory_space<vmem>>, vector<1x1x96xf32>
    %15 = vector.shape_cast %14 : vector<1x1x96xf32> to vector<1x96xf32>
    %16 = vector.broadcast %15 : vector<1x96xf32> to vector<16x96xf32>
    %17 = arith.addf %13, %16 : vector<16x96xf32>
    %18 = vector.extract_strided_slice %17 {offsets = [0, 0], sizes = [16, 32], strides = [1, 1]} : vector<16x96xf32> to vector<16x32xf32>
    %19 = vector.shape_cast %18 : vector<16x32xf32> to vector<2x8x32xf32>
    %20 = vector.extract_strided_slice %17 {offsets = [0, 32], sizes = [16, 32], strides = [1, 1]} : vector<16x96xf32> to vector<16x32xf32>
    %21 = vector.shape_cast %20 : vector<16x32xf32> to vector<2x8x32xf32>
    %22 = vector.extract_strided_slice %17 {offsets = [0, 64], sizes = [16, 32], strides = [1, 1]} : vector<16x96xf32> to vector<16x32xf32>
    %23 = vector.shape_cast %22 : vector<16x32xf32> to vector<2x8x32xf32>
    %24 = vector.extract_strided_slice %19 {offsets = [0, 0, 0], sizes = [2, 8, 8], strides = [1, 1, 1]} : vector<2x8x32xf32> to vector<2x8x8xf32>
    %25 = vector.extract_strided_slice %21 {offsets = [0, 0, 0], sizes = [2, 8, 8], strides = [1, 1, 1]} : vector<2x8x32xf32> to vector<2x8x8xf32>
    %26 = vector.extract_strided_slice %23 {offsets = [0, 0, 0], sizes = [2, 8, 8], strides = [1, 1, 1]} : vector<2x8x32xf32> to vector<2x8x8xf32>
    "tpu.trace_start"() <{level = 10 : i32, message = "bqd,bkd->bqk"}> : () -> ()
    %cst_12 = arith.constant dense<0.000000e+00> : vector<2x8x8xf32>
    %27 = tpu.matmul %24, %25, %cst_12 {dimension_numbers = #tpu.dot_dimension_numbers<[2], [2], [1], [1], [0, 0, 0, 1, 1, 1], [0], [0]>} : vector<2x8x8xf32>, vector<2x8x8xf32>, vector<2x8x8xf32> -> vector<2x8x8xf32>
    "tpu.trace_stop"() : () -> ()
    %cst_13 = arith.constant 0.353553385 : f32
    %28 = vector.broadcast %cst_13 : f32 to vector<2x8x8xf32>
    %29 = arith.mulf %27, %28 : vector<2x8x8xf32>
    %cst_14 = arith.constant dense<0xFF800000> : vector<2x8xf32>
    %30 = vector.multi_reduction <maximumf>, %29, %cst_14 [2] : vector<2x8x8xf32> to vector<2x8xf32>
    %31 = vector.shape_cast %30 : vector<2x8xf32> to vector<2x8x1xf32>
    %32 = vector.broadcast %31 : vector<2x8x1xf32> to vector<2x8x8xf32>
    %33 = arith.subf %29, %32 : vector<2x8x8xf32>
    %34 = math.exp %33 : vector<2x8x8xf32>
    %cst_15 = arith.constant dense<0.000000e+00> : vector<2x8xf32>
    %35 = vector.multi_reduction <add>, %34, %cst_15 [2] : vector<2x8x8xf32> to vector<2x8xf32>
    %36 = vector.shape_cast %35 : vector<2x8xf32> to vector<2x8x1xf32>
    %37 = vector.broadcast %36 : vector<2x8x1xf32> to vector<2x8x8xf32>
    %38 = arith.divf %34, %37 : vector<2x8x8xf32>
    "tpu.trace_start"() <{level = 10 : i32, message = "bqk,bkd->bqd"}> : () -> ()
    %cst_16 = arith.constant dense<0.000000e+00> : vector<2x8x8xf32>
    %39 = tpu.matmul %38, %26, %cst_16 {dimension_numbers = #tpu.dot_dimension_numbers<[2], [1], [1], [2], [0, 0, 0, 1, 1, 2], [0], [0]>} : vector<2x8x8xf32>, vector<2x8x8xf32>, vector<2x8x8xf32> -> vector<2x8x8xf32>
    "tpu.trace_stop"() : () -> ()
    %40 = vector.extract_strided_slice %19 {offsets = [0, 0, 8], sizes = [2, 8, 8], strides = [1, 1, 1]} : vector<2x8x32xf32> to vector<2x8x8xf32>
    %41 = vector.extract_strided_slice %21 {offsets = [0, 0, 8], sizes = [2, 8, 8], strides = [1, 1, 1]} : vector<2x8x32xf32> to vector<2x8x8xf32>
    %42 = vector.extract_strided_slice %23 {offsets = [0, 0, 8], sizes = [2, 8, 8], strides = [1, 1, 1]} : vector<2x8x32xf32> to vector<2x8x8xf32>
    "tpu.trace_start"() <{level = 10 : i32, message = "bqd,bkd->bqk"}> : () -> ()
    %cst_17 = arith.constant dense<0.000000e+00> : vector<2x8x8xf32>
    %43 = tpu.matmul %40, %41, %cst_17 {dimension_numbers = #tpu.dot_dimension_numbers<[2], [2], [1], [1], [0, 0, 0, 1, 1, 1], [0], [0]>} : vector<2x8x8xf32>, vector<2x8x8xf32>, vector<2x8x8xf32> -> vector<2x8x8xf32>
    "tpu.trace_stop"() : () -> ()
    %cst_18 = arith.constant 0.353553385 : f32
    %44 = vector.broadcast %cst_18 : f32 to vector<2x8x8xf32>
    %45 = arith.mulf %43, %44 : vector<2x8x8xf32>
    %cst_19 = arith.constant dense<0xFF800000> : vector<2x8xf32>
    %46 = vector.multi_reduction <maximumf>, %45, %cst_19 [2] : vector<2x8x8xf32> to vector<2x8xf32>
    %47 = vector.shape_cast %46 : vector<2x8xf32> to vector<2x8x1xf32>
    %48 = vector.broadcast %47 : vector<2x8x1xf32> to vector<2x8x8xf32>
    %49 = arith.subf %45, %48 : vector<2x8x8xf32>
    %50 = math.exp %49 : vector<2x8x8xf32>
    %cst_20 = arith.constant dense<0.000000e+00> : vector<2x8xf32>
    %51 = vector.multi_reduction <add>, %50, %cst_20 [2] : vector<2x8x8xf32> to vector<2x8xf32>
    %52 = vector.shape_cast %51 : vector<2x8xf32> to vector<2x8x1xf32>
    %53 = vector.broadcast %52 : vector<2x8x1xf32> to vector<2x8x8xf32>
    %54 = arith.divf %50, %53 : vector<2x8x8xf32>
    "tpu.trace_start"() <{level = 10 : i32, message = "bqk,bkd->bqd"}> : () -> ()
    %cst_21 = arith.constant dense<0.000000e+00> : vector<2x8x8xf32>
    %55 = tpu.matmul %54, %42, %cst_21 {dimension_numbers = #tpu.dot_dimension_numbers<[2], [1], [1], [2], [0, 0, 0, 1, 1, 2], [0], [0]>} : vector<2x8x8xf32>, vector<2x8x8xf32>, vector<2x8x8xf32> -> vector<2x8x8xf32>
    "tpu.trace_stop"() : () -> ()
    %56 = vector.extract_strided_slice %19 {offsets = [0, 0, 16], sizes = [2, 8, 8], strides = [1, 1, 1]} : vector<2x8x32xf32> to vector<2x8x8xf32>
    %57 = vector.extract_strided_slice %21 {offsets = [0, 0, 16], sizes = [2, 8, 8], strides = [1, 1, 1]} : vector<2x8x32xf32> to vector<2x8x8xf32>
    %58 = vector.extract_strided_slice %23 {offsets = [0, 0, 16], sizes = [2, 8, 8], strides = [1, 1, 1]} : vector<2x8x32xf32> to vector<2x8x8xf32>
    "tpu.trace_start"() <{level = 10 : i32, message = "bqd,bkd->bqk"}> : () -> ()
    %cst_22 = arith.constant dense<0.000000e+00> : vector<2x8x8xf32>
    %59 = tpu.matmul %56, %57, %cst_22 {dimension_numbers = #tpu.dot_dimension_numbers<[2], [2], [1], [1], [0, 0, 0, 1, 1, 1], [0], [0]>} : vector<2x8x8xf32>, vector<2x8x8xf32>, vector<2x8x8xf32> -> vector<2x8x8xf32>
    "tpu.trace_stop"() : () -> ()
    %cst_23 = arith.constant 0.353553385 : f32
    %60 = vector.broadcast %cst_23 : f32 to vector<2x8x8xf32>
    %61 = arith.mulf %59, %60 : vector<2x8x8xf32>
    %cst_24 = arith.constant dense<0xFF800000> : vector<2x8xf32>
    %62 = vector.multi_reduction <maximumf>, %61, %cst_24 [2] : vector<2x8x8xf32> to vector<2x8xf32>
    %63 = vector.shape_cast %62 : vector<2x8xf32> to vector<2x8x1xf32>
    %64 = vector.broadcast %63 : vector<2x8x1xf32> to vector<2x8x8xf32>
    %65 = arith.subf %61, %64 : vector<2x8x8xf32>
    %66 = math.exp %65 : vector<2x8x8xf32>
    %cst_25 = arith.constant dense<0.000000e+00> : vector<2x8xf32>
    %67 = vector.multi_reduction <add>, %66, %cst_25 [2] : vector<2x8x8xf32> to vector<2x8xf32>
    %68 = vector.shape_cast %67 : vector<2x8xf32> to vector<2x8x1xf32>
    %69 = vector.broadcast %68 : vector<2x8x1xf32> to vector<2x8x8xf32>
    %70 = arith.divf %66, %69 : vector<2x8x8xf32>
    "tpu.trace_start"() <{level = 10 : i32, message = "bqk,bkd->bqd"}> : () -> ()
    %cst_26 = arith.constant dense<0.000000e+00> : vector<2x8x8xf32>
    %71 = tpu.matmul %70, %58, %cst_26 {dimension_numbers = #tpu.dot_dimension_numbers<[2], [1], [1], [2], [0, 0, 0, 1, 1, 2], [0], [0]>} : vector<2x8x8xf32>, vector<2x8x8xf32>, vector<2x8x8xf32> -> vector<2x8x8xf32>
    "tpu.trace_stop"() : () -> ()
    %72 = vector.extract_strided_slice %19 {offsets = [0, 0, 24], sizes = [2, 8, 8], strides = [1, 1, 1]} : vector<2x8x32xf32> to vector<2x8x8xf32>
    %73 = vector.extract_strided_slice %21 {offsets = [0, 0, 24], sizes = [2, 8, 8], strides = [1, 1, 1]} : vector<2x8x32xf32> to vector<2x8x8xf32>
    %74 = vector.extract_strided_slice %23 {offsets = [0, 0, 24], sizes = [2, 8, 8], strides = [1, 1, 1]} : vector<2x8x32xf32> to vector<2x8x8xf32>
    "tpu.trace_start"() <{level = 10 : i32, message = "bqd,bkd->bqk"}> : () -> ()
    %cst_27 = arith.constant dense<0.000000e+00> : vector<2x8x8xf32>
    %75 = tpu.matmul %72, %73, %cst_27 {dimension_numbers = #tpu.dot_dimension_numbers<[2], [2], [1], [1], [0, 0, 0, 1, 1, 1], [0], [0]>} : vector<2x8x8xf32>, vector<2x8x8xf32>, vector<2x8x8xf32> -> vector<2x8x8xf32>
    "tpu.trace_stop"() : () -> ()
    %cst_28 = arith.constant 0.353553385 : f32
    %76 = vector.broadcast %cst_28 : f32 to vector<2x8x8xf32>
    %77 = arith.mulf %75, %76 : vector<2x8x8xf32>
    %cst_29 = arith.constant dense<0xFF800000> : vector<2x8xf32>
    %78 = vector.multi_reduction <maximumf>, %77, %cst_29 [2] : vector<2x8x8xf32> to vector<2x8xf32>
    %79 = vector.shape_cast %78 : vector<2x8xf32> to vector<2x8x1xf32>
    %80 = vector.broadcast %79 : vector<2x8x1xf32> to vector<2x8x8xf32>
    %81 = arith.subf %77, %80 : vector<2x8x8xf32>
    %82 = math.exp %81 : vector<2x8x8xf32>
    %cst_30 = arith.constant dense<0.000000e+00> : vector<2x8xf32>
    %83 = vector.multi_reduction <add>, %82, %cst_30 [2] : vector<2x8x8xf32> to vector<2x8xf32>
    %84 = vector.shape_cast %83 : vector<2x8xf32> to vector<2x8x1xf32>
    %85 = vector.broadcast %84 : vector<2x8x1xf32> to vector<2x8x8xf32>
    %86 = arith.divf %82, %85 : vector<2x8x8xf32>
    "tpu.trace_start"() <{level = 10 : i32, message = "bqk,bkd->bqd"}> : () -> ()
    %cst_31 = arith.constant dense<0.000000e+00> : vector<2x8x8xf32>
    %87 = tpu.matmul %86, %74, %cst_31 {dimension_numbers = #tpu.dot_dimension_numbers<[2], [1], [1], [2], [0, 0, 0, 1, 1, 2], [0], [0]>} : vector<2x8x8xf32>, vector<2x8x8xf32>, vector<2x8x8xf32> -> vector<2x8x8xf32>
    "tpu.trace_stop"() : () -> ()
    %88 = tpu.concatenate %39, %55, %71, %87 in 2 : vector<2x8x8xf32>, vector<2x8x8xf32>, vector<2x8x8xf32>, vector<2x8x8xf32> -> vector<2x8x32xf32>
    %89 = vector.shape_cast %88 : vector<2x8x32xf32> to vector<16x32xf32>
    %c0_32 = arith.constant 0 : index
    %c0_33 = arith.constant 0 : index
    %c0_34 = arith.constant 0 : index
    %90 = vector.load %arg4[%c0_32, %c0_33, %c0_34] : memref<2x32x32xf32, #tpu.memory_space<vmem>>, vector<1x32x32xf32>
    %91 = vector.shape_cast %90 : vector<1x32x32xf32> to vector<32x32xf32>
    %cst_35 = arith.constant dense<0.000000e+00> : vector<16x32xf32>
    %92 = tpu.matmul %89, %91, %cst_35 {dimension_numbers = #tpu.dot_dimension_numbers<[1], [0], [0], [1], [0, 0, 1, 1], [], []>} : vector<16x32xf32>, vector<32x32xf32>, vector<16x32xf32> -> vector<16x32xf32>
    %c0_36 = arith.constant 0 : index
    %c0_37 = arith.constant 0 : index
    %c0_38 = arith.constant 0 : index
    %93 = vector.load %arg5[%c0_36, %c0_37, %c0_38] : memref<2x1x32xf32, #tpu.memory_space<vmem>>, vector<1x1x32xf32>
    %94 = vector.shape_cast %93 : vector<1x1x32xf32> to vector<1x32xf32>
    %95 = vector.broadcast %94 : vector<1x32xf32> to vector<16x32xf32>
    %96 = arith.addf %92, %95 : vector<16x32xf32>
    %97 = arith.addf %10, %96 : vector<16x32xf32>
    %c0_39 = arith.constant 0 : index
    %c0_40 = arith.constant 0 : index
    %c0_41 = arith.constant 0 : index
    %98 = vector.load %arg6[%c0_39, %c0_40, %c0_41] : memref<2x1x32xf32, #tpu.memory_space<vmem>>, vector<1x1x32xf32>
    %99 = vector.shape_cast %98 : vector<1x1x32xf32> to vector<1x32xf32>
    %c0_42 = arith.constant 0 : index
    %c0_43 = arith.constant 0 : index
    %c0_44 = arith.constant 0 : index
    %100 = vector.load %arg7[%c0_42, %c0_43, %c0_44] : memref<2x1x32xf32, #tpu.memory_space<vmem>>, vector<1x1x32xf32>
    %101 = vector.shape_cast %100 : vector<1x1x32xf32> to vector<1x32xf32>
    %cst_45 = arith.constant dense<0.000000e+00> : vector<16xf32>
    %102 = vector.multi_reduction <add>, %97, %cst_45 [1] : vector<16x32xf32> to vector<16xf32>
    %103 = vector.shape_cast %102 : vector<16xf32> to vector<16x1xf32>
    %cst_46 = arith.constant 3.200000e+01 : f32
    %104 = vector.broadcast %cst_46 : f32 to vector<16x1xf32>
    %105 = arith.divf %103, %104 : vector<16x1xf32>
    %106 = vector.broadcast %105 : vector<16x1xf32> to vector<16x32xf32>
    %107 = arith.subf %97, %106 : vector<16x32xf32>
    %108 = arith.mulf %107, %107 : vector<16x32xf32>
    %cst_47 = arith.constant dense<0.000000e+00> : vector<16xf32>
    %109 = vector.multi_reduction <add>, %108, %cst_47 [1] : vector<16x32xf32> to vector<16xf32>
    %110 = vector.shape_cast %109 : vector<16xf32> to vector<16x1xf32>
    %cst_48 = arith.constant 3.200000e+01 : f32
    %111 = vector.broadcast %cst_48 : f32 to vector<16x1xf32>
    %112 = arith.divf %110, %111 : vector<16x1xf32>
    %113 = vector.broadcast %105 : vector<16x1xf32> to vector<16x32xf32>
    %114 = arith.subf %97, %113 : vector<16x32xf32>
    %cst_49 = arith.constant 9.99999974E-6 : f32
    %115 = vector.broadcast %cst_49 : f32 to vector<16x1xf32>
    %116 = arith.addf %112, %115 : vector<16x1xf32>
    %117 = math.rsqrt %116 : vector<16x1xf32>
    %118 = vector.broadcast %117 : vector<16x1xf32> to vector<16x32xf32>
    %119 = arith.mulf %114, %118 : vector<16x32xf32>
    %120 = vector.broadcast %99 : vector<1x32xf32> to vector<16x32xf32>
    %121 = arith.mulf %119, %120 : vector<16x32xf32>
    %122 = vector.broadcast %101 : vector<1x32xf32> to vector<16x32xf32>
    %123 = arith.addf %121, %122 : vector<16x32xf32>
    %c0_50 = arith.constant 0 : index
    %c0_51 = arith.constant 0 : index
    %c0_52 = arith.constant 0 : index
    %124 = vector.load %arg8[%c0_50, %c0_51, %c0_52] : memref<2x32x64xf32, #tpu.memory_space<vmem>>, vector<1x32x64xf32>
    %125 = vector.shape_cast %124 : vector<1x32x64xf32> to vector<32x64xf32>
    %cst_53 = arith.constant dense<0.000000e+00> : vector<16x64xf32>
    %126 = tpu.matmul %123, %125, %cst_53 {dimension_numbers = #tpu.dot_dimension_numbers<[1], [0], [0], [1], [0, 0, 1, 1], [], []>} : vector<16x32xf32>, vector<32x64xf32>, vector<16x64xf32> -> vector<16x64xf32>
    %c0_54 = arith.constant 0 : index
    %c0_55 = arith.constant 0 : index
    %c0_56 = arith.constant 0 : index
    %127 = vector.load %arg9[%c0_54, %c0_55, %c0_56] : memref<2x1x64xf32, #tpu.memory_space<vmem>>, vector<1x1x64xf32>
    %128 = vector.shape_cast %127 : vector<1x1x64xf32> to vector<1x64xf32>
    %129 = vector.broadcast %128 : vector<1x64xf32> to vector<16x64xf32>
    %130 = arith.addf %126, %129 : vector<16x64xf32>
    %cst_57 = arith.constant 0.000000e+00 : f32
    %131 = vector.broadcast %cst_57 : f32 to vector<16x64xf32>
    %132 = arith.maximumf %130, %131 : vector<16x64xf32>
    %c0_58 = arith.constant 0 : index
    %c0_59 = arith.constant 0 : index
    %c0_60 = arith.constant 0 : index
    %133 = vector.load %arg10[%c0_58, %c0_59, %c0_60] : memref<2x64x32xf32, #tpu.memory_space<vmem>>, vector<1x64x32xf32>
    %134 = vector.shape_cast %133 : vector<1x64x32xf32> to vector<64x32xf32>
    %cst_61 = arith.constant dense<0.000000e+00> : vector<16x32xf32>
    %135 = tpu.matmul %132, %134, %cst_61 {dimension_numbers = #tpu.dot_dimension_numbers<[1], [0], [0], [1], [0, 0, 1, 1], [], []>} : vector<16x64xf32>, vector<64x32xf32>, vector<16x32xf32> -> vector<16x32xf32>
    %c0_62 = arith.constant 0 : index
    %c0_63 = arith.constant 0 : index
    %c0_64 = arith.constant 0 : index
    %136 = vector.load %arg11[%c0_62, %c0_63, %c0_64] : memref<2x1x32xf32, #tpu.memory_space<vmem>>, vector<1x1x32xf32>
    %137 = vector.shape_cast %136 : vector<1x1x32xf32> to vector<1x32xf32>
    %138 = vector.broadcast %137 : vector<1x32xf32> to vector<16x32xf32>
    %139 = arith.addf %135, %138 : vector<16x32xf32>
    %140 = arith.addf %123, %139 : vector<16x32xf32>
    %c0_65 = arith.constant 0 : index
    %c0_66 = arith.constant 0 : index
    %c0_67 = arith.constant 0 : index
    %141 = vector.load %arg12[%c0_65, %c0_66, %c0_67] : memref<2x1x32xf32, #tpu.memory_space<vmem>>, vector<1x1x32xf32>
    %142 = vector.shape_cast %141 : vector<1x1x32xf32> to vector<1x32xf32>
    %c0_68 = arith.constant 0 : index
    %c0_69 = arith.constant 0 : index
    %c0_70 = arith.constant 0 : index
    %143 = vector.load %arg13[%c0_68, %c0_69, %c0_70] : memref<2x1x32xf32, #tpu.memory_space<vmem>>, vector<1x1x32xf32>
    %144 = vector.shape_cast %143 : vector<1x1x32xf32> to vector<1x32xf32>
    %cst_71 = arith.constant dense<0.000000e+00> : vector<16xf32>
    %145 = vector.multi_reduction <add>, %140, %cst_71 [1] : vector<16x32xf32> to vector<16xf32>
    %146 = vector.shape_cast %145 : vector<16xf32> to vector<16x1xf32>
    %cst_72 = arith.constant 3.200000e+01 : f32
    %147 = vector.broadcast %cst_72 : f32 to vector<16x1xf32>
    %148 = arith.divf %146, %147 : vector<16x1xf32>
    %149 = vector.broadcast %148 : vector<16x1xf32> to vector<16x32xf32>
    %150 = arith.subf %140, %149 : vector<16x32xf32>
    %151 = arith.mulf %150, %150 : vector<16x32xf32>
    %cst_73 = arith.constant dense<0.000000e+00> : vector<16xf32>
    %152 = vector.multi_reduction <add>, %151, %cst_73 [1] : vector<16x32xf32> to vector<16xf32>
    %153 = vector.shape_cast %152 : vector<16xf32> to vector<16x1xf32>
    %cst_74 = arith.constant 3.200000e+01 : f32
    %154 = vector.broadcast %cst_74 : f32 to vector<16x1xf32>
    %155 = arith.divf %153, %154 : vector<16x1xf32>
    %156 = vector.broadcast %148 : vector<16x1xf32> to vector<16x32xf32>
    %157 = arith.subf %140, %156 : vector<16x32xf32>
    %cst_75 = arith.constant 9.99999974E-6 : f32
    %158 = vector.broadcast %cst_75 : f32 to vector<16x1xf32>
    %159 = arith.addf %155, %158 : vector<16x1xf32>
    %160 = math.rsqrt %159 : vector<16x1xf32>
    %161 = vector.broadcast %160 : vector<16x1xf32> to vector<16x32xf32>
    %162 = arith.mulf %157, %161 : vector<16x32xf32>
    %163 = vector.broadcast %142 : vector<1x32xf32> to vector<16x32xf32>
    %164 = arith.mulf %162, %163 : vector<16x32xf32>
    %165 = vector.broadcast %144 : vector<1x32xf32> to vector<16x32xf32>
    %166 = arith.addf %164, %165 : vector<16x32xf32>
    %c1 = arith.constant 1 : index
    %c0_76 = arith.constant 0 : index
    %c0_77 = arith.constant 0 : index
    %167 = vector.load %arg2[%c1, %c0_76, %c0_77] : memref<2x32x96xf32, #tpu.memory_space<vmem>>, vector<1x32x96xf32>
    %168 = vector.shape_cast %167 : vector<1x32x96xf32> to vector<32x96xf32>
    %cst_78 = arith.constant dense<0.000000e+00> : vector<16x96xf32>
    %169 = tpu.matmul %166, %168, %cst_78 {dimension_numbers = #tpu.dot_dimension_numbers<[1], [0], [0], [1], [0, 0, 1, 1], [], []>} : vector<16x32xf32>, vector<32x96xf32>, vector<16x96xf32> -> vector<16x96xf32>
    %c1_79 = arith.constant 1 : index
    %c0_80 = arith.constant 0 : index
    %c0_81 = arith.constant 0 : index
    %170 = vector.load %arg3[%c1_79, %c0_80, %c0_81] : memref<2x1x96xf32, #tpu.memory_space<vmem>>, vector<1x1x96xf32>
    %171 = vector.shape_cast %170 : vector<1x1x96xf32> to vector<1x96xf32>
    %172 = vector.broadcast %171 : vector<1x96xf32> to vector<16x96xf32>
    %173 = arith.addf %169, %172 : vector<16x96xf32>
    %174 = vector.extract_strided_slice %173 {offsets = [0, 0], sizes = [16, 32], strides = [1, 1]} : vector<16x96xf32> to vector<16x32xf32>
    %175 = vector.shape_cast %174 : vector<16x32xf32> to vector<2x8x32xf32>
    %176 = vector.extract_strided_slice %173 {offsets = [0, 32], sizes = [16, 32], strides = [1, 1]} : vector<16x96xf32> to vector<16x32xf32>
    %177 = vector.shape_cast %176 : vector<16x32xf32> to vector<2x8x32xf32>
    %178 = vector.extract_strided_slice %173 {offsets = [0, 64], sizes = [16, 32], strides = [1, 1]} : vector<16x96xf32> to vector<16x32xf32>
    %179 = vector.shape_cast %178 : vector<16x32xf32> to vector<2x8x32xf32>
    %180 = vector.extract_strided_slice %175 {offsets = [0, 0, 0], sizes = [2, 8, 8], strides = [1, 1, 1]} : vector<2x8x32xf32> to vector<2x8x8xf32>
    %181 = vector.extract_strided_slice %177 {offsets = [0, 0, 0], sizes = [2, 8, 8], strides = [1, 1, 1]} : vector<2x8x32xf32> to vector<2x8x8xf32>
    %182 = vector.extract_strided_slice %179 {offsets = [0, 0, 0], sizes = [2, 8, 8], strides = [1, 1, 1]} : vector<2x8x32xf32> to vector<2x8x8xf32>
    "tpu.trace_start"() <{level = 10 : i32, message = "bqd,bkd->bqk"}> : () -> ()
    %cst_82 = arith.constant dense<0.000000e+00> : vector<2x8x8xf32>
    %183 = tpu.matmul %180, %181, %cst_82 {dimension_numbers = #tpu.dot_dimension_numbers<[2], [2], [1], [1], [0, 0, 0, 1, 1, 1], [0], [0]>} : vector<2x8x8xf32>, vector<2x8x8xf32>, vector<2x8x8xf32> -> vector<2x8x8xf32>
    "tpu.trace_stop"() : () -> ()
    %cst_83 = arith.constant 0.353553385 : f32
    %184 = vector.broadcast %cst_83 : f32 to vector<2x8x8xf32>
    %185 = arith.mulf %183, %184 : vector<2x8x8xf32>
    %cst_84 = arith.constant dense<0xFF800000> : vector<2x8xf32>
    %186 = vector.multi_reduction <maximumf>, %185, %cst_84 [2] : vector<2x8x8xf32> to vector<2x8xf32>
    %187 = vector.shape_cast %186 : vector<2x8xf32> to vector<2x8x1xf32>
    %188 = vector.broadcast %187 : vector<2x8x1xf32> to vector<2x8x8xf32>
    %189 = arith.subf %185, %188 : vector<2x8x8xf32>
    %190 = math.exp %189 : vector<2x8x8xf32>
    %cst_85 = arith.constant dense<0.000000e+00> : vector<2x8xf32>
    %191 = vector.multi_reduction <add>, %190, %cst_85 [2] : vector<2x8x8xf32> to vector<2x8xf32>
    %192 = vector.shape_cast %191 : vector<2x8xf32> to vector<2x8x1xf32>
    %193 = vector.broadcast %192 : vector<2x8x1xf32> to vector<2x8x8xf32>
    %194 = arith.divf %190, %193 : vector<2x8x8xf32>
    "tpu.trace_start"() <{level = 10 : i32, message = "bqk,bkd->bqd"}> : () -> ()
    %cst_86 = arith.constant dense<0.000000e+00> : vector<2x8x8xf32>
    %195 = tpu.matmul %194, %182, %cst_86 {dimension_numbers = #tpu.dot_dimension_numbers<[2], [1], [1], [2], [0, 0, 0, 1, 1, 2], [0], [0]>} : vector<2x8x8xf32>, vector<2x8x8xf32>, vector<2x8x8xf32> -> vector<2x8x8xf32>
    "tpu.trace_stop"() : () -> ()
    %196 = vector.extract_strided_slice %175 {offsets = [0, 0, 8], sizes = [2, 8, 8], strides = [1, 1, 1]} : vector<2x8x32xf32> to vector<2x8x8xf32>
    %197 = vector.extract_strided_slice %177 {offsets = [0, 0, 8], sizes = [2, 8, 8], strides = [1, 1, 1]} : vector<2x8x32xf32> to vector<2x8x8xf32>
    %198 = vector.extract_strided_slice %179 {offsets = [0, 0, 8], sizes = [2, 8, 8], strides = [1, 1, 1]} : vector<2x8x32xf32> to vector<2x8x8xf32>
    "tpu.trace_start"() <{level = 10 : i32, message = "bqd,bkd->bqk"}> : () -> ()
    %cst_87 = arith.constant dense<0.000000e+00> : vector<2x8x8xf32>
    %199 = tpu.matmul %196, %197, %cst_87 {dimension_numbers = #tpu.dot_dimension_numbers<[2], [2], [1], [1], [0, 0, 0, 1, 1, 1], [0], [0]>} : vector<2x8x8xf32>, vector<2x8x8xf32>, vector<2x8x8xf32> -> vector<2x8x8xf32>
    "tpu.trace_stop"() : () -> ()
    %cst_88 = arith.constant 0.353553385 : f32
    %200 = vector.broadcast %cst_88 : f32 to vector<2x8x8xf32>
    %201 = arith.mulf %199, %200 : vector<2x8x8xf32>
    %cst_89 = arith.constant dense<0xFF800000> : vector<2x8xf32>
    %202 = vector.multi_reduction <maximumf>, %201, %cst_89 [2] : vector<2x8x8xf32> to vector<2x8xf32>
    %203 = vector.shape_cast %202 : vector<2x8xf32> to vector<2x8x1xf32>
    %204 = vector.broadcast %203 : vector<2x8x1xf32> to vector<2x8x8xf32>
    %205 = arith.subf %201, %204 : vector<2x8x8xf32>
    %206 = math.exp %205 : vector<2x8x8xf32>
    %cst_90 = arith.constant dense<0.000000e+00> : vector<2x8xf32>
    %207 = vector.multi_reduction <add>, %206, %cst_90 [2] : vector<2x8x8xf32> to vector<2x8xf32>
    %208 = vector.shape_cast %207 : vector<2x8xf32> to vector<2x8x1xf32>
    %209 = vector.broadcast %208 : vector<2x8x1xf32> to vector<2x8x8xf32>
    %210 = arith.divf %206, %209 : vector<2x8x8xf32>
    "tpu.trace_start"() <{level = 10 : i32, message = "bqk,bkd->bqd"}> : () -> ()
    %cst_91 = arith.constant dense<0.000000e+00> : vector<2x8x8xf32>
    %211 = tpu.matmul %210, %198, %cst_91 {dimension_numbers = #tpu.dot_dimension_numbers<[2], [1], [1], [2], [0, 0, 0, 1, 1, 2], [0], [0]>} : vector<2x8x8xf32>, vector<2x8x8xf32>, vector<2x8x8xf32> -> vector<2x8x8xf32>
    "tpu.trace_stop"() : () -> ()
    %212 = vector.extract_strided_slice %175 {offsets = [0, 0, 16], sizes = [2, 8, 8], strides = [1, 1, 1]} : vector<2x8x32xf32> to vector<2x8x8xf32>
    %213 = vector.extract_strided_slice %177 {offsets = [0, 0, 16], sizes = [2, 8, 8], strides = [1, 1, 1]} : vector<2x8x32xf32> to vector<2x8x8xf32>
    %214 = vector.extract_strided_slice %179 {offsets = [0, 0, 16], sizes = [2, 8, 8], strides = [1, 1, 1]} : vector<2x8x32xf32> to vector<2x8x8xf32>
    "tpu.trace_start"() <{level = 10 : i32, message = "bqd,bkd->bqk"}> : () -> ()
    %cst_92 = arith.constant dense<0.000000e+00> : vector<2x8x8xf32>
    %215 = tpu.matmul %212, %213, %cst_92 {dimension_numbers = #tpu.dot_dimension_numbers<[2], [2], [1], [1], [0, 0, 0, 1, 1, 1], [0], [0]>} : vector<2x8x8xf32>, vector<2x8x8xf32>, vector<2x8x8xf32> -> vector<2x8x8xf32>
    "tpu.trace_stop"() : () -> ()
    %cst_93 = arith.constant 0.353553385 : f32
    %216 = vector.broadcast %cst_93 : f32 to vector<2x8x8xf32>
    %217 = arith.mulf %215, %216 : vector<2x8x8xf32>
    %cst_94 = arith.constant dense<0xFF800000> : vector<2x8xf32>
    %218 = vector.multi_reduction <maximumf>, %217, %cst_94 [2] : vector<2x8x8xf32> to vector<2x8xf32>
    %219 = vector.shape_cast %218 : vector<2x8xf32> to vector<2x8x1xf32>
    %220 = vector.broadcast %219 : vector<2x8x1xf32> to vector<2x8x8xf32>
    %221 = arith.subf %217, %220 : vector<2x8x8xf32>
    %222 = math.exp %221 : vector<2x8x8xf32>
    %cst_95 = arith.constant dense<0.000000e+00> : vector<2x8xf32>
    %223 = vector.multi_reduction <add>, %222, %cst_95 [2] : vector<2x8x8xf32> to vector<2x8xf32>
    %224 = vector.shape_cast %223 : vector<2x8xf32> to vector<2x8x1xf32>
    %225 = vector.broadcast %224 : vector<2x8x1xf32> to vector<2x8x8xf32>
    %226 = arith.divf %222, %225 : vector<2x8x8xf32>
    "tpu.trace_start"() <{level = 10 : i32, message = "bqk,bkd->bqd"}> : () -> ()
    %cst_96 = arith.constant dense<0.000000e+00> : vector<2x8x8xf32>
    %227 = tpu.matmul %226, %214, %cst_96 {dimension_numbers = #tpu.dot_dimension_numbers<[2], [1], [1], [2], [0, 0, 0, 1, 1, 2], [0], [0]>} : vector<2x8x8xf32>, vector<2x8x8xf32>, vector<2x8x8xf32> -> vector<2x8x8xf32>
    "tpu.trace_stop"() : () -> ()
    %228 = vector.extract_strided_slice %175 {offsets = [0, 0, 24], sizes = [2, 8, 8], strides = [1, 1, 1]} : vector<2x8x32xf32> to vector<2x8x8xf32>
    %229 = vector.extract_strided_slice %177 {offsets = [0, 0, 24], sizes = [2, 8, 8], strides = [1, 1, 1]} : vector<2x8x32xf32> to vector<2x8x8xf32>
    %230 = vector.extract_strided_slice %179 {offsets = [0, 0, 24], sizes = [2, 8, 8], strides = [1, 1, 1]} : vector<2x8x32xf32> to vector<2x8x8xf32>
    "tpu.trace_start"() <{level = 10 : i32, message = "bqd,bkd->bqk"}> : () -> ()
    %cst_97 = arith.constant dense<0.000000e+00> : vector<2x8x8xf32>
    %231 = tpu.matmul %228, %229, %cst_97 {dimension_numbers = #tpu.dot_dimension_numbers<[2], [2], [1], [1], [0, 0, 0, 1, 1, 1], [0], [0]>} : vector<2x8x8xf32>, vector<2x8x8xf32>, vector<2x8x8xf32> -> vector<2x8x8xf32>
    "tpu.trace_stop"() : () -> ()
    %cst_98 = arith.constant 0.353553385 : f32
    %232 = vector.broadcast %cst_98 : f32 to vector<2x8x8xf32>
    %233 = arith.mulf %231, %232 : vector<2x8x8xf32>
    %cst_99 = arith.constant dense<0xFF800000> : vector<2x8xf32>
    %234 = vector.multi_reduction <maximumf>, %233, %cst_99 [2] : vector<2x8x8xf32> to vector<2x8xf32>
    %235 = vector.shape_cast %234 : vector<2x8xf32> to vector<2x8x1xf32>
    %236 = vector.broadcast %235 : vector<2x8x1xf32> to vector<2x8x8xf32>
    %237 = arith.subf %233, %236 : vector<2x8x8xf32>
    %238 = math.exp %237 : vector<2x8x8xf32>
    %cst_100 = arith.constant dense<0.000000e+00> : vector<2x8xf32>
    %239 = vector.multi_reduction <add>, %238, %cst_100 [2] : vector<2x8x8xf32> to vector<2x8xf32>
    %240 = vector.shape_cast %239 : vector<2x8xf32> to vector<2x8x1xf32>
    %241 = vector.broadcast %240 : vector<2x8x1xf32> to vector<2x8x8xf32>
    %242 = arith.divf %238, %241 : vector<2x8x8xf32>
    "tpu.trace_start"() <{level = 10 : i32, message = "bqk,bkd->bqd"}> : () -> ()
    %cst_101 = arith.constant dense<0.000000e+00> : vector<2x8x8xf32>
    %243 = tpu.matmul %242, %230, %cst_101 {dimension_numbers = #tpu.dot_dimension_numbers<[2], [1], [1], [2], [0, 0, 0, 1, 1, 2], [0], [0]>} : vector<2x8x8xf32>, vector<2x8x8xf32>, vector<2x8x8xf32> -> vector<2x8x8xf32>
    "tpu.trace_stop"() : () -> ()
    %244 = tpu.concatenate %195, %211, %227, %243 in 2 : vector<2x8x8xf32>, vector<2x8x8xf32>, vector<2x8x8xf32>, vector<2x8x8xf32> -> vector<2x8x32xf32>
    %245 = vector.shape_cast %244 : vector<2x8x32xf32> to vector<16x32xf32>
    %c1_102 = arith.constant 1 : index
    %c0_103 = arith.constant 0 : index
    %c0_104 = arith.constant 0 : index
    %246 = vector.load %arg4[%c1_102, %c0_103, %c0_104] : memref<2x32x32xf32, #tpu.memory_space<vmem>>, vector<1x32x32xf32>
    %247 = vector.shape_cast %246 : vector<1x32x32xf32> to vector<32x32xf32>
    %cst_105 = arith.constant dense<0.000000e+00> : vector<16x32xf32>
    %248 = tpu.matmul %245, %247, %cst_105 {dimension_numbers = #tpu.dot_dimension_numbers<[1], [0], [0], [1], [0, 0, 1, 1], [], []>} : vector<16x32xf32>, vector<32x32xf32>, vector<16x32xf32> -> vector<16x32xf32>
    %c1_106 = arith.constant 1 : index
    %c0_107 = arith.constant 0 : index
    %c0_108 = arith.constant 0 : index
    %249 = vector.load %arg5[%c1_106, %c0_107, %c0_108] : memref<2x1x32xf32, #tpu.memory_space<vmem>>, vector<1x1x32xf32>
    %250 = vector.shape_cast %249 : vector<1x1x32xf32> to vector<1x32xf32>
    %251 = vector.broadcast %250 : vector<1x32xf32> to vector<16x32xf32>
    %252 = arith.addf %248, %251 : vector<16x32xf32>
    %253 = arith.addf %166, %252 : vector<16x32xf32>
    %c1_109 = arith.constant 1 : index
    %c0_110 = arith.constant 0 : index
    %c0_111 = arith.constant 0 : index
    %254 = vector.load %arg6[%c1_109, %c0_110, %c0_111] : memref<2x1x32xf32, #tpu.memory_space<vmem>>, vector<1x1x32xf32>
    %255 = vector.shape_cast %254 : vector<1x1x32xf32> to vector<1x32xf32>
    %c1_112 = arith.constant 1 : index
    %c0_113 = arith.constant 0 : index
    %c0_114 = arith.constant 0 : index
    %256 = vector.load %arg7[%c1_112, %c0_113, %c0_114] : memref<2x1x32xf32, #tpu.memory_space<vmem>>, vector<1x1x32xf32>
    %257 = vector.shape_cast %256 : vector<1x1x32xf32> to vector<1x32xf32>
    %cst_115 = arith.constant dense<0.000000e+00> : vector<16xf32>
    %258 = vector.multi_reduction <add>, %253, %cst_115 [1] : vector<16x32xf32> to vector<16xf32>
    %259 = vector.shape_cast %258 : vector<16xf32> to vector<16x1xf32>
    %cst_116 = arith.constant 3.200000e+01 : f32
    %260 = vector.broadcast %cst_116 : f32 to vector<16x1xf32>
    %261 = arith.divf %259, %260 : vector<16x1xf32>
    %262 = vector.broadcast %261 : vector<16x1xf32> to vector<16x32xf32>
    %263 = arith.subf %253, %262 : vector<16x32xf32>
    %264 = arith.mulf %263, %263 : vector<16x32xf32>
    %cst_117 = arith.constant dense<0.000000e+00> : vector<16xf32>
    %265 = vector.multi_reduction <add>, %264, %cst_117 [1] : vector<16x32xf32> to vector<16xf32>
    %266 = vector.shape_cast %265 : vector<16xf32> to vector<16x1xf32>
    %cst_118 = arith.constant 3.200000e+01 : f32
    %267 = vector.broadcast %cst_118 : f32 to vector<16x1xf32>
    %268 = arith.divf %266, %267 : vector<16x1xf32>
    %269 = vector.broadcast %261 : vector<16x1xf32> to vector<16x32xf32>
    %270 = arith.subf %253, %269 : vector<16x32xf32>
    %cst_119 = arith.constant 9.99999974E-6 : f32
    %271 = vector.broadcast %cst_119 : f32 to vector<16x1xf32>
    %272 = arith.addf %268, %271 : vector<16x1xf32>
    %273 = math.rsqrt %272 : vector<16x1xf32>
    %274 = vector.broadcast %273 : vector<16x1xf32> to vector<16x32xf32>
    %275 = arith.mulf %270, %274 : vector<16x32xf32>
    %276 = vector.broadcast %255 : vector<1x32xf32> to vector<16x32xf32>
    %277 = arith.mulf %275, %276 : vector<16x32xf32>
    %278 = vector.broadcast %257 : vector<1x32xf32> to vector<16x32xf32>
    %279 = arith.addf %277, %278 : vector<16x32xf32>
    %c1_120 = arith.constant 1 : index
    %c0_121 = arith.constant 0 : index
    %c0_122 = arith.constant 0 : index
    %280 = vector.load %arg8[%c1_120, %c0_121, %c0_122] : memref<2x32x64xf32, #tpu.memory_space<vmem>>, vector<1x32x64xf32>
    %281 = vector.shape_cast %280 : vector<1x32x64xf32> to vector<32x64xf32>
    %cst_123 = arith.constant dense<0.000000e+00> : vector<16x64xf32>
    %282 = tpu.matmul %279, %281, %cst_123 {dimension_numbers = #tpu.dot_dimension_numbers<[1], [0], [0], [1], [0, 0, 1, 1], [], []>} : vector<16x32xf32>, vector<32x64xf32>, vector<16x64xf32> -> vector<16x64xf32>
    %c1_124 = arith.constant 1 : index
    %c0_125 = arith.constant 0 : index
    %c0_126 = arith.constant 0 : index
    %283 = vector.load %arg9[%c1_124, %c0_125, %c0_126] : memref<2x1x64xf32, #tpu.memory_space<vmem>>, vector<1x1x64xf32>
    %284 = vector.shape_cast %283 : vector<1x1x64xf32> to vector<1x64xf32>
    %285 = vector.broadcast %284 : vector<1x64xf32> to vector<16x64xf32>
    %286 = arith.addf %282, %285 : vector<16x64xf32>
    %cst_127 = arith.constant 0.000000e+00 : f32
    %287 = vector.broadcast %cst_127 : f32 to vector<16x64xf32>
    %288 = arith.maximumf %286, %287 : vector<16x64xf32>
    %c1_128 = arith.constant 1 : index
    %c0_129 = arith.constant 0 : index
    %c0_130 = arith.constant 0 : index
    %289 = vector.load %arg10[%c1_128, %c0_129, %c0_130] : memref<2x64x32xf32, #tpu.memory_space<vmem>>, vector<1x64x32xf32>
    %290 = vector.shape_cast %289 : vector<1x64x32xf32> to vector<64x32xf32>
    %cst_131 = arith.constant dense<0.000000e+00> : vector<16x32xf32>
    %291 = tpu.matmul %288, %290, %cst_131 {dimension_numbers = #tpu.dot_dimension_numbers<[1], [0], [0], [1], [0, 0, 1, 1], [], []>} : vector<16x64xf32>, vector<64x32xf32>, vector<16x32xf32> -> vector<16x32xf32>
    %c1_132 = arith.constant 1 : index
    %c0_133 = arith.constant 0 : index
    %c0_134 = arith.constant 0 : index
    %292 = vector.load %arg11[%c1_132, %c0_133, %c0_134] : memref<2x1x32xf32, #tpu.memory_space<vmem>>, vector<1x1x32xf32>
    %293 = vector.shape_cast %292 : vector<1x1x32xf32> to vector<1x32xf32>
    %294 = vector.broadcast %293 : vector<1x32xf32> to vector<16x32xf32>
    %295 = arith.addf %291, %294 : vector<16x32xf32>
    %296 = arith.addf %279, %295 : vector<16x32xf32>
    %c1_135 = arith.constant 1 : index
    %c0_136 = arith.constant 0 : index
    %c0_137 = arith.constant 0 : index
    %297 = vector.load %arg12[%c1_135, %c0_136, %c0_137] : memref<2x1x32xf32, #tpu.memory_space<vmem>>, vector<1x1x32xf32>
    %298 = vector.shape_cast %297 : vector<1x1x32xf32> to vector<1x32xf32>
    %c1_138 = arith.constant 1 : index
    %c0_139 = arith.constant 0 : index
    %c0_140 = arith.constant 0 : index
    %299 = vector.load %arg13[%c1_138, %c0_139, %c0_140] : memref<2x1x32xf32, #tpu.memory_space<vmem>>, vector<1x1x32xf32>
    %300 = vector.shape_cast %299 : vector<1x1x32xf32> to vector<1x32xf32>
    %cst_141 = arith.constant dense<0.000000e+00> : vector<16xf32>
    %301 = vector.multi_reduction <add>, %296, %cst_141 [1] : vector<16x32xf32> to vector<16xf32>
    %302 = vector.shape_cast %301 : vector<16xf32> to vector<16x1xf32>
    %cst_142 = arith.constant 3.200000e+01 : f32
    %303 = vector.broadcast %cst_142 : f32 to vector<16x1xf32>
    %304 = arith.divf %302, %303 : vector<16x1xf32>
    %305 = vector.broadcast %304 : vector<16x1xf32> to vector<16x32xf32>
    %306 = arith.subf %296, %305 : vector<16x32xf32>
    %307 = arith.mulf %306, %306 : vector<16x32xf32>
    %cst_143 = arith.constant dense<0.000000e+00> : vector<16xf32>
    %308 = vector.multi_reduction <add>, %307, %cst_143 [1] : vector<16x32xf32> to vector<16xf32>
    %309 = vector.shape_cast %308 : vector<16xf32> to vector<16x1xf32>
    %cst_144 = arith.constant 3.200000e+01 : f32
    %310 = vector.broadcast %cst_144 : f32 to vector<16x1xf32>
    %311 = arith.divf %309, %310 : vector<16x1xf32>
    %312 = vector.broadcast %304 : vector<16x1xf32> to vector<16x32xf32>
    %313 = arith.subf %296, %312 : vector<16x32xf32>
    %cst_145 = arith.constant 9.99999974E-6 : f32
    %314 = vector.broadcast %cst_145 : f32 to vector<16x1xf32>
    %315 = arith.addf %311, %314 : vector<16x1xf32>
    %316 = math.rsqrt %315 : vector<16x1xf32>
    %317 = vector.broadcast %316 : vector<16x1xf32> to vector<16x32xf32>
    %318 = arith.mulf %313, %317 : vector<16x32xf32>
    %319 = vector.broadcast %298 : vector<1x32xf32> to vector<16x32xf32>
    %320 = arith.mulf %318, %319 : vector<16x32xf32>
    %321 = vector.broadcast %300 : vector<1x32xf32> to vector<16x32xf32>
    %322 = arith.addf %320, %321 : vector<16x32xf32>
    %323 = vector.extract_strided_slice %322 {offsets = [0, 0], sizes = [8, 32], strides = [1, 1]} : vector<16x32xf32> to vector<8x32xf32>
    %cst_146 = arith.constant dense<0xFF800000> : vector<32xf32>
    %324 = vector.multi_reduction <maximumf>, %323, %cst_146 [0] : vector<8x32xf32> to vector<32xf32>
    %325 = vector.shape_cast %324 : vector<32xf32> to vector<1x32xf32>
    %326 = vector.extract_strided_slice %322 {offsets = [8, 0], sizes = [8, 32], strides = [1, 1]} : vector<16x32xf32> to vector<8x32xf32>
    %cst_147 = arith.constant dense<0xFF800000> : vector<32xf32>
    %327 = vector.multi_reduction <maximumf>, %326, %cst_147 [0] : vector<8x32xf32> to vector<32xf32>
    %328 = vector.shape_cast %327 : vector<32xf32> to vector<1x32xf32>
    %329 = tpu.concatenate %325, %328 in 0 : vector<1x32xf32>, vector<1x32xf32> -> vector<2x32xf32>
    %330 = arith.mulf %329, %329 : vector<2x32xf32>
    %cst_148 = arith.constant dense<0.000000e+00> : vector<2xf32>
    %331 = vector.multi_reduction <add>, %330, %cst_148 [1] : vector<2x32xf32> to vector<2xf32>
    %332 = vector.shape_cast %331 : vector<2xf32> to vector<2x1xf32>
    %cst_149 = arith.constant 1.000000e-24 : f32
    %333 = vector.broadcast %cst_149 : f32 to vector<2x1xf32>
    %334 = arith.maximumf %332, %333 : vector<2x1xf32>
    %335 = math.rsqrt %334 : vector<2x1xf32>
    %336 = vector.broadcast %335 : vector<2x1xf32> to vector<2x32xf32>
    %337 = arith.mulf %329, %336 : vector<2x32xf32>
    %c0_150 = arith.constant 0 : index
    %c0_151 = arith.constant 0 : index
    %338 = vector.load %arg14[%c0_150, %c0_151] : memref<2x32xf32, #tpu.memory_space<vmem>>, vector<2x32xf32>
    tpu.vector_store %arg14[%c0_150, %c0_151], %337 {strides = array<i32>} : memref<2x32xf32, #tpu.memory_space<vmem>>, vector<2x32xf32>,
    return
  }
}

</mosaic_0001>

<llo_original>
// kernel: tpu_custom_call.1
$region0: #{tpu_custom_call.1}
  #allocation0 [shape = 'u32[]', space=smem, size = 0x4, offset = 0x4, fixed_abs, tag = 'smem constant byte address 0x4 - core index']
  #allocation1 [shape = 'u32[144,128]{1,0:T(1,128)}', space=vmem, size = 0x12000, scoped, tag = 'internal scratch']
  %s0 = inlined_call_operand.vmem [shape: f32[8,32], index: 0, kind: input, shape index: {}]
  %s1 = inlined_call_operand.vmem [shape: f32[16,8], index: 1, kind: input, shape index: {}]
  %s2 = inlined_call_operand.vmem [shape: f32[2,32,96], index: 2, kind: input, shape index: {}]
  %s3 = inlined_call_operand.vmem [shape: f32[2,1,96], index: 3, kind: input, shape index: {}]
  %s4 = inlined_call_operand.vmem [shape: f32[2,32,32], index: 4, kind: input, shape index: {}]
  %s5 = inlined_call_operand.vmem [shape: f32[2,1,32], index: 5, kind: input, shape index: {}]
  %s6 = inlined_call_operand.vmem [shape: f32[2,1,32], index: 6, kind: input, shape index: {}]
  %s7 = inlined_call_operand.vmem [shape: f32[2,1,32], index: 7, kind: input, shape index: {}]
  %s8 = inlined_call_operand.vmem [shape: f32[2,32,64], index: 8, kind: input, shape index: {}]
  %s9 = inlined_call_operand.vmem [shape: f32[2,1,64], index: 9, kind: input, shape index: {}]
  %s10 = inlined_call_operand.vmem [shape: f32[2,64,32], index: 10, kind: input, shape index: {}]
  %s11 = inlined_call_operand.vmem [shape: f32[2,1,32], index: 11, kind: input, shape index: {}]
  %s12 = inlined_call_operand.vmem [shape: f32[2,1,32], index: 12, kind: input, shape index: {}]
  %s13 = inlined_call_operand.vmem [shape: f32[2,1,32], index: 13, kind: input, shape index: {}]
  %s14 = inlined_call_operand.hbm [shape: f32[2,32], index: 14, kind: output, shape index: {}]
  %s15 = sld [smem:[#allocation0]]
  $region66: #{tpu_custom_call.1} parent=0
    _
  %s17 = ssub.s32 1, %s15
  %s18 = scalar_select 0, %s17, %s15
  $region1: #{tpu_custom_call.1} parent=0
    #allocation2 [shape = 'u8[1024]{0}', space=vmem, size = 0x400, scoped, tag = 'output window, operand 0, single buffered']
    #allocation3 [shape = 's32[1]{0}', space=sflag, size = 0x4, scoped, tag = 'scoped memory for tpu_custom_call.1']
    %19 = vsyncpa [#allocation3], 0
    // Predicated region
    $region2: #{tpu_custom_call.1} parent=1 // pred_check
      _
    $region3: #{tpu_custom_call.1} parent=1 // pred_check_branch
      %21 = sbr.rel (0) target = $region5
    $region4: #{tpu_custom_call.1} parent=1 // pred_region
      _
    $region5: #{tpu_custom_call.1} parent=1 // pred_fallthru
      _
    // Predicated region
    $region6: #{tpu_custom_call.1} parent=1 // pred_check
      _
    $region7: #{tpu_custom_call.1} parent=1 // pred_check_branch
      %23 = sbr.rel (0) target = $region9
    $region8: #{tpu_custom_call.1} parent=1 // pred_region
      _
    $region9: #{tpu_custom_call.1} parent=1 // pred_fallthru
      _
    // Predicated region
    $region10: #{tpu_custom_call.1} parent=1 // pred_check
      _
    $region11: #{tpu_custom_call.1} parent=1 // pred_check_branch
      %25 = sbr.rel (0) target = $region13
    $region12: #{tpu_custom_call.1} parent=1 // pred_region
      _
    $region13: #{tpu_custom_call.1} parent=1 // pred_fallthru
      _
    // Predicated region
    $region14: #{tpu_custom_call.1} parent=1 // pred_check
      _
    $region15: #{tpu_custom_call.1} parent=1 // pred_check_branch
      %27 = sbr.rel (0) target = $region17
    $region16: #{tpu_custom_call.1} parent=1 // pred_region
      _
    $region17: #{tpu_custom_call.1} parent=1 // pred_fallthru
      _
    // Predicated region
    $region18: #{tpu_custom_call.1} parent=1 // pred_check
      _
    $region19: #{tpu_custom_call.1} parent=1 // pred_check_branch
      %29 = sbr.rel (0) target = $region21
    $region20: #{tpu_custom_call.1} parent=1 // pred_region
      _
    $region21: #{tpu_custom_call.1} parent=1 // pred_fallthru
      _
    // Predicated region
    $region22: #{tpu_custom_call.1} parent=1 // pred_check
      _
    $region23: #{tpu_custom_call.1} parent=1 // pred_check_branch
      %31 = sbr.rel (0) target = $region25
    $region24: #{tpu_custom_call.1} parent=1 // pred_region
      _
    $region25: #{tpu_custom_call.1} parent=1 // pred_fallthru
      _
    // Predicated region
    $region26: #{tpu_custom_call.1} parent=1 // pred_check
      _
    $region27: #{tpu_custom_call.1} parent=1 // pred_check_branch
      %33 = sbr.rel (0) target = $region29
    $region28: #{tpu_custom_call.1} parent=1 // pred_region
      _
    $region29: #{tpu_custom_call.1} parent=1 // pred_fallthru
      _
    // Predicated region
    $region30: #{tpu_custom_call.1} parent=1 // pred_check
      _
    $region31: #{tpu_custom_call.1} parent=1 // pred_check_branch
      %35 = sbr.rel (0) target = $region33
    $region32: #{tpu_custom_call.1} parent=1 // pred_region
      _
    $region33: #{tpu_custom_call.1} parent=1 // pred_fallthru
      _
    // Predicated region
    $region34: #{tpu_custom_call.1} parent=1 // pred_check
      _
    $region35: #{tpu_custom_call.1} parent=1 // pred_check_branch
      %37 = sbr.rel (0) target = $region37
    $region36: #{tpu_custom_call.1} parent=1 // pred_region
      _
    $region37: #{tpu_custom_call.1} parent=1 // pred_fallthru
      _
    // Predicated region
    $region38: #{tpu_custom_call.1} parent=1 // pred_check
      _
    $region39: #{tpu_custom_call.1} parent=1 // pred_check_branch
      %39 = sbr.rel (0) target = $region41
    $region40: #{tpu_custom_call.1} parent=1 // pred_region
      _
    $region41: #{tpu_custom_call.1} parent=1 // pred_fallthru
      _
    // Predicated region
    $region42: #{tpu_custom_call.1} parent=1 // pred_check
      _
    $region43: #{tpu_custom_call.1} parent=1 // pred_check_branch
      %41 = sbr.rel (0) target = $region45
    $region44: #{tpu_custom_call.1} parent=1 // pred_region
      _
    $region45: #{tpu_custom_call.1} parent=1 // pred_fallthru
      _
    // Predicated region
    $region46: #{tpu_custom_call.1} parent=1 // pred_check
      _
    $region47: #{tpu_custom_call.1} parent=1 // pred_check_branch
      %43 = sbr.rel (0) target = $region49
    $region48: #{tpu_custom_call.1} parent=1 // pred_region
      _
    $region49: #{tpu_custom_call.1} parent=1 // pred_fallthru
      _
    // Predicated region
    $region50: #{tpu_custom_call.1} parent=1 // pred_check
      _
    $region51: #{tpu_custom_call.1} parent=1 // pred_check_branch
      %45 = sbr.rel (0) target = $region53
    $region52: #{tpu_custom_call.1} parent=1 // pred_region
      _
    $region53: #{tpu_custom_call.1} parent=1 // pred_fallthru
      _
    // Predicated region
    $region54: #{tpu_custom_call.1} parent=1 // pred_check
      _
    $region55: #{tpu_custom_call.1} parent=1 // pred_check_branch
      %47 = sbr.rel (0) target = $region57
    $region56: #{tpu_custom_call.1} parent=1 // pred_region
      _
    $region57: #{tpu_custom_call.1} parent=1 // pred_fallthru
      _
    %v48 = vld [vmem:[%s0] sm:$0xff]
    %v49 = vmul.f32 %v48, %v48
    %vm50 = vcmask 261120
    %v51 = vsel %vm50, %v49, 0.0
    %52 = vadd.xlane.f32.xlu0 %v51
    %v53 = vpop.xlane.xlu0 %52
    %v54 = vmax.f32 %v53, 1e-24
    %v55 = vrsqrt.pop %v54
    %v56 = vmul.f32 %v48, %v55
    %v57 = vld [vmem:[%s1] sm:$0xff]
    %v58 = vld [vmem:[%s1 + $0x8] sm:$0xff]
    %vm59 = vcmask 64512
    %v61 = vsel %vm59, %v57, 0
    %v64 = vsel %vm59, %v58, 0
    %66 = vmatprep.subr.mxu0 0.0
    %67 = vmatpush1.msra.mxu0 %v56
    %68 = vmatprep.subr.mxu0 0.0
    %69 = vmatpush1.msra.mxu0 0.0
    %70 = vmatprep.subr.mxu0 0.0
    %71 = vmatpush1.msra.mxu0 0.0
    %72 = vmatprep.subr.mxu0 0.0
    %73 = vmatpush1.msra.mxu0 0.0
    %74 = vmatprep.subr.mxu0 0.0
    %75 = vmatpush1.msra.mxu0 0.0
    %76 = vmatprep.subr.mxu0 0.0
    %77 = vmatpush1.msra.mxu0 0.0
    %78 = vmatprep.subr.mxu0 0.0
    %79 = vmatpush1.msra.mxu0 0.0
    %80 = vmatprep.subr.mxu0 0.0
    %81 = vmatpush1.msra.mxu0 0.0
    %82 = vmatprep.subr.mxu0 0.0
    %83 = vmatpush1.msra.mxu0 0.0
    %84 = vmatprep.subr.mxu0 0.0
    %85 = vmatpush1.msra.mxu0 0.0
    %86 = vmatprep.subr.mxu0 0.0
    %87 = vmatpush1.msra.mxu0 0.0
    %88 = vmatprep.subr.mxu0 0.0
    %89 = vmatpush1.msra.mxu0 0.0
    %90 = vmatprep.subr.mxu0 0.0
    %91 = vmatpush1.msra.mxu0 0.0
    %92 = vmatprep.subr.mxu0 0.0
    %93 = vmatpush1.msra.mxu0 0.0
    %94 = vmatprep.subr.mxu0 0.0
    %95 = vmatpush1.msra.mxu0 0.0
    %96 = vmatprep.subr.mxu0 0.0
    %97 = vmatpush1.msra.mxu0 0.0
    %98 = vmatprep.subr.mxu0 0.0
    %99 = vmatpush1.msra.mxu0 0.0
    %100 = vmatprep.subr.mxu0 0.0
    %101 = vmatpush1.msra.mxu0 0.0
    %102 = vmatprep.subr.mxu0 0.0
    %103 = vmatpush1.msra.mxu0 0.0
    %104 = vmatprep.subr.mxu0 0.0
    %105 = vmatpush1.msra.mxu0 0.0
    %106 = vmatprep.subr.mxu0 0.0
    %107 = vmatpush1.msra.mxu0 0.0
    %108 = vmatprep.subr.mxu0 0.0
    %109 = vmatpush1.msra.mxu0 0.0
    %110 = vmatprep.subr.mxu0 0.0
    %111 = vmatpush1.msra.mxu0 0.0
    %112 = vmatprep.subr.mxu0 0.0
    %113 = vmatpush1.msra.mxu0 0.0
    %114 = vmatprep.subr.mxu0 0.0
    %115 = vmatpush1.msra.mxu0 0.0
    %116 = vmatprep.subr.mxu0 0.0
    %117 = vmatpush1.msra.mxu0 0.0
    %118 = vmatprep.subr.mxu0 0.0
    %119 = vmatpush1.msra.mxu0 0.0
    %120 = vmatprep.subr.mxu0 0.0
    %121 = vmatpush1.msra.mxu0 0.0
    %122 = vmatprep.subr.mxu0 0.0
    %123 = vmatpush1.msra.mxu0 0.0
    %124 = vmatprep.subr.mxu0 0.0
    %125 = vmatpush1.msra.mxu0 0.0
    %126 = vmatprep.subr.mxu0 0.0
    %127 = vmatpush1.msra.mxu0 0.0
    %128 = vmatprep.subr.mxu0 0.0
    %129 = vmatpush1.msra.mxu0 0.0
    %130 = vmatprep.mubr.f32.mxu0 0.0
    %131 = vmatmul.mubr.f32.gmra.mrb[0].mxu0 %v61
    %v132 = vpop.f32.mrb[0].mxu0
    %v133 = vadd.f32 0.0, %v132
    %v134 = vpop.f32.mrb[0].mxu0
    %135 = vmatprep.mubr.f32.mxu0 0.0
    %136 = vmatmul.mubr.f32.gmra.mrb[0].mxu0 %v64
    %v137 = vpop.f32.mrb[0].mxu0
    %v138 = vadd.f32 0.0, %v137
    %v139 = vpop.f32.mrb[0].mxu0
    %140 = vdwg.mxu0
    %v141 = vld [vmem:[%s2] sm:$0xff]
    %v142 = vld [vmem:[%s2 + $0x8] sm:$0xff]
    %v143 = vld [vmem:[%s2 + $0x10] sm:$0xff]
    %v144 = vld [vmem:[%s2 + $0x18] sm:$0xff]
    %v145 = vld [vmem:[%s3] sm:$0x1]
    %v147 = vlaneseq
    %v148 = vshrl.u32 %v147, 7
    %v149 = vsub.s32 0, %v148
    %v150 = vrot.slane %v145, %v149
    %v153 = vsel %vm50, %v133, 0
    %v156 = vsel %vm50, %v138, 0
    %158 = vmatprep.subr.mxu0 0.0
    %159 = vmatpush1.msra.mxu0 %v141
    %160 = vmatprep.subr.mxu0 0.0
    %161 = vmatpush1.msra.mxu0 %v142
    %162 = vmatprep.subr.mxu0 0.0
    %163 = vmatpush1.msra.mxu0 %v143
    %164 = vmatprep.subr.mxu0 0.0
    %165 = vmatpush1.msra.mxu0 %v144
    %166 = vmatprep.subr.mxu0 0.0
    %167 = vmatpush1.msra.mxu0 0.0
    %168 = vmatprep.subr.mxu0 0.0
    %169 = vmatpush1.msra.mxu0 0.0
    %170 = vmatprep.subr.mxu0 0.0
    %171 = vmatpush1.msra.mxu0 0.0
    %172 = vmatprep.subr.mxu0 0.0
    %173 = vmatpush1.msra.mxu0 0.0
    %174 = vmatprep.subr.mxu0 0.0
    %175 = vmatpush1.msra.mxu0 0.0
    %176 = vmatprep.subr.mxu0 0.0
    %177 = vmatpush1.msra.mxu0 0.0
    %178 = vmatprep.subr.mxu0 0.0
    %179 = vmatpush1.msra.mxu0 0.0
    %180 = vmatprep.subr.mxu0 0.0
    %181 = vmatpush1.msra.mxu0 0.0
    %182 = vmatprep.subr.mxu0 0.0
    %183 = vmatpush1.msra.mxu0 0.0
    %184 = vmatprep.subr.mxu0 0.0
    %185 = vmatpush1.msra.mxu0 0.0
    %186 = vmatprep.subr.mxu0 0.0
    %187 = vmatpush1.msra.mxu0 0.0
    %188 = vmatprep.subr.mxu0 0.0
    %189 = vmatpush1.msra.mxu0 0.0
    %190 = vmatprep.subr.mxu0 0.0
    %191 = vmatpush1.msra.mxu0 0.0
    %192 = vmatprep.subr.mxu0 0.0
    %193 = vmatpush1.msra.mxu0 0.0
    %194 = vmatprep.subr.mxu0 0.0
    %195 = vmatpush1.msra.mxu0 0.0
    %196 = vmatprep.subr.mxu0 0.0
    %197 = vmatpush1.msra.mxu0 0.0
    %198 = vmatprep.subr.mxu0 0.0
    %199 = vmatpush1.msra.mxu0 0.0
    %200 = vmatprep.subr.mxu0 0.0
    %201 = vmatpush1.msra.mxu0 0.0
    %202 = vmatprep.subr.mxu0 0.0
    %203 = vmatpush1.msra.mxu0 0.0
    %204 = vmatprep.subr.mxu0 0.0
    %205 = vmatpush1.msra.mxu0 0.0
    %206 = vmatprep.subr.mxu0 0.0
    %207 = vmatpush1.msra.mxu0 0.0
    %208 = vmatprep.subr.mxu0 0.0
    %209 = vmatpush1.msra.mxu0 0.0
    %210 = vmatprep.subr.mxu0 0.0
    %211 = vmatpush1.msra.mxu0 0.0
    %212 = vmatprep.subr.mxu0 0.0
    %213 = vmatpush1.msra.mxu0 0.0
    %214 = vmatprep.subr.mxu0 0.0
    %215 = vmatpush1.msra.mxu0 0.0
    %216 = vmatprep.subr.mxu0 0.0
    %217 = vmatpush1.msra.mxu0 0.0
    %218 = vmatprep.subr.mxu0 0.0
    %219 = vmatpush1.msra.mxu0 0.0
    %220 = vmatprep.subr.mxu0 0.0
    %221 = vmatpush1.msra.mxu0 0.0
    %222 = vmatprep.mubr.f32.mxu0 0.0
    %223 = vmatmul.mubr.f32.gmra.mrb[0].mxu0 %v153
    %v224 = vpop.f32.mrb[0].mxu0
    %v225 = vadd.f32 %v150, %v224
    %v226 = vpop.f32.mrb[0].mxu0
    %227 = vmatprep.mubr.f32.mxu0 0.0
    %228 = vmatmul.mubr.f32.gmra.mrb[0].mxu0 %v156
    %v229 = vpop.f32.mrb[0].mxu0
    %v230 = vadd.f32 %v150, %v229
    %v231 = vpop.f32.mrb[0].mxu0
    %232 = vdwg.mxu0
    %234 = vrot.lane.b32.xlu0 %v225, 96
    %v235 = vpop.permute.xlu0 %234
    %v236 = vsel %vm59, %v225, 0
    %v238 = vsel %vm59, %v235, 0
    %240 = vmatprep.subr.mxu0 0.0
    %241 = vmatpush1.xpose.msra.mxu0 %v238
    %242 = vmatprep.subr.mxu0 0.0
    %243 = vmatpush1.xpose.msra.mxu0 0.0
    %244 = vmatprep.subr.mxu0 0.0
    %245 = vmatpush1.xpose.msra.mxu0 0.0
    %246 = vmatprep.subr.mxu0 0.0
    %247 = vmatpush1.xpose.msra.mxu0 0.0
    %248 = vmatprep.subr.mxu0 0.0
    %249 = vmatpush1.xpose.msra.mxu0 0.0
    %250 = vmatprep.subr.mxu0 0.0
    %251 = vmatpush1.xpose.msra.mxu0 0.0
    %252 = vmatprep.subr.mxu0 0.0
    %253 = vmatpush1.xpose.msra.mxu0 0.0
    %254 = vmatprep.subr.mxu0 0.0
    %255 = vmatpush1.xpose.msra.mxu0 0.0
    %256 = vmatprep.subr.mxu0 0.0
    %257 = vmatpush1.xpose.msra.mxu0 0.0
    %258 = vmatprep.subr.mxu0 0.0
    %259 = vmatpush1.xpose.msra.mxu0 0.0
    %260 = vmatprep.subr.mxu0 0.0
    %261 = vmatpush1.xpose.msra.mxu0 0.0
    %262 = vmatprep.subr.mxu0 0.0
    %263 = vmatpush1.xpose.msra.mxu0 0.0
    %264 = vmatprep.subr.mxu0 0.0
    %265 = vmatpush1.xpose.msra.mxu0 0.0
    %266 = vmatprep.subr.mxu0 0.0
    %267 = vmatpush1.xpose.msra.mxu0 0.0
    %268 = vmatprep.subr.mxu0 0.0
    %269 = vmatpush1.xpose.msra.mxu0 0.0
    %270 = vmatprep.subr.mxu0 0.0
    %271 = vmatpush1.xpose.msra.mxu0 0.0
    %272 = vmatprep.subr.mxu0 0.0
    %273 = vmatpush1.xpose.msra.mxu0 0.0
    %274 = vmatprep.subr.mxu0 0.0
    %275 = vmatpush1.xpose.msra.mxu0 0.0
    %276 = vmatprep.subr.mxu0 0.0
    %277 = vmatpush1.xpose.msra.mxu0 0.0
    %278 = vmatprep.subr.mxu0 0.0
    %279 = vmatpush1.xpose.msra.mxu0 0.0
    %280 = vmatprep.subr.mxu0 0.0
    %281 = vmatpush1.xpose.msra.mxu0 0.0
    %282 = vmatprep.subr.mxu0 0.0
    %283 = vmatpush1.xpose.msra.mxu0 0.0
    %284 = vmatprep.subr.mxu0 0.0
    %285 = vmatpush1.xpose.msra.mxu0 0.0
    %286 = vmatprep.subr.mxu0 0.0
    %287 = vmatpush1.xpose.msra.mxu0 0.0
    %288 = vmatprep.subr.mxu0 0.0
    %289 = vmatpush1.xpose.msra.mxu0 0.0
    %290 = vmatprep.subr.mxu0 0.0
    %291 = vmatpush1.xpose.msra.mxu0 0.0
    %292 = vmatprep.subr.mxu0 0.0
    %293 = vmatpush1.xpose.msra.mxu0 0.0
    %294 = vmatprep.subr.mxu0 0.0
    %295 = vmatpush1.xpose.msra.mxu0 0.0
    %296 = vmatprep.subr.mxu0 0.0
    %297 = vmatpush1.xpose.msra.mxu0 0.0
    %298 = vmatprep.subr.mxu0 0.0
    %299 = vmatpush1.xpose.msra.mxu0 0.0
    %300 = vmatprep.subr.mxu0 0.0
    %301 = vmatpush1.xpose.msra.mxu0 0.0
    %302 = vmatprep.subr.mxu0 0.0
    %303 = vmatpush1.xpose.msra.mxu0 0.0
    %304 = vmatprep.mubr.f32.mxu0 0.0
    %305 = vmatmul.mubr.f32.gmra.mrb[0].mxu0 %v236
    %v306 = vpop.f32.mrb[0].mxu0
    %v307 = vadd.f32 0.0, %v306
    %v308 = vpop.f32.mrb[0].mxu0
    %309 = vdwg.mxu0
    %311 = vrot.lane.b32.xlu0 %v230, 96
    %v312 = vpop.permute.xlu0 %311
    %v313 = vsel %vm59, %v230, 0
    %v315 = vsel %vm59, %v312, 0
    %317 = vmatprep.subr.mxu0 0.0
    %318 = vmatpush1.xpose.msra.mxu0 %v315
    %319 = vmatprep.subr.mxu0 0.0
    %320 = vmatpush1.xpose.msra.mxu0 0.0
    %321 = vmatprep.subr.mxu0 0.0
    %322 = vmatpush1.xpose.msra.mxu0 0.0
    %323 = vmatprep.subr.mxu0 0.0
    %324 = vmatpush1.xpose.msra.mxu0 0.0
    %325 = vmatprep.subr.mxu0 0.0
    %326 = vmatpush1.xpose.msra.mxu0 0.0
    %327 = vmatprep.subr.mxu0 0.0
    %328 = vmatpush1.xpose.msra.mxu0 0.0
    %329 = vmatprep.subr.mxu0 0.0
    %330 = vmatpush1.xpose.msra.mxu0 0.0
    %331 = vmatprep.subr.mxu0 0.0
    %332 = vmatpush1.xpose.msra.mxu0 0.0
    %333 = vmatprep.subr.mxu0 0.0
    %334 = vmatpush1.xpose.msra.mxu0 0.0
    %335 = vmatprep.subr.mxu0 0.0
    %336 = vmatpush1.xpose.msra.mxu0 0.0
    %337 = vmatprep.subr.mxu0 0.0
    %338 = vmatpush1.xpose.msra.mxu0 0.0
    %339 = vmatprep.subr.mxu0 0.0
    %340 = vmatpush1.xpose.msra.mxu0 0.0
    %341 = vmatprep.subr.mxu0 0.0
    %342 = vmatpush1.xpose.msra.mxu0 0.0
    %343 = vmatprep.subr.mxu0 0.0
    %344 = vmatpush1.xpose.msra.mxu0 0.0
    %345 = vmatprep.subr.mxu0 0.0
    %346 = vmatpush1.xpose.msra.mxu0 0.0
    %347 = vmatprep.subr.mxu0 0.0
    %348 = vmatpush1.xpose.msra.mxu0 0.0
    %349 = vmatprep.subr.mxu0 0.0
    %350 = vmatpush1.xpose.msra.mxu0 0.0
    %351 = vmatprep.subr.mxu0 0.0
    %352 = vmatpush1.xpose.msra.mxu0 0.0
    %353 = vmatprep.subr.mxu0 0.0
    %354 = vmatpush1.xpose.msra.mxu0 0.0
    %355 = vmatprep.subr.mxu0 0.0
    %356 = vmatpush1.xpose.msra.mxu0 0.0
    %357 = vmatprep.subr.mxu0 0.0
    %358 = vmatpush1.xpose.msra.mxu0 0.0
    %359 = vmatprep.subr.mxu0 0.0
    %360 = vmatpush1.xpose.msra.mxu0 0.0
    %361 = vmatprep.subr.mxu0 0.0
    %362 = vmatpush1.xpose.msra.mxu0 0.0
    %363 = vmatprep.subr.mxu0 0.0
    %364 = vmatpush1.xpose.msra.mxu0 0.0
    %365 = vmatprep.subr.mxu0 0.0
    %366 = vmatpush1.xpose.msra.mxu0 0.0
    %367 = vmatprep.subr.mxu0 0.0
    %368 = vmatpush1.xpose.msra.mxu0 0.0
    %369 = vmatprep.subr.mxu0 0.0
    %370 = vmatpush1.xpose.msra.mxu0 0.0
    %371 = vmatprep.subr.mxu0 0.0
    %372 = vmatpush1.xpose.msra.mxu0 0.0
    %373 = vmatprep.subr.mxu0 0.0
    %374 = vmatpush1.xpose.msra.mxu0 0.0
    %375 = vmatprep.subr.mxu0 0.0
    %376 = vmatpush1.xpose.msra.mxu0 0.0
    %377 = vmatprep.subr.mxu0 0.0
    %378 = vmatpush1.xpose.msra.mxu0 0.0
    %379 = vmatprep.subr.mxu0 0.0
    %380 = vmatpush1.xpose.msra.mxu0 0.0
    %381 = vmatprep.mubr.f32.mxu0 0.0
    %382 = vmatmul.mubr.f32.gmra.mrb[0].mxu0 %v313
    %v383 = vpop.f32.mrb[0].mxu0
    %v384 = vadd.f32 0.0, %v383
    %v385 = vpop.f32.mrb[0].mxu0
    %386 = vdwg.mxu0
    %v387 = vmul.f32 %v307, 0.35355338
    %v388 = vmul.f32 %v384, 0.35355338
    %v389 = vsel %vm59, %v387, -inf
    %390 = vmax.xlane.f32.xlu0 %v389
    %v391 = vpop.xlane.xlu0 %390
    %v392 = vsel %vm59, %v388, -inf
    %393 = vmax.xlane.f32.xlu0 %v392
    %v394 = vpop.xlane.xlu0 %393
    %v395 = vsub.f32 %v387, %v391
    %v396 = vsub.f32 %v388, %v394
    %v397 = vmul.f32 %v395, 1.442695
    %v398 = vpow.pop %v397
    %v399 = vmul.f32 %v396, 1.442695
    %v400 = vpow.pop %v399
    %v401 = vsel %vm59, %v398, 0.0
    %402 = vadd.xlane.f32.xlu0 %v401
    %v403 = vpop.xlane.xlu0 %402
    %v404 = vsel %vm59, %v400, 0.0
    %405 = vadd.xlane.f32.xlu0 %v404
    %v406 = vpop.xlane.xlu0 %405
    %v407 = vrcp.pop %v403
    %v408 = vmul.f32 %v398, %v407
    %v409 = vrcp.pop %v406
    %v410 = vmul.f32 %v400, %v409
    %411 = vrot.lane.b32.xlu0 %v225, 64
    %v412 = vpop.permute.xlu0 %411
    %v415 = vsel %vm59, %v408, 0
    %417 = vmatprep.subr.mxu0 0.0
    %418 = vmatpush1.msra.mxu0 %v412
    %419 = vmatprep.subr.mxu0 0.0
    %420 = vmatpush1.msra.mxu0 0.0
    %421 = vmatprep.subr.mxu0 0.0
    %422 = vmatpush1.msra.mxu0 0.0
    %423 = vmatprep.subr.mxu0 0.0
    %424 = vmatpush1.msra.mxu0 0.0
    %425 = vmatprep.subr.mxu0 0.0
    %426 = vmatpush1.msra.mxu0 0.0
    %427 = vmatprep.subr.mxu0 0.0
    %428 = vmatpush1.msra.mxu0 0.0
    %429 = vmatprep.subr.mxu0 0.0
    %430 = vmatpush1.msra.mxu0 0.0
    %431 = vmatprep.subr.mxu0 0.0
    %432 = vmatpush1.msra.mxu0 0.0
    %433 = vmatprep.subr.mxu0 0.0
    %434 = vmatpush1.msra.mxu0 0.0
    %435 = vmatprep.subr.mxu0 0.0
    %436 = vmatpush1.msra.mxu0 0.0
    %437 = vmatprep.subr.mxu0 0.0
    %438 = vmatpush1.msra.mxu0 0.0
    %439 = vmatprep.subr.mxu0 0.0
    %440 = vmatpush1.msra.mxu0 0.0
    %441 = vmatprep.subr.mxu0 0.0
    %442 = vmatpush1.msra.mxu0 0.0
    %443 = vmatprep.subr.mxu0 0.0
    %444 = vmatpush1.msra.mxu0 0.0
    %445 = vmatprep.subr.mxu0 0.0
    %446 = vmatpush1.msra.mxu0 0.0
    %447 = vmatprep.subr.mxu0 0.0
    %448 = vmatpush1.msra.mxu0 0.0
    %449 = vmatprep.subr.mxu0 0.0
    %450 = vmatpush1.msra.mxu0 0.0
    %451 = vmatprep.subr.mxu0 0.0
    %452 = vmatpush1.msra.mxu0 0.0
    %453 = vmatprep.subr.mxu0 0.0
    %454 = vmatpush1.msra.mxu0 0.0
    %455 = vmatprep.subr.mxu0 0.0
    %456 = vmatpush1.msra.mxu0 0.0
    %457 = vmatprep.subr.mxu0 0.0
    %458 = vmatpush1.msra.mxu0 0.0
    %459 = vmatprep.subr.mxu0 0.0
    %460 = vmatpush1.msra.mxu0 0.0
    %461 = vmatprep.subr.mxu0 0.0
    %462 = vmatpush1.msra.mxu0 0.0
    %463 = vmatprep.subr.mxu0 0.0
    %464 = vmatpush1.msra.mxu0 0.0
    %465 = vmatprep.subr.mxu0 0.0
    %466 = vmatpush1.msra.mxu0 0.0
    %467 = vmatprep.subr.mxu0 0.0
    %468 = vmatpush1.msra.mxu0 0.0
    %469 = vmatprep.subr.mxu0 0.0
    %470 = vmatpush1.msra.mxu0 0.0
    %471 = vmatprep.subr.mxu0 0.0
    %472 = vmatpush1.msra.mxu0 0.0
    %473 = vmatprep.subr.mxu0 0.0
    %474 = vmatpush1.msra.mxu0 0.0
    %475 = vmatprep.subr.mxu0 0.0
    %476 = vmatpush1.msra.mxu0 0.0
    %477 = vmatprep.subr.mxu0 0.0
    %478 = vmatpush1.msra.mxu0 0.0
    %479 = vmatprep.subr.mxu0 0.0
    %480 = vmatpush1.msra.mxu0 0.0
    %481 = vmatprep.mubr.f32.mxu0 0.0
    %482 = vmatmul.mubr.f32.gmra.mrb[0].mxu0 %v415
    %v483 = vpop.f32.mrb[0].mxu0
    %v484 = vadd.f32 0.0, %v483
    %v485 = vpop.f32.mrb[0].mxu0
    %486 = vdwg.mxu0
    %487 = vrot.lane.b32.xlu0 %v230, 64
    %v488 = vpop.permute.xlu0 %487
    %v491 = vsel %vm59, %v410, 0
    %493 = vmatprep.subr.mxu0 0.0
    %494 = vmatpush1.msra.mxu0 %v488
    %495 = vmatprep.subr.mxu0 0.0
    %496 = vmatpush1.msra.mxu0 0.0
    %497 = vmatprep.subr.mxu0 0.0
    %498 = vmatpush1.msra.mxu0 0.0
    %499 = vmatprep.subr.mxu0 0.0
    %500 = vmatpush1.msra.mxu0 0.0
    %501 = vmatprep.subr.mxu0 0.0
    %502 = vmatpush1.msra.mxu0 0.0
    %503 = vmatprep.subr.mxu0 0.0
    %504 = vmatpush1.msra.mxu0 0.0
    %505 = vmatprep.subr.mxu0 0.0
    %506 = vmatpush1.msra.mxu0 0.0
    %507 = vmatprep.subr.mxu0 0.0
    %508 = vmatpush1.msra.mxu0 0.0
    %509 = vmatprep.subr.mxu0 0.0
    %510 = vmatpush1.msra.mxu0 0.0
    %511 = vmatprep.subr.mxu0 0.0
    %512 = vmatpush1.msra.mxu0 0.0
    %513 = vmatprep.subr.mxu0 0.0
    %514 = vmatpush1.msra.mxu0 0.0
    %515 = vmatprep.subr.mxu0 0.0
    %516 = vmatpush1.msra.mxu0 0.0
    %517 = vmatprep.subr.mxu0 0.0
    %518 = vmatpush1.msra.mxu0 0.0
    %519 = vmatprep.subr.mxu0 0.0
    %520 = vmatpush1.msra.mxu0 0.0
    %521 = vmatprep.subr.mxu0 0.0
    %522 = vmatpush1.msra.mxu0 0.0
    %523 = vmatprep.subr.mxu0 0.0
    %524 = vmatpush1.msra.mxu0 0.0
    %525 = vmatprep.subr.mxu0 0.0
    %526 = vmatpush1.msra.mxu0 0.0
    %527 = vmatprep.subr.mxu0 0.0
    %528 = vmatpush1.msra.mxu0 0.0
    %529 = vmatprep.subr.mxu0 0.0
    %530 = vmatpush1.msra.mxu0 0.0
    %531 = vmatprep.subr.mxu0 0.0
    %532 = vmatpush1.msra.mxu0 0.0
    %533 = vmatprep.subr.mxu0 0.0
    %534 = vmatpush1.msra.mxu0 0.0
    %535 = vmatprep.subr.mxu0 0.0
    %536 = vmatpush1.msra.mxu0 0.0
    %537 = vmatprep.subr.mxu0 0.0
    %538 = vmatpush1.msra.mxu0 0.0
    %539 = vmatprep.subr.mxu0 0.0
    %540 = vmatpush1.msra.mxu0 0.0
    %541 = vmatprep.subr.mxu0 0.0
    %542 = vmatpush1.msra.mxu0 0.0
    %543 = vmatprep.subr.mxu0 0.0
    %544 = vmatpush1.msra.mxu0 0.0
    %545 = vmatprep.subr.mxu0 0.0
    %546 = vmatpush1.msra.mxu0 0.0
    %547 = vmatprep.subr.mxu0 0.0
    %548 = vmatpush1.msra.mxu0 0.0
    %549 = vmatprep.subr.mxu0 0.0
    %550 = vmatpush1.msra.mxu0 0.0
    %551 = vmatprep.subr.mxu0 0.0
    %552 = vmatpush1.msra.mxu0 0.0
    %553 = vmatprep.subr.mxu0 0.0
    %554 = vmatpush1.msra.mxu0 0.0
    %555 = vmatprep.subr.mxu0 0.0
    %556 = vmatpush1.msra.mxu0 0.0
    %557 = vmatprep.mubr.f32.mxu0 0.0
    %558 = vmatmul.mubr.f32.gmra.mrb[0].mxu0 %v491
    %v559 = vpop.f32.mrb[0].mxu0
    %v560 = vadd.f32 0.0, %v559
    %v561 = vpop.f32.mrb[0].mxu0
    %562 = vdwg.mxu0
    %563 = vrot.lane.b32.xlu0 %v225, 120
    %v564 = vpop.permute.xlu0 %563
    %565 = vrot.lane.b32.xlu0 %v225, 88
    %v566 = vpop.permute.xlu0 %565
    %v567 = vsel %vm59, %v564, 0
    %v569 = vsel %vm59, %v566, 0
    %571 = vmatprep.subr.mxu0 0.0
    %572 = vmatpush1.xpose.msra.mxu0 %v569
    %573 = vmatprep.subr.mxu0 0.0
    %574 = vmatpush1.xpose.msra.mxu0 0.0
    %575 = vmatprep.subr.mxu0 0.0
    %576 = vmatpush1.xpose.msra.mxu0 0.0
    %577 = vmatprep.subr.mxu0 0.0
    %578 = vmatpush1.xpose.msra.mxu0 0.0
    %579 = vmatprep.subr.mxu0 0.0
    %580 = vmatpush1.xpose.msra.mxu0 0.0
    %581 = vmatprep.subr.mxu0 0.0
    %582 = vmatpush1.xpose.msra.mxu0 0.0
    %583 = vmatprep.subr.mxu0 0.0
    %584 = vmatpush1.xpose.msra.mxu0 0.0
    %585 = vmatprep.subr.mxu0 0.0
    %586 = vmatpush1.xpose.msra.mxu0 0.0
    %587 = vmatprep.subr.mxu0 0.0
    %588 = vmatpush1.xpose.msra.mxu0 0.0
    %589 = vmatprep.subr.mxu0 0.0
    %590 = vmatpush1.xpose.msra.mxu0 0.0
    %591 = vmatprep.subr.mxu0 0.0
    %592 = vmatpush1.xpose.msra.mxu0 0.0
    %593 = vmatprep.subr.mxu0 0.0
    %594 = vmatpush1.xpose.msra.mxu0 0.0
    %595 = vmatprep.subr.mxu0 0.0
    %596 = vmatpush1.xpose.msra.mxu0 0.0
    %597 = vmatprep.subr.mxu0 0.0
    %598 = vmatpush1.xpose.msra.mxu0 0.0
    %599 = vmatprep.subr.mxu0 0.0
    %600 = vmatpush1.xpose.msra.mxu0 0.0
    %601 = vmatprep.subr.mxu0 0.0
    %602 = vmatpush1.xpose.msra.mxu0 0.0
    %603 = vmatprep.subr.mxu0 0.0
    %604 = vmatpush1.xpose.msra.mxu0 0.0
    %605 = vmatprep.subr.mxu0 0.0
    %606 = vmatpush1.xpose.msra.mxu0 0.0
    %607 = vmatprep.subr.mxu0 0.0
    %608 = vmatpush1.xpose.msra.mxu0 0.0
    %609 = vmatprep.subr.mxu0 0.0
    %610 = vmatpush1.xpose.msra.mxu0 0.0
    %611 = vmatprep.subr.mxu0 0.0
    %612 = vmatpush1.xpose.msra.mxu0 0.0
    %613 = vmatprep.subr.mxu0 0.0
    %614 = vmatpush1.xpose.msra.mxu0 0.0
    %615 = vmatprep.subr.mxu0 0.0
    %616 = vmatpush1.xpose.msra.mxu0 0.0
    %617 = vmatprep.subr.mxu0 0.0
    %618 = vmatpush1.xpose.msra.mxu0 0.0
    %619 = vmatprep.subr.mxu0 0.0
    %620 = vmatpush1.xpose.msra.mxu0 0.0
    %621 = vmatprep.subr.mxu0 0.0
    %622 = vmatpush1.xpose.msra.mxu0 0.0
    %623 = vmatprep.subr.mxu0 0.0
    %624 = vmatpush1.xpose.msra.mxu0 0.0
    %625 = vmatprep.subr.mxu0 0.0
    %626 = vmatpush1.xpose.msra.mxu0 0.0
    %627 = vmatprep.subr.mxu0 0.0
    %628 = vmatpush1.xpose.msra.mxu0 0.0
    %629 = vmatprep.subr.mxu0 0.0
    %630 = vmatpush1.xpose.msra.mxu0 0.0
    %631 = vmatprep.subr.mxu0 0.0
    %632 = vmatpush1.xpose.msra.mxu0 0.0
    %633 = vmatprep.subr.mxu0 0.0
    %634 = vmatpush1.xpose.msra.mxu0 0.0
    %635 = vmatprep.mubr.f32.mxu0 0.0
    %636 = vmatmul.mubr.f32.gmra.mrb[0].mxu0 %v567
    %v637 = vpop.f32.mrb[0].mxu0
    %v638 = vadd.f32 0.0, %v637
    %v639 = vpop.f32.mrb[0].mxu0
    %640 = vdwg.mxu0
    %641 = vrot.lane.b32.xlu0 %v230, 120
    %v642 = vpop.permute.xlu0 %641
    %643 = vrot.lane.b32.xlu0 %v230, 88
    %v644 = vpop.permute.xlu0 %643
    %v645 = vsel %vm59, %v642, 0
    %v647 = vsel %vm59, %v644, 0
    %649 = vmatprep.subr.mxu0 0.0
    %650 = vmatpush1.xpose.msra.mxu0 %v647
    %651 = vmatprep.subr.mxu0 0.0
    %652 = vmatpush1.xpose.msra.mxu0 0.0
    %653 = vmatprep.subr.mxu0 0.0
    %654 = vmatpush1.xpose.msra.mxu0 0.0
    %655 = vmatprep.subr.mxu0 0.0
    %656 = vmatpush1.xpose.msra.mxu0 0.0
    %657 = vmatprep.subr.mxu0 0.0
    %658 = vmatpush1.xpose.msra.mxu0 0.0
    %659 = vmatprep.subr.mxu0 0.0
    %660 = vmatpush1.xpose.msra.mxu0 0.0
    %661 = vmatprep.subr.mxu0 0.0
    %662 = vmatpush1.xpose.msra.mxu0 0.0
    %663 = vmatprep.subr.mxu0 0.0
    %664 = vmatpush1.xpose.msra.mxu0 0.0
    %665 = vmatprep.subr.mxu0 0.0
    %666 = vmatpush1.xpose.msra.mxu0 0.0
    %667 = vmatprep.subr.mxu0 0.0
    %668 = vmatpush1.xpose.msra.mxu0 0.0
    %669 = vmatprep.subr.mxu0 0.0
    %670 = vmatpush1.xpose.msra.mxu0 0.0
    %671 = vmatprep.subr.mxu0 0.0
    %672 = vmatpush1.xpose.msra.mxu0 0.0
    %673 = vmatprep.subr.mxu0 0.0
    %674 = vmatpush1.xpose.msra.mxu0 0.0
    %675 = vmatprep.subr.mxu0 0.0
    %676 = vmatpush1.xpose.msra.mxu0 0.0
    %677 = vmatprep.subr.mxu0 0.0
    %678 = vmatpush1.xpose.msra.mxu0 0.0
    %679 = vmatprep.subr.mxu0 0.0
    %680 = vmatpush1.xpose.msra.mxu0 0.0
    %681 = vmatprep.subr.mxu0 0.0
    %682 = vmatpush1.xpose.msra.mxu0 0.0
    %683 = vmatprep.subr.mxu0 0.0
    %684 = vmatpush1.xpose.msra.mxu0 0.0
    %685 = vmatprep.subr.mxu0 0.0
    %686 = vmatpush1.xpose.msra.mxu0 0.0
    %687 = vmatprep.subr.mxu0 0.0
    %688 = vmatpush1.xpose.msra.mxu0 0.0
    %689 = vmatprep.subr.mxu0 0.0
    %690 = vmatpush1.xpose.msra.mxu0 0.0
    %691 = vmatprep.subr.mxu0 0.0
    %692 = vmatpush1.xpose.msra.mxu0 0.0
    %693 = vmatprep.subr.mxu0 0.0
    %694 = vmatpush1.xpose.msra.mxu0 0.0
    %695 = vmatprep.subr.mxu0 0.0
    %696 = vmatpush1.xpose.msra.mxu0 0.0
    %697 = vmatprep.subr.mxu0 0.0
    %698 = vmatpush1.xpose.msra.mxu0 0.0
    %699 = vmatprep.subr.mxu0 0.0
    %700 = vmatpush1.xpose.msra.mxu0 0.0
    %701 = vmatprep.subr.mxu0 0.0
    %702 = vmatpush1.xpose.msra.mxu0 0.0
    %703 = vmatprep.subr.mxu0 0.0
    %704 = vmatpush1.xpose.msra.mxu0 0.0
    %705 = vmatprep.subr.mxu0 0.0
    %706 = vmatpush1.xpose.msra.mxu0 0.0
    %707 = vmatprep.subr.mxu0 0.0
    %708 = vmatpush1.xpose.msra.mxu0 0.0
    %709 = vmatprep.subr.mxu0 0.0
    %710 = vmatpush1.xpose.msra.mxu0 0.0
    %711 = vmatprep.subr.mxu0 0.0
    %712 = vmatpush1.xpose.msra.mxu0 0.0
    %713 = vmatprep.mubr.f32.mxu0 0.0
    %714 = vmatmul.mubr.f32.gmra.mrb[0].mxu0 %v645
    %v715 = vpop.f32.mrb[0].mxu0
    %v716 = vadd.f32 0.0, %v715
    %v717 = vpop.f32.mrb[0].mxu0
    %718 = vdwg.mxu0
    %v719 = vmul.f32 %v638, 0.35355338
    %v720 = vmul.f32 %v716, 0.35355338
    %v721 = vsel %vm59, %v719, -inf
    %722 = vmax.xlane.f32.xlu0 %v721
    %v723 = vpop.xlane.xlu0 %722
    %v724 = vsel %vm59, %v720, -inf
    %725 = vmax.xlane.f32.xlu0 %v724
    %v726 = vpop.xlane.xlu0 %725
    %v727 = vsub.f32 %v719, %v723
    %v728 = vsub.f32 %v720, %v726
    %v729 = vmul.f32 %v727, 1.442695
    %v730 = vpow.pop %v729
    %v731 = vmul.f32 %v728, 1.442695
    %v732 = vpow.pop %v731
    %v733 = vsel %vm59, %v730, 0.0
    %734 = vadd.xlane.f32.xlu0 %v733
    %v735 = vpop.xlane.xlu0 %734
    %v736 = vsel %vm59, %v732, 0.0
    %737 = vadd.xlane.f32.xlu0 %v736
    %v738 = vpop.xlane.xlu0 %737
    %v739 = vrcp.pop %v735
    %v740 = vmul.f32 %v730, %v739
    %v741 = vrcp.pop %v738
    %v742 = vmul.f32 %v732, %v741
    %743 = vrot.lane.b32.xlu0 %v225, 56
    %v744 = vpop.permute.xlu0 %743
    %v747 = vsel %vm59, %v740, 0
    %749 = vmatprep.subr.mxu0 0.0
    %750 = vmatpush1.msra.mxu0 %v744
    %751 = vmatprep.subr.mxu0 0.0
    %752 = vmatpush1.msra.mxu0 0.0
    %753 = vmatprep.subr.mxu0 0.0
    %754 = vmatpush1.msra.mxu0 0.0
    %755 = vmatprep.subr.mxu0 0.0
    %756 = vmatpush1.msra.mxu0 0.0
    %757 = vmatprep.subr.mxu0 0.0
    %758 = vmatpush1.msra.mxu0 0.0
    %759 = vmatprep.subr.mxu0 0.0
    %760 = vmatpush1.msra.mxu0 0.0
    %761 = vmatprep.subr.mxu0 0.0
    %762 = vmatpush1.msra.mxu0 0.0
    %763 = vmatprep.subr.mxu0 0.0
    %764 = vmatpush1.msra.mxu0 0.0
    %765 = vmatprep.subr.mxu0 0.0
    %766 = vmatpush1.msra.mxu0 0.0
    %767 = vmatprep.subr.mxu0 0.0
    %768 = vmatpush1.msra.mxu0 0.0
    %769 = vmatprep.subr.mxu0 0.0
    %770 = vmatpush1.msra.mxu0 0.0
    %771 = vmatprep.subr.mxu0 0.0
    %772 = vmatpush1.msra.mxu0 0.0
    %773 = vmatprep.subr.mxu0 0.0
    %774 = vmatpush1.msra.mxu0 0.0
    %775 = vmatprep.subr.mxu0 0.0
    %776 = vmatpush1.msra.mxu0 0.0
    %777 = vmatprep.subr.mxu0 0.0
    %778 = vmatpush1.msra.mxu0 0.0
    %779 = vmatprep.subr.mxu0 0.0
    %780 = vmatpush1.msra.mxu0 0.0
    %781 = vmatprep.subr.mxu0 0.0
    %782 = vmatpush1.msra.mxu0 0.0
    %783 = vmatprep.subr.mxu0 0.0
    %784 = vmatpush1.msra.mxu0 0.0
    %785 = vmatprep.subr.mxu0 0.0
    %786 = vmatpush1.msra.mxu0 0.0
    %787 = vmatprep.subr.mxu0 0.0
    %788 = vmatpush1.msra.mxu0 0.0
    %789 = vmatprep.subr.mxu0 0.0
    %790 = vmatpush1.msra.mxu0 0.0
    %791 = vmatprep.subr.mxu0 0.0
    %792 = vmatpush1.msra.mxu0 0.0
    %793 = vmatprep.subr.mxu0 0.0
    %794 = vmatpush1.msra.mxu0 0.0
    %795 = vmatprep.subr.mxu0 0.0
    %796 = vmatpush1.msra.mxu0 0.0
    %797 = vmatprep.subr.mxu0 0.0
    %798 = vmatpush1.msra.mxu0 0.0
    %799 = vmatprep.subr.mxu0 0.0
    %800 = vmatpush1.msra.mxu0 0.0
    %801 = vmatprep.subr.mxu0 0.0
    %802 = vmatpush1.msra.mxu0 0.0
    %803 = vmatprep.subr.mxu0 0.0
    %804 = vmatpush1.msra.mxu0 0.0
    %805 = vmatprep.subr.mxu0 0.0
    %806 = vmatpush1.msra.mxu0 0.0
    %807 = vmatprep.subr.mxu0 0.0
    %808 = vmatpush1.msra.mxu0 0.0
    %809 = vmatprep.subr.mxu0 0.0
    %810 = vmatpush1.msra.mxu0 0.0
    %811 = vmatprep.subr.mxu0 0.0
    %812 = vmatpush1.msra.mxu0 0.0
    %813 = vmatprep.mubr.f32.mxu0 0.0
    %814 = vmatmul.mubr.f32.gmra.mrb[0].mxu0 %v747
    %v815 = vpop.f32.mrb[0].mxu0
    %v816 = vadd.f32 0.0, %v815
    %v817 = vpop.f32.mrb[0].mxu0
    %818 = vdwg.mxu0
    %819 = vrot.lane.b32.xlu0 %v230, 56
    %v820 = vpop.permute.xlu0 %819
    %v823 = vsel %vm59, %v742, 0
    %825 = vmatprep.subr.mxu0 0.0
    %826 = vmatpush1.msra.mxu0 %v820
    %827 = vmatprep.subr.mxu0 0.0
    %828 = vmatpush1.msra.mxu0 0.0
    %829 = vmatprep.subr.mxu0 0.0
    %830 = vmatpush1.msra.mxu0 0.0
    %831 = vmatprep.subr.mxu0 0.0
    %832 = vmatpush1.msra.mxu0 0.0
    %833 = vmatprep.subr.mxu0 0.0
    %834 = vmatpush1.msra.mxu0 0.0
    %835 = vmatprep.subr.mxu0 0.0
    %836 = vmatpush1.msra.mxu0 0.0
    %837 = vmatprep.subr.mxu0 0.0
    %838 = vmatpush1.msra.mxu0 0.0
    %839 = vmatprep.subr.mxu0 0.0
    %840 = vmatpush1.msra.mxu0 0.0
    %841 = vmatprep.subr.mxu0 0.0
    %842 = vmatpush1.msra.mxu0 0.0
    %843 = vmatprep.subr.mxu0 0.0
    %844 = vmatpush1.msra.mxu0 0.0
    %845 = vmatprep.subr.mxu0 0.0
    %846 = vmatpush1.msra.mxu0 0.0
    %847 = vmatprep.subr.mxu0 0.0
    %848 = vmatpush1.msra.mxu0 0.0
    %849 = vmatprep.subr.mxu0 0.0
    %850 = vmatpush1.msra.mxu0 0.0
    %851 = vmatprep.subr.mxu0 0.0
    %852 = vmatpush1.msra.mxu0 0.0
    %853 = vmatprep.subr.mxu0 0.0
    %854 = vmatpush1.msra.mxu0 0.0
    %855 = vmatprep.subr.mxu0 0.0
    %856 = vmatpush1.msra.mxu0 0.0
    %857 = vmatprep.subr.mxu0 0.0
    %858 = vmatpush1.msra.mxu0 0.0
    %859 = vmatprep.subr.mxu0 0.0
    %860 = vmatpush1.msra.mxu0 0.0
    %861 = vmatprep.subr.mxu0 0.0
    %862 = vmatpush1.msra.mxu0 0.0
    %863 = vmatprep.subr.mxu0 0.0
    %864 = vmatpush1.msra.mxu0 0.0
    %865 = vmatprep.subr.mxu0 0.0
    %866 = vmatpush1.msra.mxu0 0.0
    %867 = vmatprep.subr.mxu0 0.0
    %868 = vmatpush1.msra.mxu0 0.0
    %869 = vmatprep.subr.mxu0 0.0
    %870 = vmatpush1.msra.mxu0 0.0
    %871 = vmatprep.subr.mxu0 0.0
    %872 = vmatpush1.msra.mxu0 0.0
    %873 = vmatprep.subr.mxu0 0.0
    %874 = vmatpush1.msra.mxu0 0.0
    %875 = vmatprep.subr.mxu0 0.0
    %876 = vmatpush1.msra.mxu0 0.0
    %877 = vmatprep.subr.mxu0 0.0
    %878 = vmatpush1.msra.mxu0 0.0
    %879 = vmatprep.subr.mxu0 0.0
    %880 = vmatpush1.msra.mxu0 0.0
    %881 = vmatprep.subr.mxu0 0.0
    %882 = vmatpush1.msra.mxu0 0.0
    %883 = vmatprep.subr.mxu0 0.0
    %884 = vmatpush1.msra.mxu0 0.0
    %885 = vmatprep.subr.mxu0 0.0
    %886 = vmatpush1.msra.mxu0 0.0
    %887 = vmatprep.subr.mxu0 0.0
    %888 = vmatpush1.msra.mxu0 0.0
    %889 = vmatprep.mubr.f32.mxu0 0.0
    %890 = vmatmul.mubr.f32.gmra.mrb[0].mxu0 %v823
    %v891 = vpop.f32.mrb[0].mxu0
    %v892 = vadd.f32 0.0, %v891
    %v893 = vpop.f32.mrb[0].mxu0
    %894 = vdwg.mxu0
    %895 = vrot.lane.b32.xlu0 %v225, 112
    %v896 = vpop.permute.xlu0 %895
    %897 = vrot.lane.b32.xlu0 %v225, 80
    %v898 = vpop.permute.xlu0 %897
    %v899 = vsel %vm59, %v896, 0
    %v901 = vsel %vm59, %v898, 0
    %903 = vmatprep.subr.mxu0 0.0
    %904 = vmatpush1.xpose.msra.mxu0 %v901
    %905 = vmatprep.subr.mxu0 0.0
    %906 = vmatpush1.xpose.msra.mxu0 0.0
    %907 = vmatprep.subr.mxu0 0.0
    %908 = vmatpush1.xpose.msra.mxu0 0.0
    %909 = vmatprep.subr.mxu0 0.0
    %910 = vmatpush1.xpose.msra.mxu0 0.0
    %911 = vmatprep.subr.mxu0 0.0
    %912 = vmatpush1.xpose.msra.mxu0 0.0
    %913 = vmatprep.subr.mxu0 0.0
    %914 = vmatpush1.xpose.msra.mxu0 0.0
    %915 = vmatprep.subr.mxu0 0.0
    %916 = vmatpush1.xpose.msra.mxu0 0.0
    %917 = vmatprep.subr.mxu0 0.0
    %918 = vmatpush1.xpose.msra.mxu0 0.0
    %919 = vmatprep.subr.mxu0 0.0
    %920 = vmatpush1.xpose.msra.mxu0 0.0
    %921 = vmatprep.subr.mxu0 0.0
    %922 = vmatpush1.xpose.msra.mxu0 0.0
    %923 = vmatprep.subr.mxu0 0.0
    %924 = vmatpush1.xpose.msra.mxu0 0.0
    %925 = vmatprep.subr.mxu0 0.0
    %926 = vmatpush1.xpose.msra.mxu0 0.0
    %927 = vmatprep.subr.mxu0 0.0
    %928 = vmatpush1.xpose.msra.mxu0 0.0
    %929 = vmatprep.subr.mxu0 0.0
    %930 = vmatpush1.xpose.msra.mxu0 0.0
    %931 = vmatprep.subr.mxu0 0.0
    %932 = vmatpush1.xpose.msra.mxu0 0.0
    %933 = vmatprep.subr.mxu0 0.0
    %934 = vmatpush1.xpose.msra.mxu0 0.0
    %935 = vmatprep.subr.mxu0 0.0
    %936 = vmatpush1.xpose.msra.mxu0 0.0
    %937 = vmatprep.subr.mxu0 0.0
    %938 = vmatpush1.xpose.msra.mxu0 0.0
    %939 = vmatprep.subr.mxu0 0.0
    %940 = vmatpush1.xpose.msra.mxu0 0.0
    %941 = vmatprep.subr.mxu0 0.0
    %942 = vmatpush1.xpose.msra.mxu0 0.0
    %943 = vmatprep.subr.mxu0 0.0
    %944 = vmatpush1.xpose.msra.mxu0 0.0
    %945 = vmatprep.subr.mxu0 0.0
    %946 = vmatpush1.xpose.msra.mxu0 0.0
    %947 = vmatprep.subr.mxu0 0.0
    %948 = vmatpush1.xpose.msra.mxu0 0.0
    %949 = vmatprep.subr.mxu0 0.0
    %950 = vmatpush1.xpose.msra.mxu0 0.0
    %951 = vmatprep.subr.mxu0 0.0
    %952 = vmatpush1.xpose.msra.mxu0 0.0
    %953 = vmatprep.subr.mxu0 0.0
    %954 = vmatpush1.xpose.msra.mxu0 0.0
    %955 = vmatprep.subr.mxu0 0.0
    %956 = vmatpush1.xpose.msra.mxu0 0.0
    %957 = vmatprep.subr.mxu0 0.0
    %958 = vmatpush1.xpose.msra.mxu0 0.0
    %959 = vmatprep.subr.mxu0 0.0
    %960 = vmatpush1.xpose.msra.mxu0 0.0
    %961 = vmatprep.subr.mxu0 0.0
    %962 = vmatpush1.xpose.msra.mxu0 0.0
    %963 = vmatprep.subr.mxu0 0.0
    %964 = vmatpush1.xpose.msra.mxu0 0.0
    %965 = vmatprep.subr.mxu0 0.0
    %966 = vmatpush1.xpose.msra.mxu0 0.0
    %967 = vmatprep.mubr.f32.mxu0 0.0
    %968 = vmatmul.mubr.f32.gmra.mrb[0].mxu0 %v899
    %v969 = vpop.f32.mrb[0].mxu0
    %v970 = vadd.f32 0.0, %v969
    %v971 = vpop.f32.mrb[0].mxu0
    %972 = vdwg.mxu0
    %973 = vrot.lane.b32.xlu0 %v230, 112
    %v974 = vpop.permute.xlu0 %973
    %975 = vrot.lane.b32.xlu0 %v230, 80
    %v976 = vpop.permute.xlu0 %975
    %v977 = vsel %vm59, %v974, 0
    %v979 = vsel %vm59, %v976, 0
    %981 = vmatprep.subr.mxu0 0.0
    %982 = vmatpush1.xpose.msra.mxu0 %v979
    %983 = vmatprep.subr.mxu0 0.0
    %984 = vmatpush1.xpose.msra.mxu0 0.0
    %985 = vmatprep.subr.mxu0 0.0
    %986 = vmatpush1.xpose.msra.mxu0 0.0
    %987 = vmatprep.subr.mxu0 0.0
    %988 = vmatpush1.xpose.msra.mxu0 0.0
    %989 = vmatprep.subr.mxu0 0.0
    %990 = vmatpush1.xpose.msra.mxu0 0.0
    %991 = vmatprep.subr.mxu0 0.0
    %992 = vmatpush1.xpose.msra.mxu0 0.0
    %993 = vmatprep.subr.mxu0 0.0
    %994 = vmatpush1.xpose.msra.mxu0 0.0
    %995 = vmatprep.subr.mxu0 0.0
    %996 = vmatpush1.xpose.msra.mxu0 0.0
    %997 = vmatprep.subr.mxu0 0.0
    %998 = vmatpush1.xpose.msra.mxu0 0.0
    %999 = vmatprep.subr.mxu0 0.0
    %1000 = vmatpush1.xpose.msra.mxu0 0.0
    %1001 = vmatprep.subr.mxu0 0.0
    %1002 = vmatpush1.xpose.msra.mxu0 0.0
    %1003 = vmatprep.subr.mxu0 0.0
    %1004 = vmatpush1.xpose.msra.mxu0 0.0
    %1005 = vmatprep.subr.mxu0 0.0
    %1006 = vmatpush1.xpose.msra.mxu0 0.0
    %1007 = vmatprep.subr.mxu0 0.0
    %1008 = vmatpush1.xpose.msra.mxu0 0.0
    %1009 = vmatprep.subr.mxu0 0.0
    %1010 = vmatpush1.xpose.msra.mxu0 0.0
    %1011 = vmatprep.subr.mxu0 0.0
    %1012 = vmatpush1.xpose.msra.mxu0 0.0
    %1013 = vmatprep.subr.mxu0 0.0
    %1014 = vmatpush1.xpose.msra.mxu0 0.0
    %1015 = vmatprep.subr.mxu0 0.0
    %1016 = vmatpush1.xpose.msra.mxu0 0.0
    %1017 = vmatprep.subr.mxu0 0.0
    %1018 = vmatpush1.xpose.msra.mxu0 0.0
    %1019 = vmatprep.subr.mxu0 0.0
    %1020 = vmatpush1.xpose.msra.mxu0 0.0
    %1021 = vmatprep.subr.mxu0 0.0
    %1022 = vmatpush1.xpose.msra.mxu0 0.0
    %1023 = vmatprep.subr.mxu0 0.0
    %1024 = vmatpush1.xpose.msra.mxu0 0.0
    %1025 = vmatprep.subr.mxu0 0.0
    %1026 = vmatpush1.xpose.msra.mxu0 0.0
    %1027 = vmatprep.subr.mxu0 0.0
    %1028 = vmatpush1.xpose.msra.mxu0 0.0
    %1029 = vmatprep.subr.mxu0 0.0
    %1030 = vmatpush1.xpose.msra.mxu0 0.0
    %1031 = vmatprep.subr.mxu0 0.0
    %1032 = vmatpush1.xpose.msra.mxu0 0.0
    %1033 = vmatprep.subr.mxu0 0.0
    %1034 = vmatpush1.xpose.msra.mxu0 0.0
    %1035 = vmatprep.subr.mxu0 0.0
    %1036 = vmatpush1.xpose.msra.mxu0 0.0
    %1037 = vmatprep.subr.mxu0 0.0
    %1038 = vmatpush1.xpose.msra.mxu0 0.0
    %1039 = vmatprep.subr.mxu0 0.0
    %1040 = vmatpush1.xpose.msra.mxu0 0.0
    %1041 = vmatprep.subr.mxu0 0.0
    %1042 = vmatpush1.xpose.msra.mxu0 0.0
    %1043 = vmatprep.subr.mxu0 0.0
    %1044 = vmatpush1.xpose.msra.mxu0 0.0
    %1045 = vmatprep.mubr.f32.mxu0 0.0
    %1046 = vmatmul.mubr.f32.gmra.mrb[0].mxu0 %v977
    %v1047 = vpop.f32.mrb[0].mxu0
    %v1048 = vadd.f32 0.0, %v1047
    %v1049 = vpop.f32.mrb[0].mxu0
    %1050 = vdwg.mxu0
    %v1051 = vmul.f32 %v970, 0.35355338
    %v1052 = vmul.f32 %v1048, 0.35355338
    %v1053 = vsel %vm59, %v1051, -inf
    %1054 = vmax.xlane.f32.xlu0 %v1053
    %v1055 = vpop.xlane.xlu0 %1054
    %v1056 = vsel %vm59, %v1052, -inf
    %1057 = vmax.xlane.f32.xlu0 %v1056
    %v1058 = vpop.xlane.xlu0 %1057
    %v1059 = vsub.f32 %v1051, %v1055
    %v1060 = vsub.f32 %v1052, %v1058
    %v1061 = vmul.f32 %v1059, 1.442695
    %v1062 = vpow.pop %v1061
    %v1063 = vmul.f32 %v1060, 1.442695
    %v1064 = vpow.pop %v1063
    %v1065 = vsel %vm59, %v1062, 0.0
    %1066 = vadd.xlane.f32.xlu0 %v1065
    %v1067 = vpop.xlane.xlu0 %1066
    %v1068 = vsel %vm59, %v1064, 0.0
    %1069 = vadd.xlane.f32.xlu0 %v1068
    %v1070 = vpop.xlane.xlu0 %1069
    %v1071 = vrcp.pop %v1067
    %v1072 = vmul.f32 %v1062, %v1071
    %v1073 = vrcp.pop %v1070
    %v1074 = vmul.f32 %v1064, %v1073
    %1075 = vrot.lane.b32.xlu0 %v225, 48
    %v1076 = vpop.permute.xlu0 %1075
    %v1079 = vsel %vm59, %v1072, 0
    %1081 = vmatprep.subr.mxu0 0.0
    %1082 = vmatpush1.msra.mxu0 %v1076
    %1083 = vmatprep.subr.mxu0 0.0
    %1084 = vmatpush1.msra.mxu0 0.0
    %1085 = vmatprep.subr.mxu0 0.0
    %1086 = vmatpush1.msra.mxu0 0.0
    %1087 = vmatprep.subr.mxu0 0.0
    %1088 = vmatpush1.msra.mxu0 0.0
    %1089 = vmatprep.subr.mxu0 0.0
    %1090 = vmatpush1.msra.mxu0 0.0
    %1091 = vmatprep.subr.mxu0 0.0
    %1092 = vmatpush1.msra.mxu0 0.0
    %1093 = vmatprep.subr.mxu0 0.0
    %1094 = vmatpush1.msra.mxu0 0.0
    %1095 = vmatprep.subr.mxu0 0.0
    %1096 = vmatpush1.msra.mxu0 0.0
    %1097 = vmatprep.subr.mxu0 0.0
    %1098 = vmatpush1.msra.mxu0 0.0
    %1099 = vmatprep.subr.mxu0 0.0
    %1100 = vmatpush1.msra.mxu0 0.0
    %1101 = vmatprep.subr.mxu0 0.0
    %1102 = vmatpush1.msra.mxu0 0.0
    %1103 = vmatprep.subr.mxu0 0.0
    %1104 = vmatpush1.msra.mxu0 0.0
    %1105 = vmatprep.subr.mxu0 0.0
    %1106 = vmatpush1.msra.mxu0 0.0
    %1107 = vmatprep.subr.mxu0 0.0
    %1108 = vmatpush1.msra.mxu0 0.0
    %1109 = vmatprep.subr.mxu0 0.0
    %1110 = vmatpush1.msra.mxu0 0.0
    %1111 = vmatprep.subr.mxu0 0.0
    %1112 = vmatpush1.msra.mxu0 0.0
    %1113 = vmatprep.subr.mxu0 0.0
    %1114 = vmatpush1.msra.mxu0 0.0
    %1115 = vmatprep.subr.mxu0 0.0
    %1116 = vmatpush1.msra.mxu0 0.0
    %1117 = vmatprep.subr.mxu0 0.0
    %1118 = vmatpush1.msra.mxu0 0.0
    %1119 = vmatprep.subr.mxu0 0.0
    %1120 = vmatpush1.msra.mxu0 0.0
    %1121 = vmatprep.subr.mxu0 0.0
    %1122 = vmatpush1.msra.mxu0 0.0
    %1123 = vmatprep.subr.mxu0 0.0
    %1124 = vmatpush1.msra.mxu0 0.0
    %1125 = vmatprep.subr.mxu0 0.0
    %1126 = vmatpush1.msra.mxu0 0.0
    %1127 = vmatprep.subr.mxu0 0.0
    %1128 = vmatpush1.msra.mxu0 0.0
    %1129 = vmatprep.subr.mxu0 0.0
    %1130 = vmatpush1.msra.mxu0 0.0
    %1131 = vmatprep.subr.mxu0 0.0
    %1132 = vmatpush1.msra.mxu0 0.0
    %1133 = vmatprep.subr.mxu0 0.0
    %1134 = vmatpush1.msra.mxu0 0.0
    %1135 = vmatprep.subr.mxu0 0.0
    %1136 = vmatpush1.msra.mxu0 0.0
    %1137 = vmatprep.subr.mxu0 0.0
    %1138 = vmatpush1.msra.mxu0 0.0
    %1139 = vmatprep.subr.mxu0 0.0
    %1140 = vmatpush1.msra.mxu0 0.0
    %1141 = vmatprep.subr.mxu0 0.0
    %1142 = vmatpush1.msra.mxu0 0.0
    %1143 = vmatprep.subr.mxu0 0.0
    %1144 = vmatpush1.msra.mxu0 0.0
    %1145 = vmatprep.mubr.f32.mxu0 0.0
    %1146 = vmatmul.mubr.f32.gmra.mrb[0].mxu0 %v1079
    %v1147 = vpop.f32.mrb[0].mxu0
    %v1148 = vadd.f32 0.0, %v1147
    %v1149 = vpop.f32.mrb[0].mxu0
    %1150 = vdwg.mxu0
    %1151 = vrot.lane.b32.xlu0 %v230, 48
    %v1152 = vpop.permute.xlu0 %1151
    %v1155 = vsel %vm59, %v1074, 0
    %1157 = vmatprep.subr.mxu0 0.0
    %1158 = vmatpush1.msra.mxu0 %v1152
    %1159 = vmatprep.subr.mxu0 0.0
    %1160 = vmatpush1.msra.mxu0 0.0
    %1161 = vmatprep.subr.mxu0 0.0
    %1162 = vmatpush1.msra.mxu0 0.0
    %1163 = vmatprep.subr.mxu0 0.0
    %1164 = vmatpush1.msra.mxu0 0.0
    %1165 = vmatprep.subr.mxu0 0.0
    %1166 = vmatpush1.msra.mxu0 0.0
    %1167 = vmatprep.subr.mxu0 0.0
    %1168 = vmatpush1.msra.mxu0 0.0
    %1169 = vmatprep.subr.mxu0 0.0
    %1170 = vmatpush1.msra.mxu0 0.0
    %1171 = vmatprep.subr.mxu0 0.0
    %1172 = vmatpush1.msra.mxu0 0.0
    %1173 = vmatprep.subr.mxu0 0.0
    %1174 = vmatpush1.msra.mxu0 0.0
    %1175 = vmatprep.subr.mxu0 0.0
    %1176 = vmatpush1.msra.mxu0 0.0
    %1177 = vmatprep.subr.mxu0 0.0
    %1178 = vmatpush1.msra.mxu0 0.0
    %1179 = vmatprep.subr.mxu0 0.0
    %1180 = vmatpush1.msra.mxu0 0.0
    %1181 = vmatprep.subr.mxu0 0.0
    %1182 = vmatpush1.msra.mxu0 0.0
    %1183 = vmatprep.subr.mxu0 0.0
    %1184 = vmatpush1.msra.mxu0 0.0
    %1185 = vmatprep.subr.mxu0 0.0
    %1186 = vmatpush1.msra.mxu0 0.0
    %1187 = vmatprep.subr.mxu0 0.0
    %1188 = vmatpush1.msra.mxu0 0.0
    %1189 = vmatprep.subr.mxu0 0.0
    %1190 = vmatpush1.msra.mxu0 0.0
    %1191 = vmatprep.subr.mxu0 0.0
    %1192 = vmatpush1.msra.mxu0 0.0
    %1193 = vmatprep.subr.mxu0 0.0
    %1194 = vmatpush1.msra.mxu0 0.0
    %1195 = vmatprep.subr.mxu0 0.0
    %1196 = vmatpush1.msra.mxu0 0.0
    %1197 = vmatprep.subr.mxu0 0.0
    %1198 = vmatpush1.msra.mxu0 0.0
    %1199 = vmatprep.subr.mxu0 0.0
    %1200 = vmatpush1.msra.mxu0 0.0
    %1201 = vmatprep.subr.mxu0 0.0
    %1202 = vmatpush1.msra.mxu0 0.0
    %1203 = vmatprep.subr.mxu0 0.0
    %1204 = vmatpush1.msra.mxu0 0.0
    %1205 = vmatprep.subr.mxu0 0.0
    %1206 = vmatpush1.msra.mxu0 0.0
    %1207 = vmatprep.subr.mxu0 0.0
    %1208 = vmatpush1.msra.mxu0 0.0
    %1209 = vmatprep.subr.mxu0 0.0
    %1210 = vmatpush1.msra.mxu0 0.0
    %1211 = vmatprep.subr.mxu0 0.0
    %1212 = vmatpush1.msra.mxu0 0.0
    %1213 = vmatprep.subr.mxu0 0.0
    %1214 = vmatpush1.msra.mxu0 0.0
    %1215 = vmatprep.subr.mxu0 0.0
    %1216 = vmatpush1.msra.mxu0 0.0
    %1217 = vmatprep.subr.mxu0 0.0
    %1218 = vmatpush1.msra.mxu0 0.0
    %1219 = vmatprep.subr.mxu0 0.0
    %1220 = vmatpush1.msra.mxu0 0.0
    %1221 = vmatprep.mubr.f32.mxu0 0.0
    %1222 = vmatmul.mubr.f32.gmra.mrb[0].mxu0 %v1155
    %v1223 = vpop.f32.mrb[0].mxu0
    %v1224 = vadd.f32 0.0, %v1223
    %v1225 = vpop.f32.mrb[0].mxu0
    %1226 = vdwg.mxu0
    %1227 = vrot.lane.b32.xlu0 %v225, 104
    %v1228 = vpop.permute.xlu0 %1227
    %1229 = vrot.lane.b32.xlu0 %v225, 72
    %v1230 = vpop.permute.xlu0 %1229
    %v1231 = vsel %vm59, %v1228, 0
    %v1233 = vsel %vm59, %v1230, 0
    %1235 = vmatprep.subr.mxu0 0.0
    %1236 = vmatpush1.xpose.msra.mxu0 %v1233
    %1237 = vmatprep.subr.mxu0 0.0
    %1238 = vmatpush1.xpose.msra.mxu0 0.0
    %1239 = vmatprep.subr.mxu0 0.0
    %1240 = vmatpush1.xpose.msra.mxu0 0.0
    %1241 = vmatprep.subr.mxu0 0.0
    %1242 = vmatpush1.xpose.msra.mxu0 0.0
    %1243 = vmatprep.subr.mxu0 0.0
    %1244 = vmatpush1.xpose.msra.mxu0 0.0
    %1245 = vmatprep.subr.mxu0 0.0
    %1246 = vmatpush1.xpose.msra.mxu0 0.0
    %1247 = vmatprep.subr.mxu0 0.0
    %1248 = vmatpush1.xpose.msra.mxu0 0.0
    %1249 = vmatprep.subr.mxu0 0.0
    %1250 = vmatpush1.xpose.msra.mxu0 0.0
    %1251 = vmatprep.subr.mxu0 0.0
    %1252 = vmatpush1.xpose.msra.mxu0 0.0
    %1253 = vmatprep.subr.mxu0 0.0
    %1254 = vmatpush1.xpose.msra.mxu0 0.0
    %1255 = vmatprep.subr.mxu0 0.0
    %1256 = vmatpush1.xpose.msra.mxu0 0.0
    %1257 = vmatprep.subr.mxu0 0.0
    %1258 = vmatpush1.xpose.msra.mxu0 0.0
    %1259 = vmatprep.subr.mxu0 0.0
    %1260 = vmatpush1.xpose.msra.mxu0 0.0
    %1261 = vmatprep.subr.mxu0 0.0
    %1262 = vmatpush1.xpose.msra.mxu0 0.0
    %1263 = vmatprep.subr.mxu0 0.0
    %1264 = vmatpush1.xpose.msra.mxu0 0.0
    %1265 = vmatprep.subr.mxu0 0.0
    %1266 = vmatpush1.xpose.msra.mxu0 0.0
    %1267 = vmatprep.subr.mxu0 0.0
    %1268 = vmatpush1.xpose.msra.mxu0 0.0
    %1269 = vmatprep.subr.mxu0 0.0
    %1270 = vmatpush1.xpose.msra.mxu0 0.0
    %1271 = vmatprep.subr.mxu0 0.0
    %1272 = vmatpush1.xpose.msra.mxu0 0.0
    %1273 = vmatprep.subr.mxu0 0.0
    %1274 = vmatpush1.xpose.msra.mxu0 0.0
    %1275 = vmatprep.subr.mxu0 0.0
    %1276 = vmatpush1.xpose.msra.mxu0 0.0
    %1277 = vmatprep.subr.mxu0 0.0
    %1278 = vmatpush1.xpose.msra.mxu0 0.0
    %1279 = vmatprep.subr.mxu0 0.0
    %1280 = vmatpush1.xpose.msra.mxu0 0.0
    %1281 = vmatprep.subr.mxu0 0.0
    %1282 = vmatpush1.xpose.msra.mxu0 0.0
    %1283 = vmatprep.subr.mxu0 0.0
    %1284 = vmatpush1.xpose.msra.mxu0 0.0
    %1285 = vmatprep.subr.mxu0 0.0
    %1286 = vmatpush1.xpose.msra.mxu0 0.0
    %1287 = vmatprep.subr.mxu0 0.0
    %1288 = vmatpush1.xpose.msra.mxu0 0.0
    %1289 = vmatprep.subr.mxu0 0.0
    %1290 = vmatpush1.xpose.msra.mxu0 0.0
    %1291 = vmatprep.subr.mxu0 0.0
    %1292 = vmatpush1.xpose.msra.mxu0 0.0
    %1293 = vmatprep.subr.mxu0 0.0
    %1294 = vmatpush1.xpose.msra.mxu0 0.0
    %1295 = vmatprep.subr.mxu0 0.0
    %1296 = vmatpush1.xpose.msra.mxu0 0.0
    %1297 = vmatprep.subr.mxu0 0.0
    %1298 = vmatpush1.xpose.msra.mxu0 0.0
    %1299 = vmatprep.mubr.f32.mxu0 0.0
    %1300 = vmatmul.mubr.f32.gmra.mrb[0].mxu0 %v1231
    %v1301 = vpop.f32.mrb[0].mxu0
    %v1302 = vadd.f32 0.0, %v1301
    %v1303 = vpop.f32.mrb[0].mxu0
    %1304 = vdwg.mxu0
    %1305 = vrot.lane.b32.xlu0 %v230, 104
    %v1306 = vpop.permute.xlu0 %1305
    %1307 = vrot.lane.b32.xlu0 %v230, 72
    %v1308 = vpop.permute.xlu0 %1307
    %v1309 = vsel %vm59, %v1306, 0
    %v1311 = vsel %vm59, %v1308, 0
    %1313 = vmatprep.subr.mxu0 0.0
    %1314 = vmatpush1.xpose.msra.mxu0 %v1311
    %1315 = vmatprep.subr.mxu0 0.0
    %1316 = vmatpush1.xpose.msra.mxu0 0.0
    %1317 = vmatprep.subr.mxu0 0.0
    %1318 = vmatpush1.xpose.msra.mxu0 0.0
    %1319 = vmatprep.subr.mxu0 0.0
    %1320 = vmatpush1.xpose.msra.mxu0 0.0
    %1321 = vmatprep.subr.mxu0 0.0
    %1322 = vmatpush1.xpose.msra.mxu0 0.0
    %1323 = vmatprep.subr.mxu0 0.0
    %1324 = vmatpush1.xpose.msra.mxu0 0.0
    %1325 = vmatprep.subr.mxu0 0.0
    %1326 = vmatpush1.xpose.msra.mxu0 0.0
    %1327 = vmatprep.subr.mxu0 0.0
    %1328 = vmatpush1.xpose.msra.mxu0 0.0
    %1329 = vmatprep.subr.mxu0 0.0
    %1330 = vmatpush1.xpose.msra.mxu0 0.0
    %1331 = vmatprep.subr.mxu0 0.0
    %1332 = vmatpush1.xpose.msra.mxu0 0.0
    %1333 = vmatprep.subr.mxu0 0.0
    %1334 = vmatpush1.xpose.msra.mxu0 0.0
    %1335 = vmatprep.subr.mxu0 0.0
    %1336 = vmatpush1.xpose.msra.mxu0 0.0
    %1337 = vmatprep.subr.mxu0 0.0
    %1338 = vmatpush1.xpose.msra.mxu0 0.0
    %1339 = vmatprep.subr.mxu0 0.0
    %1340 = vmatpush1.xpose.msra.mxu0 0.0
    %1341 = vmatprep.subr.mxu0 0.0
    %1342 = vmatpush1.xpose.msra.mxu0 0.0
    %1343 = vmatprep.subr.mxu0 0.0
    %1344 = vmatpush1.xpose.msra.mxu0 0.0
    %1345 = vmatprep.subr.mxu0 0.0
    %1346 = vmatpush1.xpose.msra.mxu0 0.0
    %1347 = vmatprep.subr.mxu0 0.0
    %1348 = vmatpush1.xpose.msra.mxu0 0.0
    %1349 = vmatprep.subr.mxu0 0.0
    %1350 = vmatpush1.xpose.msra.mxu0 0.0
    %1351 = vmatprep.subr.mxu0 0.0
    %1352 = vmatpush1.xpose.msra.mxu0 0.0
    %1353 = vmatprep.subr.mxu0 0.0
    %1354 = vmatpush1.xpose.msra.mxu0 0.0
    %1355 = vmatprep.subr.mxu0 0.0
    %1356 = vmatpush1.xpose.msra.mxu0 0.0
    %1357 = vmatprep.subr.mxu0 0.0
    %1358 = vmatpush1.xpose.msra.mxu0 0.0
    %1359 = vmatprep.subr.mxu0 0.0
    %1360 = vmatpush1.xpose.msra.mxu0 0.0
    %1361 = vmatprep.subr.mxu0 0.0
    %1362 = vmatpush1.xpose.msra.mxu0 0.0
    %1363 = vmatprep.subr.mxu0 0.0
    %1364 = vmatpush1.xpose.msra.mxu0 0.0
    %1365 = vmatprep.subr.mxu0 0.0
    %1366 = vmatpush1.xpose.msra.mxu0 0.0
    %1367 = vmatprep.subr.mxu0 0.0
    %1368 = vmatpush1.xpose.msra.mxu0 0.0
    %1369 = vmatprep.subr.mxu0 0.0
    %1370 = vmatpush1.xpose.msra.mxu0 0.0
    %1371 = vmatprep.subr.mxu0 0.0
    %1372 = vmatpush1.xpose.msra.mxu0 0.0
    %1373 = vmatprep.subr.mxu0 0.0
    %1374 = vmatpush1.xpose.msra.mxu0 0.0
    %1375 = vmatprep.subr.mxu0 0.0
    %1376 = vmatpush1.xpose.msra.mxu0 0.0
    %1377 = vmatprep.mubr.f32.mxu0 0.0
    %1378 = vmatmul.mubr.f32.gmra.mrb[0].mxu0 %v1309
    %v1379 = vpop.f32.mrb[0].mxu0
    %v1380 = vadd.f32 0.0, %v1379
    %v1381 = vpop.f32.mrb[0].mxu0
    %1382 = vdwg.mxu0
    %v1383 = vmul.f32 %v1302, 0.35355338
    %v1384 = vmul.f32 %v1380, 0.35355338
    %v1385 = vsel %vm59, %v1383, -inf
    %1386 = vmax.xlane.f32.xlu0 %v1385
    %v1387 = vpop.xlane.xlu0 %1386
    %v1388 = vsel %vm59, %v1384, -inf
    %1389 = vmax.xlane.f32.xlu0 %v1388
    %v1390 = vpop.xlane.xlu0 %1389
    %v1391 = vsub.f32 %v1383, %v1387
    %v1392 = vsub.f32 %v1384, %v1390
    %v1393 = vmul.f32 %v1391, 1.442695
    %v1394 = vpow.pop %v1393
    %v1395 = vmul.f32 %v1392, 1.442695
    %v1396 = vpow.pop %v1395
    %v1397 = vsel %vm59, %v1394, 0.0
    %1398 = vadd.xlane.f32.xlu0 %v1397
    %v1399 = vpop.xlane.xlu0 %1398
    %v1400 = vsel %vm59, %v1396, 0.0
    %1401 = vadd.xlane.f32.xlu0 %v1400
    %v1402 = vpop.xlane.xlu0 %1401
    %v1403 = vrcp.pop %v1399
    %v1404 = vmul.f32 %v1394, %v1403
    %v1405 = vrcp.pop %v1402
    %v1406 = vmul.f32 %v1396, %v1405
    %1407 = vrot.lane.b32.xlu0 %v225, 40
    %v1408 = vpop.permute.xlu0 %1407
    %v1411 = vsel %vm59, %v1404, 0
    %1413 = vmatprep.subr.mxu0 0.0
    %1414 = vmatpush1.msra.mxu0 %v1408
    %1415 = vmatprep.subr.mxu0 0.0
    %1416 = vmatpush1.msra.mxu0 0.0
    %1417 = vmatprep.subr.mxu0 0.0
    %1418 = vmatpush1.msra.mxu0 0.0
    %1419 = vmatprep.subr.mxu0 0.0
    %1420 = vmatpush1.msra.mxu0 0.0
    %1421 = vmatprep.subr.mxu0 0.0
    %1422 = vmatpush1.msra.mxu0 0.0
    %1423 = vmatprep.subr.mxu0 0.0
    %1424 = vmatpush1.msra.mxu0 0.0
    %1425 = vmatprep.subr.mxu0 0.0
    %1426 = vmatpush1.msra.mxu0 0.0
    %1427 = vmatprep.subr.mxu0 0.0
    %1428 = vmatpush1.msra.mxu0 0.0
    %1429 = vmatprep.subr.mxu0 0.0
    %1430 = vmatpush1.msra.mxu0 0.0
    %1431 = vmatprep.subr.mxu0 0.0
    %1432 = vmatpush1.msra.mxu0 0.0
    %1433 = vmatprep.subr.mxu0 0.0
    %1434 = vmatpush1.msra.mxu0 0.0
    %1435 = vmatprep.subr.mxu0 0.0
    %1436 = vmatpush1.msra.mxu0 0.0
    %1437 = vmatprep.subr.mxu0 0.0
    %1438 = vmatpush1.msra.mxu0 0.0
    %1439 = vmatprep.subr.mxu0 0.0
    %1440 = vmatpush1.msra.mxu0 0.0
    %1441 = vmatprep.subr.mxu0 0.0
    %1442 = vmatpush1.msra.mxu0 0.0
    %1443 = vmatprep.subr.mxu0 0.0
    %1444 = vmatpush1.msra.mxu0 0.0
    %1445 = vmatprep.subr.mxu0 0.0
    %1446 = vmatpush1.msra.mxu0 0.0
    %1447 = vmatprep.subr.mxu0 0.0
    %1448 = vmatpush1.msra.mxu0 0.0
    %1449 = vmatprep.subr.mxu0 0.0
    %1450 = vmatpush1.msra.mxu0 0.0
    %1451 = vmatprep.subr.mxu0 0.0
    %1452 = vmatpush1.msra.mxu0 0.0
    %1453 = vmatprep.subr.mxu0 0.0
    %1454 = vmatpush1.msra.mxu0 0.0
    %1455 = vmatprep.subr.mxu0 0.0
    %1456 = vmatpush1.msra.mxu0 0.0
    %1457 = vmatprep.subr.mxu0 0.0
    %1458 = vmatpush1.msra.mxu0 0.0
    %1459 = vmatprep.subr.mxu0 0.0
    %1460 = vmatpush1.msra.mxu0 0.0
    %1461 = vmatprep.subr.mxu0 0.0
    %1462 = vmatpush1.msra.mxu0 0.0
    %1463 = vmatprep.subr.mxu0 0.0
    %1464 = vmatpush1.msra.mxu0 0.0
    %1465 = vmatprep.subr.mxu0 0.0
    %1466 = vmatpush1.msra.mxu0 0.0
    %1467 = vmatprep.subr.mxu0 0.0
    %1468 = vmatpush1.msra.mxu0 0.0
    %1469 = vmatprep.subr.mxu0 0.0
    %1470 = vmatpush1.msra.mxu0 0.0
    %1471 = vmatprep.subr.mxu0 0.0
    %1472 = vmatpush1.msra.mxu0 0.0
    %1473 = vmatprep.subr.mxu0 0.0
    %1474 = vmatpush1.msra.mxu0 0.0
    %1475 = vmatprep.subr.mxu0 0.0
    %1476 = vmatpush1.msra.mxu0 0.0
    %1477 = vmatprep.mubr.f32.mxu0 0.0
    %1478 = vmatmul.mubr.f32.gmra.mrb[0].mxu0 %v1411
    %v1479 = vpop.f32.mrb[0].mxu0
    %v1480 = vadd.f32 0.0, %v1479
    %v1481 = vpop.f32.mrb[0].mxu0
    %1482 = vdwg.mxu0
    %1483 = vrot.lane.b32.xlu0 %v230, 40
    %v1484 = vpop.permute.xlu0 %1483
    %v1487 = vsel %vm59, %v1406, 0
    %1489 = vmatprep.subr.mxu0 0.0
    %1490 = vmatpush1.msra.mxu0 %v1484
    %1491 = vmatprep.subr.mxu0 0.0
    %1492 = vmatpush1.msra.mxu0 0.0
    %1493 = vmatprep.subr.mxu0 0.0
    %1494 = vmatpush1.msra.mxu0 0.0
    %1495 = vmatprep.subr.mxu0 0.0
    %1496 = vmatpush1.msra.mxu0 0.0
    %1497 = vmatprep.subr.mxu0 0.0
    %1498 = vmatpush1.msra.mxu0 0.0
    %1499 = vmatprep.subr.mxu0 0.0
    %1500 = vmatpush1.msra.mxu0 0.0
    %1501 = vmatprep.subr.mxu0 0.0
    %1502 = vmatpush1.msra.mxu0 0.0
    %1503 = vmatprep.subr.mxu0 0.0
    %1504 = vmatpush1.msra.mxu0 0.0
    %1505 = vmatprep.subr.mxu0 0.0
    %1506 = vmatpush1.msra.mxu0 0.0
    %1507 = vmatprep.subr.mxu0 0.0
    %1508 = vmatpush1.msra.mxu0 0.0
    %1509 = vmatprep.subr.mxu0 0.0
    %1510 = vmatpush1.msra.mxu0 0.0
    %1511 = vmatprep.subr.mxu0 0.0
    %1512 = vmatpush1.msra.mxu0 0.0
    %1513 = vmatprep.subr.mxu0 0.0
    %1514 = vmatpush1.msra.mxu0 0.0
    %1515 = vmatprep.subr.mxu0 0.0
    %1516 = vmatpush1.msra.mxu0 0.0
    %1517 = vmatprep.subr.mxu0 0.0
    %1518 = vmatpush1.msra.mxu0 0.0
    %1519 = vmatprep.subr.mxu0 0.0
    %1520 = vmatpush1.msra.mxu0 0.0
    %1521 = vmatprep.subr.mxu0 0.0
    %1522 = vmatpush1.msra.mxu0 0.0
    %1523 = vmatprep.subr.mxu0 0.0
    %1524 = vmatpush1.msra.mxu0 0.0
    %1525 = vmatprep.subr.mxu0 0.0
    %1526 = vmatpush1.msra.mxu0 0.0
    %1527 = vmatprep.subr.mxu0 0.0
    %1528 = vmatpush1.msra.mxu0 0.0
    %1529 = vmatprep.subr.mxu0 0.0
    %1530 = vmatpush1.msra.mxu0 0.0
    %1531 = vmatprep.subr.mxu0 0.0
    %1532 = vmatpush1.msra.mxu0 0.0
    %1533 = vmatprep.subr.mxu0 0.0
    %1534 = vmatpush1.msra.mxu0 0.0
    %1535 = vmatprep.subr.mxu0 0.0
    %1536 = vmatpush1.msra.mxu0 0.0
    %1537 = vmatprep.subr.mxu0 0.0
    %1538 = vmatpush1.msra.mxu0 0.0
    %1539 = vmatprep.subr.mxu0 0.0
    %1540 = vmatpush1.msra.mxu0 0.0
    %1541 = vmatprep.subr.mxu0 0.0
    %1542 = vmatpush1.msra.mxu0 0.0
    %1543 = vmatprep.subr.mxu0 0.0
    %1544 = vmatpush1.msra.mxu0 0.0
    %1545 = vmatprep.subr.mxu0 0.0
    %1546 = vmatpush1.msra.mxu0 0.0
    %1547 = vmatprep.subr.mxu0 0.0
    %1548 = vmatpush1.msra.mxu0 0.0
    %1549 = vmatprep.subr.mxu0 0.0
    %1550 = vmatpush1.msra.mxu0 0.0
    %1551 = vmatprep.subr.mxu0 0.0
    %1552 = vmatpush1.msra.mxu0 0.0
    %1553 = vmatprep.mubr.f32.mxu0 0.0
    %1554 = vmatmul.mubr.f32.gmra.mrb[0].mxu0 %v1487
    %v1555 = vpop.f32.mrb[0].mxu0
    %v1556 = vadd.f32 0.0, %v1555
    %v1557 = vpop.f32.mrb[0].mxu0
    %1558 = vdwg.mxu0
    %1561 = vrot.lane.b32.xlu0 %v816, 8
    %v1562 = vpop.permute.xlu0 %1561
    %1563 = vrot.lane.b32.xlu0 %v892, 8
    %v1564 = vpop.permute.xlu0 %1563
    %1569 = vrot.lane.b32.xlu0 %v1148, 16
    %v1570 = vpop.permute.xlu0 %1569
    %1571 = vrot.lane.b32.xlu0 %v1224, 16
    %v1572 = vpop.permute.xlu0 %1571
    %1577 = vrot.lane.b32.xlu0 %v1480, 24
    %v1578 = vpop.permute.xlu0 %1577
    %1579 = vrot.lane.b32.xlu0 %v1556, 24
    %v1580 = vpop.permute.xlu0 %1579
    %v1583 = vsel %vm59, %v484, %v1562
    %v1584 = vsel %vm59, %v560, %v1564
    %vm1585 = vcmask 130048
    %v1586 = vsel %vm1585, %v1583, %v1570
    %v1587 = vsel %vm1585, %v1584, %v1572
    %vm1588 = vcmask 195584
    %v1589 = vsel %vm1588, %v1586, %v1578
    %v1590 = vsel %vm1588, %v1587, %v1580
    %v1591 = vld [vmem:[%s4] sm:$0xff]
    %v1592 = vld [vmem:[%s4 + $0x8] sm:$0xff]
    %v1593 = vld [vmem:[%s4 + $0x10] sm:$0xff]
    %v1594 = vld [vmem:[%s4 + $0x18] sm:$0xff]
    %v1595 = vld [vmem:[%s5] sm:$0x1]
    %v1597 = vlaneseq
    %v1598 = vshrl.u32 %v1597, 7
    %v1599 = vsub.s32 0, %v1598
    %v1600 = vrot.slane %v1595, %v1599
    %v1603 = vsel %vm50, %v1589, 0
    %v1606 = vsel %vm50, %v1590, 0
    %1608 = vmatprep.subr.mxu0 0.0
    %1609 = vmatpush1.msra.mxu0 %v1591
    %1610 = vmatprep.subr.mxu0 0.0
    %1611 = vmatpush1.msra.mxu0 %v1592
    %1612 = vmatprep.subr.mxu0 0.0
    %1613 = vmatpush1.msra.mxu0 %v1593
    %1614 = vmatprep.subr.mxu0 0.0
    %1615 = vmatpush1.msra.mxu0 %v1594
    %1616 = vmatprep.subr.mxu0 0.0
    %1617 = vmatpush1.msra.mxu0 0.0
    %1618 = vmatprep.subr.mxu0 0.0
    %1619 = vmatpush1.msra.mxu0 0.0
    %1620 = vmatprep.subr.mxu0 0.0
    %1621 = vmatpush1.msra.mxu0 0.0
    %1622 = vmatprep.subr.mxu0 0.0
    %1623 = vmatpush1.msra.mxu0 0.0
    %1624 = vmatprep.subr.mxu0 0.0
    %1625 = vmatpush1.msra.mxu0 0.0
    %1626 = vmatprep.subr.mxu0 0.0
    %1627 = vmatpush1.msra.mxu0 0.0
    %1628 = vmatprep.subr.mxu0 0.0
    %1629 = vmatpush1.msra.mxu0 0.0
    %1630 = vmatprep.subr.mxu0 0.0
    %1631 = vmatpush1.msra.mxu0 0.0
    %1632 = vmatprep.subr.mxu0 0.0
    %1633 = vmatpush1.msra.mxu0 0.0
    %1634 = vmatprep.subr.mxu0 0.0
    %1635 = vmatpush1.msra.mxu0 0.0
    %1636 = vmatprep.subr.mxu0 0.0
    %1637 = vmatpush1.msra.mxu0 0.0
    %1638 = vmatprep.subr.mxu0 0.0
    %1639 = vmatpush1.msra.mxu0 0.0
    %1640 = vmatprep.subr.mxu0 0.0
    %1641 = vmatpush1.msra.mxu0 0.0
    %1642 = vmatprep.subr.mxu0 0.0
    %1643 = vmatpush1.msra.mxu0 0.0
    %1644 = vmatprep.subr.mxu0 0.0
    %1645 = vmatpush1.msra.mxu0 0.0
    %1646 = vmatprep.subr.mxu0 0.0
    %1647 = vmatpush1.msra.mxu0 0.0
    %1648 = vmatprep.subr.mxu0 0.0
    %1649 = vmatpush1.msra.mxu0 0.0
    %1650 = vmatprep.subr.mxu0 0.0
    %1651 = vmatpush1.msra.mxu0 0.0
    %1652 = vmatprep.subr.mxu0 0.0
    %1653 = vmatpush1.msra.mxu0 0.0
    %1654 = vmatprep.subr.mxu0 0.0
    %1655 = vmatpush1.msra.mxu0 0.0
    %1656 = vmatprep.subr.mxu0 0.0
    %1657 = vmatpush1.msra.mxu0 0.0
    %1658 = vmatprep.subr.mxu0 0.0
    %1659 = vmatpush1.msra.mxu0 0.0
    %1660 = vmatprep.subr.mxu0 0.0
    %1661 = vmatpush1.msra.mxu0 0.0
    %1662 = vmatprep.subr.mxu0 0.0
    %1663 = vmatpush1.msra.mxu0 0.0
    %1664 = vmatprep.subr.mxu0 0.0
    %1665 = vmatpush1.msra.mxu0 0.0
    %1666 = vmatprep.subr.mxu0 0.0
    %1667 = vmatpush1.msra.mxu0 0.0
    %1668 = vmatprep.subr.mxu0 0.0
    %1669 = vmatpush1.msra.mxu0 0.0
    %1670 = vmatprep.subr.mxu0 0.0
    %1671 = vmatpush1.msra.mxu0 0.0
    %1672 = vmatprep.mubr.f32.mxu0 0.0
    %1673 = vmatmul.mubr.f32.gmra.mrb[0].mxu0 %v1603
    %v1674 = vpop.f32.mrb[0].mxu0
    %v1675 = vadd.f32 %v1600, %v1674
    %v1676 = vpop.f32.mrb[0].mxu0
    %1677 = vmatprep.mubr.f32.mxu0 0.0
    %1678 = vmatmul.mubr.f32.gmra.mrb[0].mxu0 %v1606
    %v1679 = vpop.f32.mrb[0].mxu0
    %v1680 = vadd.f32 %v1600, %v1679
    %v1681 = vpop.f32.mrb[0].mxu0
    %1682 = vdwg.mxu0
    %v1683 = vadd.f32 %v133, %v1675
    %v1684 = vadd.f32 %v138, %v1680
    %v1685 = vld [vmem:[%s6] sm:$0x1]
    %v1686 = vld [vmem:[%s7] sm:$0x1]
    %v1687 = vsel %vm50, %v1683, 0.0
    %1688 = vadd.xlane.f32.xlu0 %v1687
    %v1689 = vpop.xlane.xlu0 %1688
    %v1690 = vsel %vm50, %v1684, 0.0
    %1691 = vadd.xlane.f32.xlu0 %v1690
    %v1692 = vpop.xlane.xlu0 %1691
    %v1693 = vrcp.pop 32.0
    %v1694 = vmul.f32 %v1689, %v1693
    %v1695 = vmul.f32 %v1692, %v1693
    %v1696 = vsub.f32 %v1683, %v1694
    %v1697 = vsub.f32 %v1684, %v1695
    %v1698 = vmul.f32 %v1696, %v1696
    %v1699 = vmul.f32 %v1697, %v1697
    %v1700 = vsel %vm50, %v1698, 0.0
    %1701 = vadd.xlane.f32.xlu0 %v1700
    %v1702 = vpop.xlane.xlu0 %1701
    %v1703 = vsel %vm50, %v1699, 0.0
    %1704 = vadd.xlane.f32.xlu0 %v1703
    %v1705 = vpop.xlane.xlu0 %1704
    %v1706 = vmul.f32 %v1702, %v1693
    %v1707 = vmul.f32 %v1705, %v1693
    %v1708 = vadd.f32 %v1706, 1e-05
    %v1709 = vadd.f32 %v1707, 1e-05
    %v1710 = vrsqrt.pop %v1708
    %v1711 = vrsqrt.pop %v1709
    %v1712 = vmul.f32 %v1696, %v1710
    %v1713 = vmul.f32 %v1697, %v1711
    %v1715 = vlaneseq
    %v1716 = vshrl.u32 %v1715, 7
    %v1717 = vsub.s32 0, %v1716
    %v1718 = vrot.slane %v1685, %v1717
    %v1720 = vmul.f32 %v1712, %v1718
    %v1721 = vmul.f32 %v1713, %v1718
    %v1723 = vlaneseq
    %v1724 = vshrl.u32 %v1723, 7
    %v1725 = vsub.s32 0, %v1724
    %v1726 = vrot.slane %v1686, %v1725
    %v1728 = vadd.f32 %v1720, %v1726
    %v1729 = vadd.f32 %v1721, %v1726
    %v1730 = vld [vmem:[%s8] sm:$0xff]
    %v1731 = vld [vmem:[%s8 + $0x8] sm:$0xff]
    %v1732 = vld [vmem:[%s8 + $0x10] sm:$0xff]
    %v1733 = vld [vmem:[%s8 + $0x18] sm:$0xff]
    %v1734 = vld [vmem:[%s9] sm:$0x1]
    %v1736 = vlaneseq
    %v1737 = vshrl.u32 %v1736, 7
    %v1738 = vsub.s32 0, %v1737
    %v1739 = vrot.slane %v1734, %v1738
    %v1742 = vsel %vm50, %v1728, 0
    %v1745 = vsel %vm50, %v1729, 0
    %1747 = vmatprep.subr.mxu0 0.0
    %1748 = vmatpush1.msra.mxu0 %v1730
    %1749 = vmatprep.subr.mxu0 0.0
    %1750 = vmatpush1.msra.mxu0 %v1731
    %1751 = vmatprep.subr.mxu0 0.0
    %1752 = vmatpush1.msra.mxu0 %v1732
    %1753 = vmatprep.subr.mxu0 0.0
    %1754 = vmatpush1.msra.mxu0 %v1733
    %1755 = vmatprep.subr.mxu0 0.0
    %1756 = vmatpush1.msra.mxu0 0.0
    %1757 = vmatprep.subr.mxu0 0.0
    %1758 = vmatpush1.msra.mxu0 0.0
    %1759 = vmatprep.subr.mxu0 0.0
    %1760 = vmatpush1.msra.mxu0 0.0
    %1761 = vmatprep.subr.mxu0 0.0
    %1762 = vmatpush1.msra.mxu0 0.0
    %1763 = vmatprep.subr.mxu0 0.0
    %1764 = vmatpush1.msra.mxu0 0.0
    %1765 = vmatprep.subr.mxu0 0.0
    %1766 = vmatpush1.msra.mxu0 0.0
    %1767 = vmatprep.subr.mxu0 0.0
    %1768 = vmatpush1.msra.mxu0 0.0
    %1769 = vmatprep.subr.mxu0 0.0
    %1770 = vmatpush1.msra.mxu0 0.0
    %1771 = vmatprep.subr.mxu0 0.0
    %1772 = vmatpush1.msra.mxu0 0.0
    %1773 = vmatprep.subr.mxu0 0.0
    %1774 = vmatpush1.msra.mxu0 0.0
    %1775 = vmatprep.subr.mxu0 0.0
    %1776 = vmatpush1.msra.mxu0 0.0
    %1777 = vmatprep.subr.mxu0 0.0
    %1778 = vmatpush1.msra.mxu0 0.0
    %1779 = vmatprep.subr.mxu0 0.0
    %1780 = vmatpush1.msra.mxu0 0.0
    %1781 = vmatprep.subr.mxu0 0.0
    %1782 = vmatpush1.msra.mxu0 0.0
    %1783 = vmatprep.subr.mxu0 0.0
    %1784 = vmatpush1.msra.mxu0 0.0
    %1785 = vmatprep.subr.mxu0 0.0
    %1786 = vmatpush1.msra.mxu0 0.0
    %1787 = vmatprep.subr.mxu0 0.0
    %1788 = vmatpush1.msra.mxu0 0.0
    %1789 = vmatprep.subr.mxu0 0.0
    %1790 = vmatpush1.msra.mxu0 0.0
    %1791 = vmatprep.subr.mxu0 0.0
    %1792 = vmatpush1.msra.mxu0 0.0
    %1793 = vmatprep.subr.mxu0 0.0
    %1794 = vmatpush1.msra.mxu0 0.0
    %1795 = vmatprep.subr.mxu0 0.0
    %1796 = vmatpush1.msra.mxu0 0.0
    %1797 = vmatprep.subr.mxu0 0.0
    %1798 = vmatpush1.msra.mxu0 0.0
    %1799 = vmatprep.subr.mxu0 0.0
    %1800 = vmatpush1.msra.mxu0 0.0
    %1801 = vmatprep.subr.mxu0 0.0
    %1802 = vmatpush1.msra.mxu0 0.0
    %1803 = vmatprep.subr.mxu0 0.0
    %1804 = vmatpush1.msra.mxu0 0.0
    %1805 = vmatprep.subr.mxu0 0.0
    %1806 = vmatpush1.msra.mxu0 0.0
    %1807 = vmatprep.subr.mxu0 0.0
    %1808 = vmatpush1.msra.mxu0 0.0
    %1809 = vmatprep.subr.mxu0 0.0
    %1810 = vmatpush1.msra.mxu0 0.0
    %1811 = vmatprep.mubr.f32.mxu0 0.0
    %1812 = vmatmul.mubr.f32.gmra.mrb[0].mxu0 %v1742
    %v1813 = vpop.f32.mrb[0].mxu0
    %v1814 = vadd.f32 %v1739, %v1813
    %v1815 = vpop.f32.mrb[0].mxu0
    %1816 = vmatprep.mubr.f32.mxu0 0.0
    %1817 = vmatmul.mubr.f32.gmra.mrb[0].mxu0 %v1745
    %v1818 = vpop.f32.mrb[0].mxu0
    %v1819 = vadd.f32 %v1739, %v1818
    %v1820 = vpop.f32.mrb[0].mxu0
    %1821 = vdwg.mxu0
    %v1822 = vmax.f32 %v1814, 0.0
    %v1823 = vmax.f32 %v1819, 0.0
    %v1824 = vld [vmem:[%s10] sm:$0xff]
    %v1825 = vld [vmem:[%s10 + $0x8] sm:$0xff]
    %v1826 = vld [vmem:[%s10 + $0x10] sm:$0xff]
    %v1827 = vld [vmem:[%s10 + $0x18] sm:$0xff]
    %v1828 = vld [vmem:[%s10 + $0x20] sm:$0xff]
    %v1829 = vld [vmem:[%s10 + $0x28] sm:$0xff]
    %v1830 = vld [vmem:[%s10 + $0x30] sm:$0xff]
    %v1831 = vld [vmem:[%s10 + $0x38] sm:$0xff]
    %v1832 = vld [vmem:[%s11] sm:$0x1]
    %v1834 = vlaneseq
    %v1835 = vshrl.u32 %v1834, 7
    %v1836 = vsub.s32 0, %v1835
    %v1837 = vrot.slane %v1832, %v1836
    %vm1839 = vcmask 523264
    %v1841 = vsel %vm1839, %v1822, 0
    %v1844 = vsel %vm1839, %v1823, 0
    %1846 = vmatprep.subr.mxu0 0.0
    %1847 = vmatpush1.msra.mxu0 %v1824
    %1848 = vmatprep.subr.mxu0 0.0
    %1849 = vmatpush1.msra.mxu0 %v1825
    %1850 = vmatprep.subr.mxu0 0.0
    %1851 = vmatpush1.msra.mxu0 %v1826
    %1852 = vmatprep.subr.mxu0 0.0
    %1853 = vmatpush1.msra.mxu0 %v1827
    %1854 = vmatprep.subr.mxu0 0.0
    %1855 = vmatpush1.msra.mxu0 %v1828
    %1856 = vmatprep.subr.mxu0 0.0
    %1857 = vmatpush1.msra.mxu0 %v1829
    %1858 = vmatprep.subr.mxu0 0.0
    %1859 = vmatpush1.msra.mxu0 %v1830
    %1860 = vmatprep.subr.mxu0 0.0
    %1861 = vmatpush1.msra.mxu0 %v1831
    %1862 = vmatprep.subr.mxu0 0.0
    %1863 = vmatpush1.msra.mxu0 0.0
    %1864 = vmatprep.subr.mxu0 0.0
    %1865 = vmatpush1.msra.mxu0 0.0
    %1866 = vmatprep.subr.mxu0 0.0
    %1867 = vmatpush1.msra.mxu0 0.0
    %1868 = vmatprep.subr.mxu0 0.0
    %1869 = vmatpush1.msra.mxu0 0.0
    %1870 = vmatprep.subr.mxu0 0.0
    %1871 = vmatpush1.msra.mxu0 0.0
    %1872 = vmatprep.subr.mxu0 0.0
    %1873 = vmatpush1.msra.mxu0 0.0
    %1874 = vmatprep.subr.mxu0 0.0
    %1875 = vmatpush1.msra.mxu0 0.0
    %1876 = vmatprep.subr.mxu0 0.0
    %1877 = vmatpush1.msra.mxu0 0.0
    %1878 = vmatprep.subr.mxu0 0.0
    %1879 = vmatpush1.msra.mxu0 0.0
    %1880 = vmatprep.subr.mxu0 0.0
    %1881 = vmatpush1.msra.mxu0 0.0
    %1882 = vmatprep.subr.mxu0 0.0
    %1883 = vmatpush1.msra.mxu0 0.0
    %1884 = vmatprep.subr.mxu0 0.0
    %1885 = vmatpush1.msra.mxu0 0.0
    %1886 = vmatprep.subr.mxu0 0.0
    %1887 = vmatpush1.msra.mxu0 0.0
    %1888 = vmatprep.subr.mxu0 0.0
    %1889 = vmatpush1.msra.mxu0 0.0
    %1890 = vmatprep.subr.mxu0 0.0
    %1891 = vmatpush1.msra.mxu0 0.0
    %1892 = vmatprep.subr.mxu0 0.0
    %1893 = vmatpush1.msra.mxu0 0.0
    %1894 = vmatprep.subr.mxu0 0.0
    %1895 = vmatpush1.msra.mxu0 0.0
    %1896 = vmatprep.subr.mxu0 0.0
    %1897 = vmatpush1.msra.mxu0 0.0
    %1898 = vmatprep.subr.mxu0 0.0
    %1899 = vmatpush1.msra.mxu0 0.0
    %1900 = vmatprep.subr.mxu0 0.0
    %1901 = vmatpush1.msra.mxu0 0.0
    %1902 = vmatprep.subr.mxu0 0.0
    %1903 = vmatpush1.msra.mxu0 0.0
    %1904 = vmatprep.subr.mxu0 0.0
    %1905 = vmatpush1.msra.mxu0 0.0
    %1906 = vmatprep.subr.mxu0 0.0
    %1907 = vmatpush1.msra.mxu0 0.0
    %1908 = vmatprep.subr.mxu0 0.0
    %1909 = vmatpush1.msra.mxu0 0.0
    %1910 = vmatprep.mubr.f32.mxu0 0.0
    %1911 = vmatmul.mubr.f32.gmra.mrb[0].mxu0 %v1841
    %v1912 = vpop.f32.mrb[0].mxu0
    %v1913 = vadd.f32 %v1837, %v1912
    %v1914 = vpop.f32.mrb[0].mxu0
    %1915 = vmatprep.mubr.f32.mxu0 0.0
    %1916 = vmatmul.mubr.f32.gmra.mrb[0].mxu0 %v1844
    %v1917 = vpop.f32.mrb[0].mxu0
    %v1918 = vadd.f32 %v1837, %v1917
    %v1919 = vpop.f32.mrb[0].mxu0
    %1920 = vdwg.mxu0
    %v1921 = vadd.f32 %v1728, %v1913
    %v1922 = vadd.f32 %v1729, %v1918
    %v1923 = vld [vmem:[%s12] sm:$0x1]
    %v1924 = vld [vmem:[%s13] sm:$0x1]
    %v1925 = vsel %vm50, %v1921, 0.0
    %1926 = vadd.xlane.f32.xlu0 %v1925
    %v1927 = vpop.xlane.xlu0 %1926
    %v1928 = vsel %vm50, %v1922, 0.0
    %1929 = vadd.xlane.f32.xlu0 %v1928
    %v1930 = vpop.xlane.xlu0 %1929
    %v1931 = vmul.f32 %v1927, %v1693
    %v1932 = vmul.f32 %v1930, %v1693
    %v1933 = vsub.f32 %v1921, %v1931
    %v1934 = vsub.f32 %v1922, %v1932
    %v1935 = vmul.f32 %v1933, %v1933
    %v1936 = vmul.f32 %v1934, %v1934
    %v1937 = vsel %vm50, %v1935, 0.0
    %1938 = vadd.xlane.f32.xlu0 %v1937
    %v1939 = vpop.xlane.xlu0 %1938
    %v1940 = vsel %vm50, %v1936, 0.0
    %1941 = vadd.xlane.f32.xlu0 %v1940
    %v1942 = vpop.xlane.xlu0 %1941
    %v1943 = vmul.f32 %v1939, %v1693
    %v1944 = vmul.f32 %v1942, %v1693
    %v1945 = vadd.f32 %v1943, 1e-05
    %v1946 = vadd.f32 %v1944, 1e-05
    %v1947 = vrsqrt.pop %v1945
    %v1948 = vrsqrt.pop %v1946
    %v1949 = vmul.f32 %v1933, %v1947
    %v1950 = vmul.f32 %v1934, %v1948
    %v1952 = vlaneseq
    %v1953 = vshrl.u32 %v1952, 7
    %v1954 = vsub.s32 0, %v1953
    %v1955 = vrot.slane %v1923, %v1954
    %v1957 = vmul.f32 %v1949, %v1955
    %v1958 = vmul.f32 %v1950, %v1955
    %v1960 = vlaneseq
    %v1961 = vshrl.u32 %v1960, 7
    %v1962 = vsub.s32 0, %v1961
    %v1963 = vrot.slane %v1924, %v1962
    %v1965 = vadd.f32 %v1957, %v1963
    %v1966 = vadd.f32 %v1958, %v1963
    %s1967 = scalar_lea.vmem %s2, 32
    %v1968 = vld [vmem:[%s1967] sm:$0xff]
    %v1969 = vld [vmem:[%s1967 + $0x8] sm:$0xff]
    %v1970 = vld [vmem:[%s1967 + $0x10] sm:$0xff]
    %v1971 = vld [vmem:[%s1967 + $0x18] sm:$0xff]
    %s1972 = scalar_lea.vmem %s3, 1
    %v1973 = vld [vmem:[%s1972] sm:$0x1]
    %v1975 = vlaneseq
    %v1976 = vshrl.u32 %v1975, 7
    %v1977 = vsub.s32 0, %v1976
    %v1978 = vrot.slane %v1973, %v1977
    %v1981 = vsel %vm50, %v1965, 0
    %v1984 = vsel %vm50, %v1966, 0
    %1986 = vmatprep.subr.mxu0 0.0
    %1987 = vmatpush1.msra.mxu0 %v1968
    %1988 = vmatprep.subr.mxu0 0.0
    %1989 = vmatpush1.msra.mxu0 %v1969
    %1990 = vmatprep.subr.mxu0 0.0
    %1991 = vmatpush1.msra.mxu0 %v1970
    %1992 = vmatprep.subr.mxu0 0.0
    %1993 = vmatpush1.msra.mxu0 %v1971
    %1994 = vmatprep.subr.mxu0 0.0
    %1995 = vmatpush1.msra.mxu0 0.0
    %1996 = vmatprep.subr.mxu0 0.0
    %1997 = vmatpush1.msra.mxu0 0.0
    %1998 = vmatprep.subr.mxu0 0.0
    %1999 = vmatpush1.msra.mxu0 0.0
    %2000 = vmatprep.subr.mxu0 0.0
    %2001 = vmatpush1.msra.mxu0 0.0
    %2002 = vmatprep.subr.mxu0 0.0
    %2003 = vmatpush1.msra.mxu0 0.0
    %2004 = vmatprep.subr.mxu0 0.0
    %2005 = vmatpush1.msra.mxu0 0.0
    %2006 = vmatprep.subr.mxu0 0.0
    %2007 = vmatpush1.msra.mxu0 0.0
    %2008 = vmatprep.subr.mxu0 0.0
    %2009 = vmatpush1.msra.mxu0 0.0
    %2010 = vmatprep.subr.mxu0 0.0
    %2011 = vmatpush1.msra.mxu0 0.0
    %2012 = vmatprep.subr.mxu0 0.0
    %2013 = vmatpush1.msra.mxu0 0.0
    %2014 = vmatprep.subr.mxu0 0.0
    %2015 = vmatpush1.msra.mxu0 0.0
    %2016 = vmatprep.subr.mxu0 0.0
    %2017 = vmatpush1.msra.mxu0 0.0
    %2018 = vmatprep.subr.mxu0 0.0
    %2019 = vmatpush1.msra.mxu0 0.0
    %2020 = vmatprep.subr.mxu0 0.0
    %2021 = vmatpush1.msra.mxu0 0.0
    %2022 = vmatprep.subr.mxu0 0.0
    %2023 = vmatpush1.msra.mxu0 0.0
    %2024 = vmatprep.subr.mxu0 0.0
    %2025 = vmatpush1.msra.mxu0 0.0
    %2026 = vmatprep.subr.mxu0 0.0
    %2027 = vmatpush1.msra.mxu0 0.0
    %2028 = vmatprep.subr.mxu0 0.0
    %2029 = vmatpush1.msra.mxu0 0.0
    %2030 = vmatprep.subr.mxu0 0.0
    %2031 = vmatpush1.msra.mxu0 0.0
    %2032 = vmatprep.subr.mxu0 0.0
    %2033 = vmatpush1.msra.mxu0 0.0
    %2034 = vmatprep.subr.mxu0 0.0
    %2035 = vmatpush1.msra.mxu0 0.0
    %2036 = vmatprep.subr.mxu0 0.0
    %2037 = vmatpush1.msra.mxu0 0.0
    %2038 = vmatprep.subr.mxu0 0.0
    %2039 = vmatpush1.msra.mxu0 0.0
    %2040 = vmatprep.subr.mxu0 0.0
    %2041 = vmatpush1.msra.mxu0 0.0
    %2042 = vmatprep.subr.mxu0 0.0
    %2043 = vmatpush1.msra.mxu0 0.0
    %2044 = vmatprep.subr.mxu0 0.0
    %2045 = vmatpush1.msra.mxu0 0.0
    %2046 = vmatprep.subr.mxu0 0.0
    %2047 = vmatpush1.msra.mxu0 0.0
    %2048 = vmatprep.subr.mxu0 0.0
    %2049 = vmatpush1.msra.mxu0 0.0
    %2050 = vmatprep.mubr.f32.mxu0 0.0
    %2051 = vmatmul.mubr.f32.gmra.mrb[0].mxu0 %v1981
    %v2052 = vpop.f32.mrb[0].mxu0
    %v2053 = vadd.f32 %v1978, %v2052
    %v2054 = vpop.f32.mrb[0].mxu0
    %2055 = vmatprep.mubr.f32.mxu0 0.0
    %2056 = vmatmul.mubr.f32.gmra.mrb[0].mxu0 %v1984
    %v2057 = vpop.f32.mrb[0].mxu0
    %v2058 = vadd.f32 %v1978, %v2057
    %v2059 = vpop.f32.mrb[0].mxu0
    %2060 = vdwg.mxu0
    %2062 = vrot.lane.b32.xlu0 %v2053, 96
    %v2063 = vpop.permute.xlu0 %2062
    %v2064 = vsel %vm59, %v2053, 0
    %v2066 = vsel %vm59, %v2063, 0
    %2068 = vmatprep.subr.mxu0 0.0
    %2069 = vmatpush1.xpose.msra.mxu0 %v2066
    %2070 = vmatprep.subr.mxu0 0.0
    %2071 = vmatpush1.xpose.msra.mxu0 0.0
    %2072 = vmatprep.subr.mxu0 0.0
    %2073 = vmatpush1.xpose.msra.mxu0 0.0
    %2074 = vmatprep.subr.mxu0 0.0
    %2075 = vmatpush1.xpose.msra.mxu0 0.0
    %2076 = vmatprep.subr.mxu0 0.0
    %2077 = vmatpush1.xpose.msra.mxu0 0.0
    %2078 = vmatprep.subr.mxu0 0.0
    %2079 = vmatpush1.xpose.msra.mxu0 0.0
    %2080 = vmatprep.subr.mxu0 0.0
    %2081 = vmatpush1.xpose.msra.mxu0 0.0
    %2082 = vmatprep.subr.mxu0 0.0
    %2083 = vmatpush1.xpose.msra.mxu0 0.0
    %2084 = vmatprep.subr.mxu0 0.0
    %2085 = vmatpush1.xpose.msra.mxu0 0.0
    %2086 = vmatprep.subr.mxu0 0.0
    %2087 = vmatpush1.xpose.msra.mxu0 0.0
    %2088 = vmatprep.subr.mxu0 0.0
    %2089 = vmatpush1.xpose.msra.mxu0 0.0
    %2090 = vmatprep.subr.mxu0 0.0
    %2091 = vmatpush1.xpose.msra.mxu0 0.0
    %2092 = vmatprep.subr.mxu0 0.0
    %2093 = vmatpush1.xpose.msra.mxu0 0.0
    %2094 = vmatprep.subr.mxu0 0.0
    %2095 = vmatpush1.xpose.msra.mxu0 0.0
    %2096 = vmatprep.subr.mxu0 0.0
    %2097 = vmatpush1.xpose.msra.mxu0 0.0
    %2098 = vmatprep.subr.mxu0 0.0
    %2099 = vmatpush1.xpose.msra.mxu0 0.0
    %2100 = vmatprep.subr.mxu0 0.0
    %2101 = vmatpush1.xpose.msra.mxu0 0.0
    %2102 = vmatprep.subr.mxu0 0.0
    %2103 = vmatpush1.xpose.msra.mxu0 0.0
    %2104 = vmatprep.subr.mxu0 0.0
    %2105 = vmatpush1.xpose.msra.mxu0 0.0
    %2106 = vmatprep.subr.mxu0 0.0
    %2107 = vmatpush1.xpose.msra.mxu0 0.0
    %2108 = vmatprep.subr.mxu0 0.0
    %2109 = vmatpush1.xpose.msra.mxu0 0.0
    %2110 = vmatprep.subr.mxu0 0.0
    %2111 = vmatpush1.xpose.msra.mxu0 0.0
    %2112 = vmatprep.subr.mxu0 0.0
    %2113 = vmatpush1.xpose.msra.mxu0 0.0
    %2114 = vmatprep.subr.mxu0 0.0
    %2115 = vmatpush1.xpose.msra.mxu0 0.0
    %2116 = vmatprep.subr.mxu0 0.0
    %2117 = vmatpush1.xpose.msra.mxu0 0.0
    %2118 = vmatprep.subr.mxu0 0.0
    %2119 = vmatpush1.xpose.msra.mxu0 0.0
    %2120 = vmatprep.subr.mxu0 0.0
    %2121 = vmatpush1.xpose.msra.mxu0 0.0
    %2122 = vmatprep.subr.mxu0 0.0
    %2123 = vmatpush1.xpose.msra.mxu0 0.0
    %2124 = vmatprep.subr.mxu0 0.0
    %2125 = vmatpush1.xpose.msra.mxu0 0.0
    %2126 = vmatprep.subr.mxu0 0.0
    %2127 = vmatpush1.xpose.msra.mxu0 0.0
    %2128 = vmatprep.subr.mxu0 0.0
    %2129 = vmatpush1.xpose.msra.mxu0 0.0
    %2130 = vmatprep.subr.mxu0 0.0
    %2131 = vmatpush1.xpose.msra.mxu0 0.0
    %2132 = vmatprep.mubr.f32.mxu0 0.0
    %2133 = vmatmul.mubr.f32.gmra.mrb[0].mxu0 %v2064
    %v2134 = vpop.f32.mrb[0].mxu0
    %v2135 = vadd.f32 0.0, %v2134
    %v2136 = vpop.f32.mrb[0].mxu0
    %2137 = vdwg.mxu0
    %2139 = vrot.lane.b32.xlu0 %v2058, 96
    %v2140 = vpop.permute.xlu0 %2139
    %v2141 = vsel %vm59, %v2058, 0
    %v2143 = vsel %vm59, %v2140, 0
    %2145 = vmatprep.subr.mxu0 0.0
    %2146 = vmatpush1.xpose.msra.mxu0 %v2143
    %2147 = vmatprep.subr.mxu0 0.0
    %2148 = vmatpush1.xpose.msra.mxu0 0.0
    %2149 = vmatprep.subr.mxu0 0.0
    %2150 = vmatpush1.xpose.msra.mxu0 0.0
    %2151 = vmatprep.subr.mxu0 0.0
    %2152 = vmatpush1.xpose.msra.mxu0 0.0
    %2153 = vmatprep.subr.mxu0 0.0
    %2154 = vmatpush1.xpose.msra.mxu0 0.0
    %2155 = vmatprep.subr.mxu0 0.0
    %2156 = vmatpush1.xpose.msra.mxu0 0.0
    %2157 = vmatprep.subr.mxu0 0.0
    %2158 = vmatpush1.xpose.msra.mxu0 0.0
    %2159 = vmatprep.subr.mxu0 0.0
    %2160 = vmatpush1.xpose.msra.mxu0 0.0
    %2161 = vmatprep.subr.mxu0 0.0
    %2162 = vmatpush1.xpose.msra.mxu0 0.0
    %2163 = vmatprep.subr.mxu0 0.0
    %2164 = vmatpush1.xpose.msra.mxu0 0.0
    %2165 = vmatprep.subr.mxu0 0.0
    %2166 = vmatpush1.xpose.msra.mxu0 0.0
    %2167 = vmatprep.subr.mxu0 0.0
    %2168 = vmatpush1.xpose.msra.mxu0 0.0
    %2169 = vmatprep.subr.mxu0 0.0
    %2170 = vmatpush1.xpose.msra.mxu0 0.0
    %2171 = vmatprep.subr.mxu0 0.0
    %2172 = vmatpush1.xpose.msra.mxu0 0.0
    %2173 = vmatprep.subr.mxu0 0.0
    %2174 = vmatpush1.xpose.msra.mxu0 0.0
    %2175 = vmatprep.subr.mxu0 0.0
    %2176 = vmatpush1.xpose.msra.mxu0 0.0
    %2177 = vmatprep.subr.mxu0 0.0
    %2178 = vmatpush1.xpose.msra.mxu0 0.0
    %2179 = vmatprep.subr.mxu0 0.0
    %2180 = vmatpush1.xpose.msra.mxu0 0.0
    %2181 = vmatprep.subr.mxu0 0.0
    %2182 = vmatpush1.xpose.msra.mxu0 0.0
    %2183 = vmatprep.subr.mxu0 0.0
    %2184 = vmatpush1.xpose.msra.mxu0 0.0
    %2185 = vmatprep.subr.mxu0 0.0
    %2186 = vmatpush1.xpose.msra.mxu0 0.0
    %2187 = vmatprep.subr.mxu0 0.0
    %2188 = vmatpush1.xpose.msra.mxu0 0.0
    %2189 = vmatprep.subr.mxu0 0.0
    %2190 = vmatpush1.xpose.msra.mxu0 0.0
    %2191 = vmatprep.subr.mxu0 0.0
    %2192 = vmatpush1.xpose.msra.mxu0 0.0
    %2193 = vmatprep.subr.mxu0 0.0
    %2194 = vmatpush1.xpose.msra.mxu0 0.0
    %2195 = vmatprep.subr.mxu0 0.0
    %2196 = vmatpush1.xpose.msra.mxu0 0.0
    %2197 = vmatprep.subr.mxu0 0.0
    %2198 = vmatpush1.xpose.msra.mxu0 0.0
    %2199 = vmatprep.subr.mxu0 0.0
    %2200 = vmatpush1.xpose.msra.mxu0 0.0
    %2201 = vmatprep.subr.mxu0 0.0
    %2202 = vmatpush1.xpose.msra.mxu0 0.0
    %2203 = vmatprep.subr.mxu0 0.0
    %2204 = vmatpush1.xpose.msra.mxu0 0.0
    %2205 = vmatprep.subr.mxu0 0.0
    %2206 = vmatpush1.xpose.msra.mxu0 0.0
    %2207 = vmatprep.subr.mxu0 0.0
    %2208 = vmatpush1.xpose.msra.mxu0 0.0
    %2209 = vmatprep.mubr.f32.mxu0 0.0
    %2210 = vmatmul.mubr.f32.gmra.mrb[0].mxu0 %v2141
    %v2211 = vpop.f32.mrb[0].mxu0
    %v2212 = vadd.f32 0.0, %v2211
    %v2213 = vpop.f32.mrb[0].mxu0
    %2214 = vdwg.mxu0
    %v2215 = vmul.f32 %v2135, 0.35355338
    %v2216 = vmul.f32 %v2212, 0.35355338
    %v2217 = vsel %vm59, %v2215, -inf
    %2218 = vmax.xlane.f32.xlu0 %v2217
    %v2219 = vpop.xlane.xlu0 %2218
    %v2220 = vsel %vm59, %v2216, -inf
    %2221 = vmax.xlane.f32.xlu0 %v2220
    %v2222 = vpop.xlane.xlu0 %2221
    %v2223 = vsub.f32 %v2215, %v2219
    %v2224 = vsub.f32 %v2216, %v2222
    %v2225 = vmul.f32 %v2223, 1.442695
    %v2226 = vpow.pop %v2225
    %v2227 = vmul.f32 %v2224, 1.442695
    %v2228 = vpow.pop %v2227
    %v2229 = vsel %vm59, %v2226, 0.0
    %2230 = vadd.xlane.f32.xlu0 %v2229
    %v2231 = vpop.xlane.xlu0 %2230
    %v2232 = vsel %vm59, %v2228, 0.0
    %2233 = vadd.xlane.f32.xlu0 %v2232
    %v2234 = vpop.xlane.xlu0 %2233
    %v2235 = vrcp.pop %v2231
    %v2236 = vmul.f32 %v2226, %v2235
    %v2237 = vrcp.pop %v2234
    %v2238 = vmul.f32 %v2228, %v2237
    %2239 = vrot.lane.b32.xlu0 %v2053, 64
    %v2240 = vpop.permute.xlu0 %2239
    %v2243 = vsel %vm59, %v2236, 0
    %2245 = vmatprep.subr.mxu0 0.0
    %2246 = vmatpush1.msra.mxu0 %v2240
    %2247 = vmatprep.subr.mxu0 0.0
    %2248 = vmatpush1.msra.mxu0 0.0
    %2249 = vmatprep.subr.mxu0 0.0
    %2250 = vmatpush1.msra.mxu0 0.0
    %2251 = vmatprep.subr.mxu0 0.0
    %2252 = vmatpush1.msra.mxu0 0.0
    %2253 = vmatprep.subr.mxu0 0.0
    %2254 = vmatpush1.msra.mxu0 0.0
    %2255 = vmatprep.subr.mxu0 0.0
    %2256 = vmatpush1.msra.mxu0 0.0
    %2257 = vmatprep.subr.mxu0 0.0
    %2258 = vmatpush1.msra.mxu0 0.0
    %2259 = vmatprep.subr.mxu0 0.0
    %2260 = vmatpush1.msra.mxu0 0.0
    %2261 = vmatprep.subr.mxu0 0.0
    %2262 = vmatpush1.msra.mxu0 0.0
    %2263 = vmatprep.subr.mxu0 0.0
    %2264 = vmatpush1.msra.mxu0 0.0
    %2265 = vmatprep.subr.mxu0 0.0
    %2266 = vmatpush1.msra.mxu0 0.0
    %2267 = vmatprep.subr.mxu0 0.0
    %2268 = vmatpush1.msra.mxu0 0.0
    %2269 = vmatprep.subr.mxu0 0.0
    %2270 = vmatpush1.msra.mxu0 0.0
    %2271 = vmatprep.subr.mxu0 0.0
    %2272 = vmatpush1.msra.mxu0 0.0
    %2273 = vmatprep.subr.mxu0 0.0
    %2274 = vmatpush1.msra.mxu0 0.0
    %2275 = vmatprep.subr.mxu0 0.0
    %2276 = vmatpush1.msra.mxu0 0.0
    %2277 = vmatprep.subr.mxu0 0.0
    %2278 = vmatpush1.msra.mxu0 0.0
    %2279 = vmatprep.subr.mxu0 0.0
    %2280 = vmatpush1.msra.mxu0 0.0
    %2281 = vmatprep.subr.mxu0 0.0
    %2282 = vmatpush1.msra.mxu0 0.0
    %2283 = vmatprep.subr.mxu0 0.0
    %2284 = vmatpush1.msra.mxu0 0.0
    %2285 = vmatprep.subr.mxu0 0.0
    %2286 = vmatpush1.msra.mxu0 0.0
    %2287 = vmatprep.subr.mxu0 0.0
    %2288 = vmatpush1.msra.mxu0 0.0
    %2289 = vmatprep.subr.mxu0 0.0
    %2290 = vmatpush1.msra.mxu0 0.0
    %2291 = vmatprep.subr.mxu0 0.0
    %2292 = vmatpush1.msra.mxu0 0.0
    %2293 = vmatprep.subr.mxu0 0.0
    %2294 = vmatpush1.msra.mxu0 0.0
    %2295 = vmatprep.subr.mxu0 0.0
    %2296 = vmatpush1.msra.mxu0 0.0
    %2297 = vmatprep.subr.mxu0 0.0
    %2298 = vmatpush1.msra.mxu0 0.0
    %2299 = vmatprep.subr.mxu0 0.0
    %2300 = vmatpush1.msra.mxu0 0.0
    %2301 = vmatprep.subr.mxu0 0.0
    %2302 = vmatpush1.msra.mxu0 0.0
    %2303 = vmatprep.subr.mxu0 0.0
    %2304 = vmatpush1.msra.mxu0 0.0
    %2305 = vmatprep.subr.mxu0 0.0
    %2306 = vmatpush1.msra.mxu0 0.0
    %2307 = vmatprep.subr.mxu0 0.0
    %2308 = vmatpush1.msra.mxu0 0.0
    %2309 = vmatprep.mubr.f32.mxu0 0.0
    %2310 = vmatmul.mubr.f32.gmra.mrb[0].mxu0 %v2243
    %v2311 = vpop.f32.mrb[0].mxu0
    %v2312 = vadd.f32 0.0, %v2311
    %v2313 = vpop.f32.mrb[0].mxu0
    %2314 = vdwg.mxu0
    %2315 = vrot.lane.b32.xlu0 %v2058, 64
    %v2316 = vpop.permute.xlu0 %2315
    %v2319 = vsel %vm59, %v2238, 0
    %2321 = vmatprep.subr.mxu0 0.0
    %2322 = vmatpush1.msra.mxu0 %v2316
    %2323 = vmatprep.subr.mxu0 0.0
    %2324 = vmatpush1.msra.mxu0 0.0
    %2325 = vmatprep.subr.mxu0 0.0
    %2326 = vmatpush1.msra.mxu0 0.0
    %2327 = vmatprep.subr.mxu0 0.0
    %2328 = vmatpush1.msra.mxu0 0.0
    %2329 = vmatprep.subr.mxu0 0.0
    %2330 = vmatpush1.msra.mxu0 0.0
    %2331 = vmatprep.subr.mxu0 0.0
    %2332 = vmatpush1.msra.mxu0 0.0
    %2333 = vmatprep.subr.mxu0 0.0
    %2334 = vmatpush1.msra.mxu0 0.0
    %2335 = vmatprep.subr.mxu0 0.0
    %2336 = vmatpush1.msra.mxu0 0.0
    %2337 = vmatprep.subr.mxu0 0.0
    %2338 = vmatpush1.msra.mxu0 0.0
    %2339 = vmatprep.subr.mxu0 0.0
    %2340 = vmatpush1.msra.mxu0 0.0
    %2341 = vmatprep.subr.mxu0 0.0
    %2342 = vmatpush1.msra.mxu0 0.0
    %2343 = vmatprep.subr.mxu0 0.0
    %2344 = vmatpush1.msra.mxu0 0.0
    %2345 = vmatprep.subr.mxu0 0.0
    %2346 = vmatpush1.msra.mxu0 0.0
    %2347 = vmatprep.subr.mxu0 0.0
    %2348 = vmatpush1.msra.mxu0 0.0
    %2349 = vmatprep.subr.mxu0 0.0
    %2350 = vmatpush1.msra.mxu0 0.0
    %2351 = vmatprep.subr.mxu0 0.0
    %2352 = vmatpush1.msra.mxu0 0.0
    %2353 = vmatprep.subr.mxu0 0.0
    %2354 = vmatpush1.msra.mxu0 0.0
    %2355 = vmatprep.subr.mxu0 0.0
    %2356 = vmatpush1.msra.mxu0 0.0
    %2357 = vmatprep.subr.mxu0 0.0
    %2358 = vmatpush1.msra.mxu0 0.0
    %2359 = vmatprep.subr.mxu0 0.0
    %2360 = vmatpush1.msra.mxu0 0.0
    %2361 = vmatprep.subr.mxu0 0.0
    %2362 = vmatpush1.msra.mxu0 0.0
    %2363 = vmatprep.subr.mxu0 0.0
    %2364 = vmatpush1.msra.mxu0 0.0
    %2365 = vmatprep.subr.mxu0 0.0
    %2366 = vmatpush1.msra.mxu0 0.0
    %2367 = vmatprep.subr.mxu0 0.0
    %2368 = vmatpush1.msra.mxu0 0.0
    %2369 = vmatprep.subr.mxu0 0.0
    %2370 = vmatpush1.msra.mxu0 0.0
    %2371 = vmatprep.subr.mxu0 0.0
    %2372 = vmatpush1.msra.mxu0 0.0
    %2373 = vmatprep.subr.mxu0 0.0
    %2374 = vmatpush1.msra.mxu0 0.0
    %2375 = vmatprep.subr.mxu0 0.0
    %2376 = vmatpush1.msra.mxu0 0.0
    %2377 = vmatprep.subr.mxu0 0.0
    %2378 = vmatpush1.msra.mxu0 0.0
    %2379 = vmatprep.subr.mxu0 0.0
    %2380 = vmatpush1.msra.mxu0 0.0
    %2381 = vmatprep.subr.mxu0 0.0
    %2382 = vmatpush1.msra.mxu0 0.0
    %2383 = vmatprep.subr.mxu0 0.0
    %2384 = vmatpush1.msra.mxu0 0.0
    %2385 = vmatprep.mubr.f32.mxu0 0.0
    %2386 = vmatmul.mubr.f32.gmra.mrb[0].mxu0 %v2319
    %v2387 = vpop.f32.mrb[0].mxu0
    %v2388 = vadd.f32 0.0, %v2387
    %v2389 = vpop.f32.mrb[0].mxu0
    %2390 = vdwg.mxu0
    %2391 = vrot.lane.b32.xlu0 %v2053, 120
    %v2392 = vpop.permute.xlu0 %2391
    %2393 = vrot.lane.b32.xlu0 %v2053, 88
    %v2394 = vpop.permute.xlu0 %2393
    %v2395 = vsel %vm59, %v2392, 0
    %v2397 = vsel %vm59, %v2394, 0
    %2399 = vmatprep.subr.mxu0 0.0
    %2400 = vmatpush1.xpose.msra.mxu0 %v2397
    %2401 = vmatprep.subr.mxu0 0.0
    %2402 = vmatpush1.xpose.msra.mxu0 0.0
    %2403 = vmatprep.subr.mxu0 0.0
    %2404 = vmatpush1.xpose.msra.mxu0 0.0
    %2405 = vmatprep.subr.mxu0 0.0
    %2406 = vmatpush1.xpose.msra.mxu0 0.0
    %2407 = vmatprep.subr.mxu0 0.0
    %2408 = vmatpush1.xpose.msra.mxu0 0.0
    %2409 = vmatprep.subr.mxu0 0.0
    %2410 = vmatpush1.xpose.msra.mxu0 0.0
    %2411 = vmatprep.subr.mxu0 0.0
    %2412 = vmatpush1.xpose.msra.mxu0 0.0
    %2413 = vmatprep.subr.mxu0 0.0
    %2414 = vmatpush1.xpose.msra.mxu0 0.0
    %2415 = vmatprep.subr.mxu0 0.0
    %2416 = vmatpush1.xpose.msra.mxu0 0.0
    %2417 = vmatprep.subr.mxu0 0.0
    %2418 = vmatpush1.xpose.msra.mxu0 0.0
    %2419 = vmatprep.subr.mxu0 0.0
    %2420 = vmatpush1.xpose.msra.mxu0 0.0
    %2421 = vmatprep.subr.mxu0 0.0
    %2422 = vmatpush1.xpose.msra.mxu0 0.0
    %2423 = vmatprep.subr.mxu0 0.0
    %2424 = vmatpush1.xpose.msra.mxu0 0.0
    %2425 = vmatprep.subr.mxu0 0.0
    %2426 = vmatpush1.xpose.msra.mxu0 0.0
    %2427 = vmatprep.subr.mxu0 0.0
    %2428 = vmatpush1.xpose.msra.mxu0 0.0
    %2429 = vmatprep.subr.mxu0 0.0
    %2430 = vmatpush1.xpose.msra.mxu0 0.0
    %2431 = vmatprep.subr.mxu0 0.0
    %2432 = vmatpush1.xpose.msra.mxu0 0.0
    %2433 = vmatprep.subr.mxu0 0.0
    %2434 = vmatpush1.xpose.msra.mxu0 0.0
    %2435 = vmatprep.subr.mxu0 0.0
    %2436 = vmatpush1.xpose.msra.mxu0 0.0
    %2437 = vmatprep.subr.mxu0 0.0
    %2438 = vmatpush1.xpose.msra.mxu0 0.0
    %2439 = vmatprep.subr.mxu0 0.0
    %2440 = vmatpush1.xpose.msra.mxu0 0.0
    %2441 = vmatprep.subr.mxu0 0.0
    %2442 = vmatpush1.xpose.msra.mxu0 0.0
    %2443 = vmatprep.subr.mxu0 0.0
    %2444 = vmatpush1.xpose.msra.mxu0 0.0
    %2445 = vmatprep.subr.mxu0 0.0
    %2446 = vmatpush1.xpose.msra.mxu0 0.0
    %2447 = vmatprep.subr.mxu0 0.0
    %2448 = vmatpush1.xpose.msra.mxu0 0.0
    %2449 = vmatprep.subr.mxu0 0.0
    %2450 = vmatpush1.xpose.msra.mxu0 0.0
    %2451 = vmatprep.subr.mxu0 0.0
    %2452 = vmatpush1.xpose.msra.mxu0 0.0
    %2453 = vmatprep.subr.mxu0 0.0
    %2454 = vmatpush1.xpose.msra.mxu0 0.0
    %2455 = vmatprep.subr.mxu0 0.0
    %2456 = vmatpush1.xpose.msra.mxu0 0.0
    %2457 = vmatprep.subr.mxu0 0.0
    %2458 = vmatpush1.xpose.msra.mxu0 0.0
    %2459 = vmatprep.subr.mxu0 0.0
    %2460 = vmatpush1.xpose.msra.mxu0 0.0
    %2461 = vmatprep.subr.mxu0 0.0
    %2462 = vmatpush1.xpose.msra.mxu0 0.0
    %2463 = vmatprep.mubr.f32.mxu0 0.0
    %2464 = vmatmul.mubr.f32.gmra.mrb[0].mxu0 %v2395
    %v2465 = vpop.f32.mrb[0].mxu0
    %v2466 = vadd.f32 0.0, %v2465
    %v2467 = vpop.f32.mrb[0].mxu0
    %2468 = vdwg.mxu0
    %2469 = vrot.lane.b32.xlu0 %v2058, 120
    %v2470 = vpop.permute.xlu0 %2469
    %2471 = vrot.lane.b32.xlu0 %v2058, 88
    %v2472 = vpop.permute.xlu0 %2471
    %v2473 = vsel %vm59, %v2470, 0
    %v2475 = vsel %vm59, %v2472, 0
    %2477 = vmatprep.subr.mxu0 0.0
    %2478 = vmatpush1.xpose.msra.mxu0 %v2475
    %2479 = vmatprep.subr.mxu0 0.0
    %2480 = vmatpush1.xpose.msra.mxu0 0.0
    %2481 = vmatprep.subr.mxu0 0.0
    %2482 = vmatpush1.xpose.msra.mxu0 0.0
    %2483 = vmatprep.subr.mxu0 0.0
    %2484 = vmatpush1.xpose.msra.mxu0 0.0
    %2485 = vmatprep.subr.mxu0 0.0
    %2486 = vmatpush1.xpose.msra.mxu0 0.0
    %2487 = vmatprep.subr.mxu0 0.0
    %2488 = vmatpush1.xpose.msra.mxu0 0.0
    %2489 = vmatprep.subr.mxu0 0.0
    %2490 = vmatpush1.xpose.msra.mxu0 0.0
    %2491 = vmatprep.subr.mxu0 0.0
    %2492 = vmatpush1.xpose.msra.mxu0 0.0
    %2493 = vmatprep.subr.mxu0 0.0
    %2494 = vmatpush1.xpose.msra.mxu0 0.0
    %2495 = vmatprep.subr.mxu0 0.0
    %2496 = vmatpush1.xpose.msra.mxu0 0.0
    %2497 = vmatprep.subr.mxu0 0.0
    %2498 = vmatpush1.xpose.msra.mxu0 0.0
    %2499 = vmatprep.subr.mxu0 0.0
    %2500 = vmatpush1.xpose.msra.mxu0 0.0
    %2501 = vmatprep.subr.mxu0 0.0
    %2502 = vmatpush1.xpose.msra.mxu0 0.0
    %2503 = vmatprep.subr.mxu0 0.0
    %2504 = vmatpush1.xpose.msra.mxu0 0.0
    %2505 = vmatprep.subr.mxu0 0.0
    %2506 = vmatpush1.xpose.msra.mxu0 0.0
    %2507 = vmatprep.subr.mxu0 0.0
    %2508 = vmatpush1.xpose.msra.mxu0 0.0
    %2509 = vmatprep.subr.mxu0 0.0
    %2510 = vmatpush1.xpose.msra.mxu0 0.0
    %2511 = vmatprep.subr.mxu0 0.0
    %2512 = vmatpush1.xpose.msra.mxu0 0.0
    %2513 = vmatprep.subr.mxu0 0.0
    %2514 = vmatpush1.xpose.msra.mxu0 0.0
    %2515 = vmatprep.subr.mxu0 0.0
    %2516 = vmatpush1.xpose.msra.mxu0 0.0
    %2517 = vmatprep.subr.mxu0 0.0
    %2518 = vmatpush1.xpose.msra.mxu0 0.0
    %2519 = vmatprep.subr.mxu0 0.0
    %2520 = vmatpush1.xpose.msra.mxu0 0.0
    %2521 = vmatprep.subr.mxu0 0.0
    %2522 = vmatpush1.xpose.msra.mxu0 0.0
    %2523 = vmatprep.subr.mxu0 0.0
    %2524 = vmatpush1.xpose.msra.mxu0 0.0
    %2525 = vmatprep.subr.mxu0 0.0
    %2526 = vmatpush1.xpose.msra.mxu0 0.0
    %2527 = vmatprep.subr.mxu0 0.0
    %2528 = vmatpush1.xpose.msra.mxu0 0.0
    %2529 = vmatprep.subr.mxu0 0.0
    %2530 = vmatpush1.xpose.msra.mxu0 0.0
    %2531 = vmatprep.subr.mxu0 0.0
    %2532 = vmatpush1.xpose.msra.mxu0 0.0
    %2533 = vmatprep.subr.mxu0 0.0
    %2534 = vmatpush1.xpose.msra.mxu0 0.0
    %2535 = vmatprep.subr.mxu0 0.0
    %2536 = vmatpush1.xpose.msra.mxu0 0.0
    %2537 = vmatprep.subr.mxu0 0.0
    %2538 = vmatpush1.xpose.msra.mxu0 0.0
    %2539 = vmatprep.subr.mxu0 0.0
    %2540 = vmatpush1.xpose.msra.mxu0 0.0
    %2541 = vmatprep.mubr.f32.mxu0 0.0
    %2542 = vmatmul.mubr.f32.gmra.mrb[0].mxu0 %v2473
    %v2543 = vpop.f32.mrb[0].mxu0
    %v2544 = vadd.f32 0.0, %v2543
    %v2545 = vpop.f32.mrb[0].mxu0
    %2546 = vdwg.mxu0
    %v2547 = vmul.f32 %v2466, 0.35355338
    %v2548 = vmul.f32 %v2544, 0.35355338
    %v2549 = vsel %vm59, %v2547, -inf
    %2550 = vmax.xlane.f32.xlu0 %v2549
    %v2551 = vpop.xlane.xlu0 %2550
    %v2552 = vsel %vm59, %v2548, -inf
    %2553 = vmax.xlane.f32.xlu0 %v2552
    %v2554 = vpop.xlane.xlu0 %2553
    %v2555 = vsub.f32 %v2547, %v2551
    %v2556 = vsub.f32 %v2548, %v2554
    %v2557 = vmul.f32 %v2555, 1.442695
    %v2558 = vpow.pop %v2557
    %v2559 = vmul.f32 %v2556, 1.442695
    %v2560 = vpow.pop %v2559
    %v2561 = vsel %vm59, %v2558, 0.0
    %2562 = vadd.xlane.f32.xlu0 %v2561
    %v2563 = vpop.xlane.xlu0 %2562
    %v2564 = vsel %vm59, %v2560, 0.0
    %2565 = vadd.xlane.f32.xlu0 %v2564
    %v2566 = vpop.xlane.xlu0 %2565
    %v2567 = vrcp.pop %v2563
    %v2568 = vmul.f32 %v2558, %v2567
    %v2569 = vrcp.pop %v2566
    %v2570 = vmul.f32 %v2560, %v2569
    %2571 = vrot.lane.b32.xlu0 %v2053, 56
    %v2572 = vpop.permute.xlu0 %2571
    %v2575 = vsel %vm59, %v2568, 0
    %2577 = vmatprep.subr.mxu0 0.0
    %2578 = vmatpush1.msra.mxu0 %v2572
    %2579 = vmatprep.subr.mxu0 0.0
    %2580 = vmatpush1.msra.mxu0 0.0
    %2581 = vmatprep.subr.mxu0 0.0
    %2582 = vmatpush1.msra.mxu0 0.0
    %2583 = vmatprep.subr.mxu0 0.0
    %2584 = vmatpush1.msra.mxu0 0.0
    %2585 = vmatprep.subr.mxu0 0.0
    %2586 = vmatpush1.msra.mxu0 0.0
    %2587 = vmatprep.subr.mxu0 0.0
    %2588 = vmatpush1.msra.mxu0 0.0
    %2589 = vmatprep.subr.mxu0 0.0
    %2590 = vmatpush1.msra.mxu0 0.0
    %2591 = vmatprep.subr.mxu0 0.0
    %2592 = vmatpush1.msra.mxu0 0.0
    %2593 = vmatprep.subr.mxu0 0.0
    %2594 = vmatpush1.msra.mxu0 0.0
    %2595 = vmatprep.subr.mxu0 0.0
    %2596 = vmatpush1.msra.mxu0 0.0
    %2597 = vmatprep.subr.mxu0 0.0
    %2598 = vmatpush1.msra.mxu0 0.0
    %2599 = vmatprep.subr.mxu0 0.0
    %2600 = vmatpush1.msra.mxu0 0.0
    %2601 = vmatprep.subr.mxu0 0.0
    %2602 = vmatpush1.msra.mxu0 0.0
    %2603 = vmatprep.subr.mxu0 0.0
    %2604 = vmatpush1.msra.mxu0 0.0
    %2605 = vmatprep.subr.mxu0 0.0
    %2606 = vmatpush1.msra.mxu0 0.0
    %2607 = vmatprep.subr.mxu0 0.0
    %2608 = vmatpush1.msra.mxu0 0.0
    %2609 = vmatprep.subr.mxu0 0.0
    %2610 = vmatpush1.msra.mxu0 0.0
    %2611 = vmatprep.subr.mxu0 0.0
    %2612 = vmatpush1.msra.mxu0 0.0
    %2613 = vmatprep.subr.mxu0 0.0
    %2614 = vmatpush1.msra.mxu0 0.0
    %2615 = vmatprep.subr.mxu0 0.0
    %2616 = vmatpush1.msra.mxu0 0.0
    %2617 = vmatprep.subr.mxu0 0.0
    %2618 = vmatpush1.msra.mxu0 0.0
    %2619 = vmatprep.subr.mxu0 0.0
    %2620 = vmatpush1.msra.mxu0 0.0
    %2621 = vmatprep.subr.mxu0 0.0
    %2622 = vmatpush1.msra.mxu0 0.0
    %2623 = vmatprep.subr.mxu0 0.0
    %2624 = vmatpush1.msra.mxu0 0.0
    %2625 = vmatprep.subr.mxu0 0.0
    %2626 = vmatpush1.msra.mxu0 0.0
    %2627 = vmatprep.subr.mxu0 0.0
    %2628 = vmatpush1.msra.mxu0 0.0
    %2629 = vmatprep.subr.mxu0 0.0
    %2630 = vmatpush1.msra.mxu0 0.0
    %2631 = vmatprep.subr.mxu0 0.0
    %2632 = vmatpush1.msra.mxu0 0.0
    %2633 = vmatprep.subr.mxu0 0.0
    %2634 = vmatpush1.msra.mxu0 0.0
    %2635 = vmatprep.subr.mxu0 0.0
    %2636 = vmatpush1.msra.mxu0 0.0
    %2637 = vmatprep.subr.mxu0 0.0
    %2638 = vmatpush1.msra.mxu0 0.0
    %2639 = vmatprep.subr.mxu0 0.0
    %2640 = vmatpush1.msra.mxu0 0.0
    %2641 = vmatprep.mubr.f32.mxu0 0.0
    %2642 = vmatmul.mubr.f32.gmra.mrb[0].mxu0 %v2575
    %v2643 = vpop.f32.mrb[0].mxu0
    %v2644 = vadd.f32 0.0, %v2643
    %v2645 = vpop.f32.mrb[0].mxu0
    %2646 = vdwg.mxu0
    %2647 = vrot.lane.b32.xlu0 %v2058, 56
    %v2648 = vpop.permute.xlu0 %2647
    %v2651 = vsel %vm59, %v2570, 0
    %2653 = vmatprep.subr.mxu0 0.0
    %2654 = vmatpush1.msra.mxu0 %v2648
    %2655 = vmatprep.subr.mxu0 0.0
    %2656 = vmatpush1.msra.mxu0 0.0
    %2657 = vmatprep.subr.mxu0 0.0
    %2658 = vmatpush1.msra.mxu0 0.0
    %2659 = vmatprep.subr.mxu0 0.0
    %2660 = vmatpush1.msra.mxu0 0.0
    %2661 = vmatprep.subr.mxu0 0.0
    %2662 = vmatpush1.msra.mxu0 0.0
    %2663 = vmatprep.subr.mxu0 0.0
    %2664 = vmatpush1.msra.mxu0 0.0
    %2665 = vmatprep.subr.mxu0 0.0
    %2666 = vmatpush1.msra.mxu0 0.0
    %2667 = vmatprep.subr.mxu0 0.0
    %2668 = vmatpush1.msra.mxu0 0.0
    %2669 = vmatprep.subr.mxu0 0.0
    %2670 = vmatpush1.msra.mxu0 0.0
    %2671 = vmatprep.subr.mxu0 0.0
    %2672 = vmatpush1.msra.mxu0 0.0
    %2673 = vmatprep.subr.mxu0 0.0
    %2674 = vmatpush1.msra.mxu0 0.0
    %2675 = vmatprep.subr.mxu0 0.0
    %2676 = vmatpush1.msra.mxu0 0.0
    %2677 = vmatprep.subr.mxu0 0.0
    %2678 = vmatpush1.msra.mxu0 0.0
    %2679 = vmatprep.subr.mxu0 0.0
    %2680 = vmatpush1.msra.mxu0 0.0
    %2681 = vmatprep.subr.mxu0 0.0
    %2682 = vmatpush1.msra.mxu0 0.0
    %2683 = vmatprep.subr.mxu0 0.0
    %2684 = vmatpush1.msra.mxu0 0.0
    %2685 = vmatprep.subr.mxu0 0.0
    %2686 = vmatpush1.msra.mxu0 0.0
    %2687 = vmatprep.subr.mxu0 0.0
    %2688 = vmatpush1.msra.mxu0 0.0
    %2689 = vmatprep.subr.mxu0 0.0
    %2690 = vmatpush1.msra.mxu0 0.0
    %2691 = vmatprep.subr.mxu0 0.0
    %2692 = vmatpush1.msra.mxu0 0.0
    %2693 = vmatprep.subr.mxu0 0.0
    %2694 = vmatpush1.msra.mxu0 0.0
    %2695 = vmatprep.subr.mxu0 0.0
    %2696 = vmatpush1.msra.mxu0 0.0
    %2697 = vmatprep.subr.mxu0 0.0
    %2698 = vmatpush1.msra.mxu0 0.0
    %2699 = vmatprep.subr.mxu0 0.0
    %2700 = vmatpush1.msra.mxu0 0.0
    %2701 = vmatprep.subr.mxu0 0.0
    %2702 = vmatpush1.msra.mxu0 0.0
    %2703 = vmatprep.subr.mxu0 0.0
    %2704 = vmatpush1.msra.mxu0 0.0
    %2705 = vmatprep.subr.mxu0 0.0
    %2706 = vmatpush1.msra.mxu0 0.0
    %2707 = vmatprep.subr.mxu0 0.0
    %2708 = vmatpush1.msra.mxu0 0.0
    %2709 = vmatprep.subr.mxu0 0.0
    %2710 = vmatpush1.msra.mxu0 0.0
    %2711 = vmatprep.subr.mxu0 0.0
    %2712 = vmatpush1.msra.mxu0 0.0
    %2713 = vmatprep.subr.mxu0 0.0
    %2714 = vmatpush1.msra.mxu0 0.0
    %2715 = vmatprep.subr.mxu0 0.0
    %2716 = vmatpush1.msra.mxu0 0.0
    %2717 = vmatprep.mubr.f32.mxu0 0.0
    %2718 = vmatmul.mubr.f32.gmra.mrb[0].mxu0 %v2651
    %v2719 = vpop.f32.mrb[0].mxu0
    %v2720 = vadd.f32 0.0, %v2719
    %v2721 = vpop.f32.mrb[0].mxu0
    %2722 = vdwg.mxu0
    %2723 = vrot.lane.b32.xlu0 %v2053, 112
    %v2724 = vpop.permute.xlu0 %2723
    %2725 = vrot.lane.b32.xlu0 %v2053, 80
    %v2726 = vpop.permute.xlu0 %2725
    %v2727 = vsel %vm59, %v2724, 0
    %v2729 = vsel %vm59, %v2726, 0
    %2731 = vmatprep.subr.mxu0 0.0
    %2732 = vmatpush1.xpose.msra.mxu0 %v2729
    %2733 = vmatprep.subr.mxu0 0.0
    %2734 = vmatpush1.xpose.msra.mxu0 0.0
    %2735 = vmatprep.subr.mxu0 0.0
    %2736 = vmatpush1.xpose.msra.mxu0 0.0
    %2737 = vmatprep.subr.mxu0 0.0
    %2738 = vmatpush1.xpose.msra.mxu0 0.0
    %2739 = vmatprep.subr.mxu0 0.0
    %2740 = vmatpush1.xpose.msra.mxu0 0.0
    %2741 = vmatprep.subr.mxu0 0.0
    %2742 = vmatpush1.xpose.msra.mxu0 0.0
    %2743 = vmatprep.subr.mxu0 0.0
    %2744 = vmatpush1.xpose.msra.mxu0 0.0
    %2745 = vmatprep.subr.mxu0 0.0
    %2746 = vmatpush1.xpose.msra.mxu0 0.0
    %2747 = vmatprep.subr.mxu0 0.0
    %2748 = vmatpush1.xpose.msra.mxu0 0.0
    %2749 = vmatprep.subr.mxu0 0.0
    %2750 = vmatpush1.xpose.msra.mxu0 0.0
    %2751 = vmatprep.subr.mxu0 0.0
    %2752 = vmatpush1.xpose.msra.mxu0 0.0
    %2753 = vmatprep.subr.mxu0 0.0
    %2754 = vmatpush1.xpose.msra.mxu0 0.0
    %2755 = vmatprep.subr.mxu0 0.0
    %2756 = vmatpush1.xpose.msra.mxu0 0.0
    %2757 = vmatprep.subr.mxu0 0.0
    %2758 = vmatpush1.xpose.msra.mxu0 0.0
    %2759 = vmatprep.subr.mxu0 0.0
    %2760 = vmatpush1.xpose.msra.mxu0 0.0
    %2761 = vmatprep.subr.mxu0 0.0
    %2762 = vmatpush1.xpose.msra.mxu0 0.0
    %2763 = vmatprep.subr.mxu0 0.0
    %2764 = vmatpush1.xpose.msra.mxu0 0.0
    %2765 = vmatprep.subr.mxu0 0.0
    %2766 = vmatpush1.xpose.msra.mxu0 0.0
    %2767 = vmatprep.subr.mxu0 0.0
    %2768 = vmatpush1.xpose.msra.mxu0 0.0
    %2769 = vmatprep.subr.mxu0 0.0
    %2770 = vmatpush1.xpose.msra.mxu0 0.0
    %2771 = vmatprep.subr.mxu0 0.0
    %2772 = vmatpush1.xpose.msra.mxu0 0.0
    %2773 = vmatprep.subr.mxu0 0.0
    %2774 = vmatpush1.xpose.msra.mxu0 0.0
    %2775 = vmatprep.subr.mxu0 0.0
    %2776 = vmatpush1.xpose.msra.mxu0 0.0
    %2777 = vmatprep.subr.mxu0 0.0
    %2778 = vmatpush1.xpose.msra.mxu0 0.0
    %2779 = vmatprep.subr.mxu0 0.0
    %2780 = vmatpush1.xpose.msra.mxu0 0.0
    %2781 = vmatprep.subr.mxu0 0.0
    %2782 = vmatpush1.xpose.msra.mxu0 0.0
    %2783 = vmatprep.subr.mxu0 0.0
    %2784 = vmatpush1.xpose.msra.mxu0 0.0
    %2785 = vmatprep.subr.mxu0 0.0
    %2786 = vmatpush1.xpose.msra.mxu0 0.0
    %2787 = vmatprep.subr.mxu0 0.0
    %2788 = vmatpush1.xpose.msra.mxu0 0.0
    %2789 = vmatprep.subr.mxu0 0.0
    %2790 = vmatpush1.xpose.msra.mxu0 0.0
    %2791 = vmatprep.subr.mxu0 0.0
    %2792 = vmatpush1.xpose.msra.mxu0 0.0
    %2793 = vmatprep.subr.mxu0 0.0
    %2794 = vmatpush1.xpose.msra.mxu0 0.0
    %2795 = vmatprep.mubr.f32.mxu0 0.0
    %2796 = vmatmul.mubr.f32.gmra.mrb[0].mxu0 %v2727
    %v2797 = vpop.f32.mrb[0].mxu0
    %v2798 = vadd.f32 0.0, %v2797
    %v2799 = vpop.f32.mrb[0].mxu0
    %2800 = vdwg.mxu0
    %2801 = vrot.lane.b32.xlu0 %v2058, 112
    %v2802 = vpop.permute.xlu0 %2801
    %2803 = vrot.lane.b32.xlu0 %v2058, 80
    %v2804 = vpop.permute.xlu0 %2803
    %v2805 = vsel %vm59, %v2802, 0
    %v2807 = vsel %vm59, %v2804, 0
    %2809 = vmatprep.subr.mxu0 0.0
    %2810 = vmatpush1.xpose.msra.mxu0 %v2807
    %2811 = vmatprep.subr.mxu0 0.0
    %2812 = vmatpush1.xpose.msra.mxu0 0.0
    %2813 = vmatprep.subr.mxu0 0.0
    %2814 = vmatpush1.xpose.msra.mxu0 0.0
    %2815 = vmatprep.subr.mxu0 0.0
    %2816 = vmatpush1.xpose.msra.mxu0 0.0
    %2817 = vmatprep.subr.mxu0 0.0
    %2818 = vmatpush1.xpose.msra.mxu0 0.0
    %2819 = vmatprep.subr.mxu0 0.0
    %2820 = vmatpush1.xpose.msra.mxu0 0.0
    %2821 = vmatprep.subr.mxu0 0.0
    %2822 = vmatpush1.xpose.msra.mxu0 0.0
    %2823 = vmatprep.subr.mxu0 0.0
    %2824 = vmatpush1.xpose.msra.mxu0 0.0
    %2825 = vmatprep.subr.mxu0 0.0
    %2826 = vmatpush1.xpose.msra.mxu0 0.0
    %2827 = vmatprep.subr.mxu0 0.0
    %2828 = vmatpush1.xpose.msra.mxu0 0.0
    %2829 = vmatprep.subr.mxu0 0.0
    %2830 = vmatpush1.xpose.msra.mxu0 0.0
    %2831 = vmatprep.subr.mxu0 0.0
    %2832 = vmatpush1.xpose.msra.mxu0 0.0
    %2833 = vmatprep.subr.mxu0 0.0
    %2834 = vmatpush1.xpose.msra.mxu0 0.0
    %2835 = vmatprep.subr.mxu0 0.0
    %2836 = vmatpush1.xpose.msra.mxu0 0.0
    %2837 = vmatprep.subr.mxu0 0.0
    %2838 = vmatpush1.xpose.msra.mxu0 0.0
    %2839 = vmatprep.subr.mxu0 0.0
    %2840 = vmatpush1.xpose.msra.mxu0 0.0
    %2841 = vmatprep.subr.mxu0 0.0
    %2842 = vmatpush1.xpose.msra.mxu0 0.0
    %2843 = vmatprep.subr.mxu0 0.0
    %2844 = vmatpush1.xpose.msra.mxu0 0.0
    %2845 = vmatprep.subr.mxu0 0.0
    %2846 = vmatpush1.xpose.msra.mxu0 0.0
    %2847 = vmatprep.subr.mxu0 0.0
    %2848 = vmatpush1.xpose.msra.mxu0 0.0
    %2849 = vmatprep.subr.mxu0 0.0
    %2850 = vmatpush1.xpose.msra.mxu0 0.0
    %2851 = vmatprep.subr.mxu0 0.0
    %2852 = vmatpush1.xpose.msra.mxu0 0.0
    %2853 = vmatprep.subr.mxu0 0.0
    %2854 = vmatpush1.xpose.msra.mxu0 0.0
    %2855 = vmatprep.subr.mxu0 0.0
    %2856 = vmatpush1.xpose.msra.mxu0 0.0
    %2857 = vmatprep.subr.mxu0 0.0
    %2858 = vmatpush1.xpose.msra.mxu0 0.0
    %2859 = vmatprep.subr.mxu0 0.0
    %2860 = vmatpush1.xpose.msra.mxu0 0.0
    %2861 = vmatprep.subr.mxu0 0.0
    %2862 = vmatpush1.xpose.msra.mxu0 0.0
    %2863 = vmatprep.subr.mxu0 0.0
    %2864 = vmatpush1.xpose.msra.mxu0 0.0
    %2865 = vmatprep.subr.mxu0 0.0
    %2866 = vmatpush1.xpose.msra.mxu0 0.0
    %2867 = vmatprep.subr.mxu0 0.0
    %2868 = vmatpush1.xpose.msra.mxu0 0.0
    %2869 = vmatprep.subr.mxu0 0.0
    %2870 = vmatpush1.xpose.msra.mxu0 0.0
    %2871 = vmatprep.subr.mxu0 0.0
    %2872 = vmatpush1.xpose.msra.mxu0 0.0
    %2873 = vmatprep.mubr.f32.mxu0 0.0
    %2874 = vmatmul.mubr.f32.gmra.mrb[0].mxu0 %v2805
    %v2875 = vpop.f32.mrb[0].mxu0
    %v2876 = vadd.f32 0.0, %v2875
    %v2877 = vpop.f32.mrb[0].mxu0
    %2878 = vdwg.mxu0
    %v2879 = vmul.f32 %v2798, 0.35355338
    %v2880 = vmul.f32 %v2876, 0.35355338
    %v2881 = vsel %vm59, %v2879, -inf
    %2882 = vmax.xlane.f32.xlu0 %v2881
    %v2883 = vpop.xlane.xlu0 %2882
    %v2884 = vsel %vm59, %v2880, -inf
    %2885 = vmax.xlane.f32.xlu0 %v2884
    %v2886 = vpop.xlane.xlu0 %2885
    %v2887 = vsub.f32 %v2879, %v2883
    %v2888 = vsub.f32 %v2880, %v2886
    %v2889 = vmul.f32 %v2887, 1.442695
    %v2890 = vpow.pop %v2889
    %v2891 = vmul.f32 %v2888, 1.442695
    %v2892 = vpow.pop %v2891
    %v2893 = vsel %vm59, %v2890, 0.0
    %2894 = vadd.xlane.f32.xlu0 %v2893
    %v2895 = vpop.xlane.xlu0 %2894
    %v2896 = vsel %vm59, %v2892, 0.0
    %2897 = vadd.xlane.f32.xlu0 %v2896
    %v2898 = vpop.xlane.xlu0 %2897
    %v2899 = vrcp.pop %v2895
    %v2900 = vmul.f32 %v2890, %v2899
    %v2901 = vrcp.pop %v2898
    %v2902 = vmul.f32 %v2892, %v2901
    %2903 = vrot.lane.b32.xlu0 %v2053, 48
    %v2904 = vpop.permute.xlu0 %2903
    %v2907 = vsel %vm59, %v2900, 0
    %2909 = vmatprep.subr.mxu0 0.0
    %2910 = vmatpush1.msra.mxu0 %v2904
    %2911 = vmatprep.subr.mxu0 0.0
    %2912 = vmatpush1.msra.mxu0 0.0
    %2913 = vmatprep.subr.mxu0 0.0
    %2914 = vmatpush1.msra.mxu0 0.0
    %2915 = vmatprep.subr.mxu0 0.0
    %2916 = vmatpush1.msra.mxu0 0.0
    %2917 = vmatprep.subr.mxu0 0.0
    %2918 = vmatpush1.msra.mxu0 0.0
    %2919 = vmatprep.subr.mxu0 0.0
    %2920 = vmatpush1.msra.mxu0 0.0
    %2921 = vmatprep.subr.mxu0 0.0
    %2922 = vmatpush1.msra.mxu0 0.0
    %2923 = vmatprep.subr.mxu0 0.0
    %2924 = vmatpush1.msra.mxu0 0.0
    %2925 = vmatprep.subr.mxu0 0.0
    %2926 = vmatpush1.msra.mxu0 0.0
    %2927 = vmatprep.subr.mxu0 0.0
    %2928 = vmatpush1.msra.mxu0 0.0
    %2929 = vmatprep.subr.mxu0 0.0
    %2930 = vmatpush1.msra.mxu0 0.0
    %2931 = vmatprep.subr.mxu0 0.0
    %2932 = vmatpush1.msra.mxu0 0.0
    %2933 = vmatprep.subr.mxu0 0.0
    %2934 = vmatpush1.msra.mxu0 0.0
    %2935 = vmatprep.subr.mxu0 0.0
    %2936 = vmatpush1.msra.mxu0 0.0
    %2937 = vmatprep.subr.mxu0 0.0
    %2938 = vmatpush1.msra.mxu0 0.0
    %2939 = vmatprep.subr.mxu0 0.0
    %2940 = vmatpush1.msra.mxu0 0.0
    %2941 = vmatprep.subr.mxu0 0.0
    %2942 = vmatpush1.msra.mxu0 0.0
    %2943 = vmatprep.subr.mxu0 0.0
    %2944 = vmatpush1.msra.mxu0 0.0
    %2945 = vmatprep.subr.mxu0 0.0
    %2946 = vmatpush1.msra.mxu0 0.0
    %2947 = vmatprep.subr.mxu0 0.0
    %2948 = vmatpush1.msra.mxu0 0.0
    %2949 = vmatprep.subr.mxu0 0.0
    %2950 = vmatpush1.msra.mxu0 0.0
    %2951 = vmatprep.subr.mxu0 0.0
    %2952 = vmatpush1.msra.mxu0 0.0
    %2953 = vmatprep.subr.mxu0 0.0
    %2954 = vmatpush1.msra.mxu0 0.0
    %2955 = vmatprep.subr.mxu0 0.0
    %2956 = vmatpush1.msra.mxu0 0.0
    %2957 = vmatprep.subr.mxu0 0.0
    %2958 = vmatpush1.msra.mxu0 0.0
    %2959 = vmatprep.subr.mxu0 0.0
    %2960 = vmatpush1.msra.mxu0 0.0
    %2961 = vmatprep.subr.mxu0 0.0
    %2962 = vmatpush1.msra.mxu0 0.0
    %2963 = vmatprep.subr.mxu0 0.0
    %2964 = vmatpush1.msra.mxu0 0.0
    %2965 = vmatprep.subr.mxu0 0.0
    %2966 = vmatpush1.msra.mxu0 0.0
    %2967 = vmatprep.subr.mxu0 0.0
    %2968 = vmatpush1.msra.mxu0 0.0
    %2969 = vmatprep.subr.mxu0 0.0
    %2970 = vmatpush1.msra.mxu0 0.0
    %2971 = vmatprep.subr.mxu0 0.0
    %2972 = vmatpush1.msra.mxu0 0.0
    %2973 = vmatprep.mubr.f32.mxu0 0.0
    %2974 = vmatmul.mubr.f32.gmra.mrb[0].mxu0 %v2907
    %v2975 = vpop.f32.mrb[0].mxu0
    %v2976 = vadd.f32 0.0, %v2975
    %v2977 = vpop.f32.mrb[0].mxu0
    %2978 = vdwg.mxu0
    %2979 = vrot.lane.b32.xlu0 %v2058, 48
    %v2980 = vpop.permute.xlu0 %2979
    %v2983 = vsel %vm59, %v2902, 0
    %2985 = vmatprep.subr.mxu0 0.0
    %2986 = vmatpush1.msra.mxu0 %v2980
    %2987 = vmatprep.subr.mxu0 0.0
    %2988 = vmatpush1.msra.mxu0 0.0
    %2989 = vmatprep.subr.mxu0 0.0
    %2990 = vmatpush1.msra.mxu0 0.0
    %2991 = vmatprep.subr.mxu0 0.0
    %2992 = vmatpush1.msra.mxu0 0.0
    %2993 = vmatprep.subr.mxu0 0.0
    %2994 = vmatpush1.msra.mxu0 0.0
    %2995 = vmatprep.subr.mxu0 0.0
    %2996 = vmatpush1.msra.mxu0 0.0
    %2997 = vmatprep.subr.mxu0 0.0
    %2998 = vmatpush1.msra.mxu0 0.0
    %2999 = vmatprep.subr.mxu0 0.0
    %3000 = vmatpush1.msra.mxu0 0.0
    %3001 = vmatprep.subr.mxu0 0.0
    %3002 = vmatpush1.msra.mxu0 0.0
    %3003 = vmatprep.subr.mxu0 0.0
    %3004 = vmatpush1.msra.mxu0 0.0
    %3005 = vmatprep.subr.mxu0 0.0
    %3006 = vmatpush1.msra.mxu0 0.0
    %3007 = vmatprep.subr.mxu0 0.0
    %3008 = vmatpush1.msra.mxu0 0.0
    %3009 = vmatprep.subr.mxu0 0.0
    %3010 = vmatpush1.msra.mxu0 0.0
    %3011 = vmatprep.subr.mxu0 0.0
    %3012 = vmatpush1.msra.mxu0 0.0
    %3013 = vmatprep.subr.mxu0 0.0
    %3014 = vmatpush1.msra.mxu0 0.0
    %3015 = vmatprep.subr.mxu0 0.0
    %3016 = vmatpush1.msra.mxu0 0.0
    %3017 = vmatprep.subr.mxu0 0.0
    %3018 = vmatpush1.msra.mxu0 0.0
    %3019 = vmatprep.subr.mxu0 0.0
    %3020 = vmatpush1.msra.mxu0 0.0
    %3021 = vmatprep.subr.mxu0 0.0
    %3022 = vmatpush1.msra.mxu0 0.0
    %3023 = vmatprep.subr.mxu0 0.0
    %3024 = vmatpush1.msra.mxu0 0.0
    %3025 = vmatprep.subr.mxu0 0.0
    %3026 = vmatpush1.msra.mxu0 0.0
    %3027 = vmatprep.subr.mxu0 0.0
    %3028 = vmatpush1.msra.mxu0 0.0
    %3029 = vmatprep.subr.mxu0 0.0
    %3030 = vmatpush1.msra.mxu0 0.0
    %3031 = vmatprep.subr.mxu0 0.0
    %3032 = vmatpush1.msra.mxu0 0.0
    %3033 = vmatprep.subr.mxu0 0.0
    %3034 = vmatpush1.msra.mxu0 0.0
    %3035 = vmatprep.subr.mxu0 0.0
    %3036 = vmatpush1.msra.mxu0 0.0
    %3037 = vmatprep.subr.mxu0 0.0
    %3038 = vmatpush1.msra.mxu0 0.0
    %3039 = vmatprep.subr.mxu0 0.0
    %3040 = vmatpush1.msra.mxu0 0.0
    %3041 = vmatprep.subr.mxu0 0.0
    %3042 = vmatpush1.msra.mxu0 0.0
    %3043 = vmatprep.subr.mxu0 0.0
    %3044 = vmatpush1.msra.mxu0 0.0
    %3045 = vmatprep.subr.mxu0 0.0
    %3046 = vmatpush1.msra.mxu0 0.0
    %3047 = vmatprep.subr.mxu0 0.0
    %3048 = vmatpush1.msra.mxu0 0.0
    %3049 = vmatprep.mubr.f32.mxu0 0.0
    %3050 = vmatmul.mubr.f32.gmra.mrb[0].mxu0 %v2983
    %v3051 = vpop.f32.mrb[0].mxu0
    %v3052 = vadd.f32 0.0, %v3051
    %v3053 = vpop.f32.mrb[0].mxu0
    %3054 = vdwg.mxu0
    %3055 = vrot.lane.b32.xlu0 %v2053, 104
    %v3056 = vpop.permute.xlu0 %3055
    %3057 = vrot.lane.b32.xlu0 %v2053, 72
    %v3058 = vpop.permute.xlu0 %3057
    %v3059 = vsel %vm59, %v3056, 0
    %v3061 = vsel %vm59, %v3058, 0
    %3063 = vmatprep.subr.mxu0 0.0
    %3064 = vmatpush1.xpose.msra.mxu0 %v3061
    %3065 = vmatprep.subr.mxu0 0.0
    %3066 = vmatpush1.xpose.msra.mxu0 0.0
    %3067 = vmatprep.subr.mxu0 0.0
    %3068 = vmatpush1.xpose.msra.mxu0 0.0
    %3069 = vmatprep.subr.mxu0 0.0
    %3070 = vmatpush1.xpose.msra.mxu0 0.0
    %3071 = vmatprep.subr.mxu0 0.0
    %3072 = vmatpush1.xpose.msra.mxu0 0.0
    %3073 = vmatprep.subr.mxu0 0.0
    %3074 = vmatpush1.xpose.msra.mxu0 0.0
    %3075 = vmatprep.subr.mxu0 0.0
    %3076 = vmatpush1.xpose.msra.mxu0 0.0
    %3077 = vmatprep.subr.mxu0 0.0
    %3078 = vmatpush1.xpose.msra.mxu0 0.0
    %3079 = vmatprep.subr.mxu0 0.0
    %3080 = vmatpush1.xpose.msra.mxu0 0.0
    %3081 = vmatprep.subr.mxu0 0.0
    %3082 = vmatpush1.xpose.msra.mxu0 0.0
    %3083 = vmatprep.subr.mxu0 0.0
    %3084 = vmatpush1.xpose.msra.mxu0 0.0
    %3085 = vmatprep.subr.mxu0 0.0
    %3086 = vmatpush1.xpose.msra.mxu0 0.0
    %3087 = vmatprep.subr.mxu0 0.0
    %3088 = vmatpush1.xpose.msra.mxu0 0.0
    %3089 = vmatprep.subr.mxu0 0.0
    %3090 = vmatpush1.xpose.msra.mxu0 0.0
    %3091 = vmatprep.subr.mxu0 0.0
    %3092 = vmatpush1.xpose.msra.mxu0 0.0
    %3093 = vmatprep.subr.mxu0 0.0
    %3094 = vmatpush1.xpose.msra.mxu0 0.0
    %3095 = vmatprep.subr.mxu0 0.0
    %3096 = vmatpush1.xpose.msra.mxu0 0.0
    %3097 = vmatprep.subr.mxu0 0.0
    %3098 = vmatpush1.xpose.msra.mxu0 0.0
    %3099 = vmatprep.subr.mxu0 0.0
    %3100 = vmatpush1.xpose.msra.mxu0 0.0
    %3101 = vmatprep.subr.mxu0 0.0
    %3102 = vmatpush1.xpose.msra.mxu0 0.0
    %3103 = vmatprep.subr.mxu0 0.0
    %3104 = vmatpush1.xpose.msra.mxu0 0.0
    %3105 = vmatprep.subr.mxu0 0.0
    %3106 = vmatpush1.xpose.msra.mxu0 0.0
    %3107 = vmatprep.subr.mxu0 0.0
    %3108 = vmatpush1.xpose.msra.mxu0 0.0
    %3109 = vmatprep.subr.mxu0 0.0
    %3110 = vmatpush1.xpose.msra.mxu0 0.0
    %3111 = vmatprep.subr.mxu0 0.0
    %3112 = vmatpush1.xpose.msra.mxu0 0.0
    %3113 = vmatprep.subr.mxu0 0.0
    %3114 = vmatpush1.xpose.msra.mxu0 0.0
    %3115 = vmatprep.subr.mxu0 0.0
    %3116 = vmatpush1.xpose.msra.mxu0 0.0
    %3117 = vmatprep.subr.mxu0 0.0
    %3118 = vmatpush1.xpose.msra.mxu0 0.0
    %3119 = vmatprep.subr.mxu0 0.0
    %3120 = vmatpush1.xpose.msra.mxu0 0.0
    %3121 = vmatprep.subr.mxu0 0.0
    %3122 = vmatpush1.xpose.msra.mxu0 0.0
    %3123 = vmatprep.subr.mxu0 0.0
    %3124 = vmatpush1.xpose.msra.mxu0 0.0
    %3125 = vmatprep.subr.mxu0 0.0
    %3126 = vmatpush1.xpose.msra.mxu0 0.0
    %3127 = vmatprep.mubr.f32.mxu0 0.0
    %3128 = vmatmul.mubr.f32.gmra.mrb[0].mxu0 %v3059
    %v3129 = vpop.f32.mrb[0].mxu0
    %v3130 = vadd.f32 0.0, %v3129
    %v3131 = vpop.f32.mrb[0].mxu0
    %3132 = vdwg.mxu0
    %3133 = vrot.lane.b32.xlu0 %v2058, 104
    %v3134 = vpop.permute.xlu0 %3133
    %3135 = vrot.lane.b32.xlu0 %v2058, 72
    %v3136 = vpop.permute.xlu0 %3135
    %v3137 = vsel %vm59, %v3134, 0
    %v3139 = vsel %vm59, %v3136, 0
    %3141 = vmatprep.subr.mxu0 0.0
    %3142 = vmatpush1.xpose.msra.mxu0 %v3139
    %3143 = vmatprep.subr.mxu0 0.0
    %3144 = vmatpush1.xpose.msra.mxu0 0.0
    %3145 = vmatprep.subr.mxu0 0.0
    %3146 = vmatpush1.xpose.msra.mxu0 0.0
    %3147 = vmatprep.subr.mxu0 0.0
    %3148 = vmatpush1.xpose.msra.mxu0 0.0
    %3149 = vmatprep.subr.mxu0 0.0
    %3150 = vmatpush1.xpose.msra.mxu0 0.0
    %3151 = vmatprep.subr.mxu0 0.0
    %3152 = vmatpush1.xpose.msra.mxu0 0.0
    %3153 = vmatprep.subr.mxu0 0.0
    %3154 = vmatpush1.xpose.msra.mxu0 0.0
    %3155 = vmatprep.subr.mxu0 0.0
    %3156 = vmatpush1.xpose.msra.mxu0 0.0
    %3157 = vmatprep.subr.mxu0 0.0
    %3158 = vmatpush1.xpose.msra.mxu0 0.0
    %3159 = vmatprep.subr.mxu0 0.0
    %3160 = vmatpush1.xpose.msra.mxu0 0.0
    %3161 = vmatprep.subr.mxu0 0.0
    %3162 = vmatpush1.xpose.msra.mxu0 0.0
    %3163 = vmatprep.subr.mxu0 0.0
    %3164 = vmatpush1.xpose.msra.mxu0 0.0
    %3165 = vmatprep.subr.mxu0 0.0
    %3166 = vmatpush1.xpose.msra.mxu0 0.0
    %3167 = vmatprep.subr.mxu0 0.0
    %3168 = vmatpush1.xpose.msra.mxu0 0.0
    %3169 = vmatprep.subr.mxu0 0.0
    %3170 = vmatpush1.xpose.msra.mxu0 0.0
    %3171 = vmatprep.subr.mxu0 0.0
    %3172 = vmatpush1.xpose.msra.mxu0 0.0
    %3173 = vmatprep.subr.mxu0 0.0
    %3174 = vmatpush1.xpose.msra.mxu0 0.0
    %3175 = vmatprep.subr.mxu0 0.0
    %3176 = vmatpush1.xpose.msra.mxu0 0.0
    %3177 = vmatprep.subr.mxu0 0.0
    %3178 = vmatpush1.xpose.msra.mxu0 0.0
    %3179 = vmatprep.subr.mxu0 0.0
    %3180 = vmatpush1.xpose.msra.mxu0 0.0
    %3181 = vmatprep.subr.mxu0 0.0
    %3182 = vmatpush1.xpose.msra.mxu0 0.0
    %3183 = vmatprep.subr.mxu0 0.0
    %3184 = vmatpush1.xpose.msra.mxu0 0.0
    %3185 = vmatprep.subr.mxu0 0.0
    %3186 = vmatpush1.xpose.msra.mxu0 0.0
    %3187 = vmatprep.subr.mxu0 0.0
    %3188 = vmatpush1.xpose.msra.mxu0 0.0
    %3189 = vmatprep.subr.mxu0 0.0
    %3190 = vmatpush1.xpose.msra.mxu0 0.0
    %3191 = vmatprep.subr.mxu0 0.0
    %3192 = vmatpush1.xpose.msra.mxu0 0.0
    %3193 = vmatprep.subr.mxu0 0.0
    %3194 = vmatpush1.xpose.msra.mxu0 0.0
    %3195 = vmatprep.subr.mxu0 0.0
    %3196 = vmatpush1.xpose.msra.mxu0 0.0
    %3197 = vmatprep.subr.mxu0 0.0
    %3198 = vmatpush1.xpose.msra.mxu0 0.0
    %3199 = vmatprep.subr.mxu0 0.0
    %3200 = vmatpush1.xpose.msra.mxu0 0.0
    %3201 = vmatprep.subr.mxu0 0.0
    %3202 = vmatpush1.xpose.msra.mxu0 0.0
    %3203 = vmatprep.subr.mxu0 0.0
    %3204 = vmatpush1.xpose.msra.mxu0 0.0
    %3205 = vmatprep.mubr.f32.mxu0 0.0
    %3206 = vmatmul.mubr.f32.gmra.mrb[0].mxu0 %v3137
    %v3207 = vpop.f32.mrb[0].mxu0
    %v3208 = vadd.f32 0.0, %v3207
    %v3209 = vpop.f32.mrb[0].mxu0
    %3210 = vdwg.mxu0
    %v3211 = vmul.f32 %v3130, 0.35355338
    %v3212 = vmul.f32 %v3208, 0.35355338
    %v3213 = vsel %vm59, %v3211, -inf
    %3214 = vmax.xlane.f32.xlu0 %v3213
    %v3215 = vpop.xlane.xlu0 %3214
    %v3216 = vsel %vm59, %v3212, -inf
    %3217 = vmax.xlane.f32.xlu0 %v3216
    %v3218 = vpop.xlane.xlu0 %3217
    %v3219 = vsub.f32 %v3211, %v3215
    %v3220 = vsub.f32 %v3212, %v3218
    %v3221 = vmul.f32 %v3219, 1.442695
    %v3222 = vpow.pop %v3221
    %v3223 = vmul.f32 %v3220, 1.442695
    %v3224 = vpow.pop %v3223
    %v3225 = vsel %vm59, %v3222, 0.0
    %3226 = vadd.xlane.f32.xlu0 %v3225
    %v3227 = vpop.xlane.xlu0 %3226
    %v3228 = vsel %vm59, %v3224, 0.0
    %3229 = vadd.xlane.f32.xlu0 %v3228
    %v3230 = vpop.xlane.xlu0 %3229
    %v3231 = vrcp.pop %v3227
    %v3232 = vmul.f32 %v3222, %v3231
    %v3233 = vrcp.pop %v3230
    %v3234 = vmul.f32 %v3224, %v3233
    %3235 = vrot.lane.b32.xlu0 %v2053, 40
    %v3236 = vpop.permute.xlu0 %3235
    %v3239 = vsel %vm59, %v3232, 0
    %3241 = vmatprep.subr.mxu0 0.0
    %3242 = vmatpush1.msra.mxu0 %v3236
    %3243 = vmatprep.subr.mxu0 0.0
    %3244 = vmatpush1.msra.mxu0 0.0
    %3245 = vmatprep.subr.mxu0 0.0
    %3246 = vmatpush1.msra.mxu0 0.0
    %3247 = vmatprep.subr.mxu0 0.0
    %3248 = vmatpush1.msra.mxu0 0.0
    %3249 = vmatprep.subr.mxu0 0.0
    %3250 = vmatpush1.msra.mxu0 0.0
    %3251 = vmatprep.subr.mxu0 0.0
    %3252 = vmatpush1.msra.mxu0 0.0
    %3253 = vmatprep.subr.mxu0 0.0
    %3254 = vmatpush1.msra.mxu0 0.0
    %3255 = vmatprep.subr.mxu0 0.0
    %3256 = vmatpush1.msra.mxu0 0.0
    %3257 = vmatprep.subr.mxu0 0.0
    %3258 = vmatpush1.msra.mxu0 0.0
    %3259 = vmatprep.subr.mxu0 0.0
    %3260 = vmatpush1.msra.mxu0 0.0
    %3261 = vmatprep.subr.mxu0 0.0
    %3262 = vmatpush1.msra.mxu0 0.0
    %3263 = vmatprep.subr.mxu0 0.0
    %3264 = vmatpush1.msra.mxu0 0.0
    %3265 = vmatprep.subr.mxu0 0.0
    %3266 = vmatpush1.msra.mxu0 0.0
    %3267 = vmatprep.subr.mxu0 0.0
    %3268 = vmatpush1.msra.mxu0 0.0
    %3269 = vmatprep.subr.mxu0 0.0
    %3270 = vmatpush1.msra.mxu0 0.0
    %3271 = vmatprep.subr.mxu0 0.0
    %3272 = vmatpush1.msra.mxu0 0.0
    %3273 = vmatprep.subr.mxu0 0.0
    %3274 = vmatpush1.msra.mxu0 0.0
    %3275 = vmatprep.subr.mxu0 0.0
    %3276 = vmatpush1.msra.mxu0 0.0
    %3277 = vmatprep.subr.mxu0 0.0
    %3278 = vmatpush1.msra.mxu0 0.0
    %3279 = vmatprep.subr.mxu0 0.0
    %3280 = vmatpush1.msra.mxu0 0.0
    %3281 = vmatprep.subr.mxu0 0.0
    %3282 = vmatpush1.msra.mxu0 0.0
    %3283 = vmatprep.subr.mxu0 0.0
    %3284 = vmatpush1.msra.mxu0 0.0
    %3285 = vmatprep.subr.mxu0 0.0
    %3286 = vmatpush1.msra.mxu0 0.0
    %3287 = vmatprep.subr.mxu0 0.0
    %3288 = vmatpush1.msra.mxu0 0.0
    %3289 = vmatprep.subr.mxu0 0.0
    %3290 = vmatpush1.msra.mxu0 0.0
    %3291 = vmatprep.subr.mxu0 0.0
    %3292 = vmatpush1.msra.mxu0 0.0
    %3293 = vmatprep.subr.mxu0 0.0
    %3294 = vmatpush1.msra.mxu0 0.0
    %3295 = vmatprep.subr.mxu0 0.0
    %3296 = vmatpush1.msra.mxu0 0.0
    %3297 = vmatprep.subr.mxu0 0.0
    %3298 = vmatpush1.msra.mxu0 0.0
    %3299 = vmatprep.subr.mxu0 0.0
    %3300 = vmatpush1.msra.mxu0 0.0
    %3301 = vmatprep.subr.mxu0 0.0
    %3302 = vmatpush1.msra.mxu0 0.0
    %3303 = vmatprep.subr.mxu0 0.0
    %3304 = vmatpush1.msra.mxu0 0.0
    %3305 = vmatprep.mubr.f32.mxu0 0.0
    %3306 = vmatmul.mubr.f32.gmra.mrb[0].mxu0 %v3239
    %v3307 = vpop.f32.mrb[0].mxu0
    %v3308 = vadd.f32 0.0, %v3307
    %v3309 = vpop.f32.mrb[0].mxu0
    %3310 = vdwg.mxu0
    %3311 = vrot.lane.b32.xlu0 %v2058, 40
    %v3312 = vpop.permute.xlu0 %3311
    %v3315 = vsel %vm59, %v3234, 0
    %3317 = vmatprep.subr.mxu0 0.0
    %3318 = vmatpush1.msra.mxu0 %v3312
    %3319 = vmatprep.subr.mxu0 0.0
    %3320 = vmatpush1.msra.mxu0 0.0
    %3321 = vmatprep.subr.mxu0 0.0
    %3322 = vmatpush1.msra.mxu0 0.0
    %3323 = vmatprep.subr.mxu0 0.0
    %3324 = vmatpush1.msra.mxu0 0.0
    %3325 = vmatprep.subr.mxu0 0.0
    %3326 = vmatpush1.msra.mxu0 0.0
    %3327 = vmatprep.subr.mxu0 0.0
    %3328 = vmatpush1.msra.mxu0 0.0
    %3329 = vmatprep.subr.mxu0 0.0
    %3330 = vmatpush1.msra.mxu0 0.0
    %3331 = vmatprep.subr.mxu0 0.0
    %3332 = vmatpush1.msra.mxu0 0.0
    %3333 = vmatprep.subr.mxu0 0.0
    %3334 = vmatpush1.msra.mxu0 0.0
    %3335 = vmatprep.subr.mxu0 0.0
    %3336 = vmatpush1.msra.mxu0 0.0
    %3337 = vmatprep.subr.mxu0 0.0
    %3338 = vmatpush1.msra.mxu0 0.0
    %3339 = vmatprep.subr.mxu0 0.0
    %3340 = vmatpush1.msra.mxu0 0.0
    %3341 = vmatprep.subr.mxu0 0.0
    %3342 = vmatpush1.msra.mxu0 0.0
    %3343 = vmatprep.subr.mxu0 0.0
    %3344 = vmatpush1.msra.mxu0 0.0
    %3345 = vmatprep.subr.mxu0 0.0
    %3346 = vmatpush1.msra.mxu0 0.0
    %3347 = vmatprep.subr.mxu0 0.0
    %3348 = vmatpush1.msra.mxu0 0.0
    %3349 = vmatprep.subr.mxu0 0.0
    %3350 = vmatpush1.msra.mxu0 0.0
    %3351 = vmatprep.subr.mxu0 0.0
    %3352 = vmatpush1.msra.mxu0 0.0
    %3353 = vmatprep.subr.mxu0 0.0
    %3354 = vmatpush1.msra.mxu0 0.0
    %3355 = vmatprep.subr.mxu0 0.0
    %3356 = vmatpush1.msra.mxu0 0.0
    %3357 = vmatprep.subr.mxu0 0.0
    %3358 = vmatpush1.msra.mxu0 0.0
    %3359 = vmatprep.subr.mxu0 0.0
    %3360 = vmatpush1.msra.mxu0 0.0
    %3361 = vmatprep.subr.mxu0 0.0
    %3362 = vmatpush1.msra.mxu0 0.0
    %3363 = vmatprep.subr.mxu0 0.0
    %3364 = vmatpush1.msra.mxu0 0.0
    %3365 = vmatprep.subr.mxu0 0.0
    %3366 = vmatpush1.msra.mxu0 0.0
    %3367 = vmatprep.subr.mxu0 0.0
    %3368 = vmatpush1.msra.mxu0 0.0
    %3369 = vmatprep.subr.mxu0 0.0
    %3370 = vmatpush1.msra.mxu0 0.0
    %3371 = vmatprep.subr.mxu0 0.0
    %3372 = vmatpush1.msra.mxu0 0.0
    %3373 = vmatprep.subr.mxu0 0.0
    %3374 = vmatpush1.msra.mxu0 0.0
    %3375 = vmatprep.subr.mxu0 0.0
    %3376 = vmatpush1.msra.mxu0 0.0
    %3377 = vmatprep.subr.mxu0 0.0
    %3378 = vmatpush1.msra.mxu0 0.0
    %3379 = vmatprep.subr.mxu0 0.0
    %3380 = vmatpush1.msra.mxu0 0.0
    %3381 = vmatprep.mubr.f32.mxu0 0.0
    %3382 = vmatmul.mubr.f32.gmra.mrb[0].mxu0 %v3315
    %v3383 = vpop.f32.mrb[0].mxu0
    %v3384 = vadd.f32 0.0, %v3383
    %v3385 = vpop.f32.mrb[0].mxu0
    %3386 = vdwg.mxu0
    %3389 = vrot.lane.b32.xlu0 %v2644, 8
    %v3390 = vpop.permute.xlu0 %3389
    %3391 = vrot.lane.b32.xlu0 %v2720, 8
    %v3392 = vpop.permute.xlu0 %3391
    %3397 = vrot.lane.b32.xlu0 %v2976, 16
    %v3398 = vpop.permute.xlu0 %3397
    %3399 = vrot.lane.b32.xlu0 %v3052, 16
    %v3400 = vpop.permute.xlu0 %3399
    %3405 = vrot.lane.b32.xlu0 %v3308, 24
    %v3406 = vpop.permute.xlu0 %3405
    %3407 = vrot.lane.b32.xlu0 %v3384, 24
    %v3408 = vpop.permute.xlu0 %3407
    %v3411 = vsel %vm59, %v2312, %v3390
    %v3412 = vsel %vm59, %v2388, %v3392
    %v3413 = vsel %vm1585, %v3411, %v3398
    %v3414 = vsel %vm1585, %v3412, %v3400
    %v3415 = vsel %vm1588, %v3413, %v3406
    %v3416 = vsel %vm1588, %v3414, %v3408
    %s3417 = scalar_lea.vmem %s4, 32
    %v3418 = vld [vmem:[%s3417] sm:$0xff]
    %v3419 = vld [vmem:[%s3417 + $0x8] sm:$0xff]
    %v3420 = vld [vmem:[%s3417 + $0x10] sm:$0xff]
    %v3421 = vld [vmem:[%s3417 + $0x18] sm:$0xff]
    %s3422 = scalar_lea.vmem %s5, 1
    %v3423 = vld [vmem:[%s3422] sm:$0x1]
    %v3425 = vlaneseq
    %v3426 = vshrl.u32 %v3425, 7
    %v3427 = vsub.s32 0, %v3426
    %v3428 = vrot.slane %v3423, %v3427
    %v3431 = vsel %vm50, %v3415, 0
    %v3434 = vsel %vm50, %v3416, 0
    %3436 = vmatprep.subr.mxu0 0.0
    %3437 = vmatpush1.msra.mxu0 %v3418
    %3438 = vmatprep.subr.mxu0 0.0
    %3439 = vmatpush1.msra.mxu0 %v3419
    %3440 = vmatprep.subr.mxu0 0.0
    %3441 = vmatpush1.msra.mxu0 %v3420
    %3442 = vmatprep.subr.mxu0 0.0
    %3443 = vmatpush1.msra.mxu0 %v3421
    %3444 = vmatprep.subr.mxu0 0.0
    %3445 = vmatpush1.msra.mxu0 0.0
    %3446 = vmatprep.subr.mxu0 0.0
    %3447 = vmatpush1.msra.mxu0 0.0
    %3448 = vmatprep.subr.mxu0 0.0
    %3449 = vmatpush1.msra.mxu0 0.0
    %3450 = vmatprep.subr.mxu0 0.0
    %3451 = vmatpush1.msra.mxu0 0.0
    %3452 = vmatprep.subr.mxu0 0.0
    %3453 = vmatpush1.msra.mxu0 0.0
    %3454 = vmatprep.subr.mxu0 0.0
    %3455 = vmatpush1.msra.mxu0 0.0
    %3456 = vmatprep.subr.mxu0 0.0
    %3457 = vmatpush1.msra.mxu0 0.0
    %3458 = vmatprep.subr.mxu0 0.0
    %3459 = vmatpush1.msra.mxu0 0.0
    %3460 = vmatprep.subr.mxu0 0.0
    %3461 = vmatpush1.msra.mxu0 0.0
    %3462 = vmatprep.subr.mxu0 0.0
    %3463 = vmatpush1.msra.mxu0 0.0
    %3464 = vmatprep.subr.mxu0 0.0
    %3465 = vmatpush1.msra.mxu0 0.0
    %3466 = vmatprep.subr.mxu0 0.0
    %3467 = vmatpush1.msra.mxu0 0.0
    %3468 = vmatprep.subr.mxu0 0.0
    %3469 = vmatpush1.msra.mxu0 0.0
    %3470 = vmatprep.subr.mxu0 0.0
    %3471 = vmatpush1.msra.mxu0 0.0
    %3472 = vmatprep.subr.mxu0 0.0
    %3473 = vmatpush1.msra.mxu0 0.0
    %3474 = vmatprep.subr.mxu0 0.0
    %3475 = vmatpush1.msra.mxu0 0.0
    %3476 = vmatprep.subr.mxu0 0.0
    %3477 = vmatpush1.msra.mxu0 0.0
    %3478 = vmatprep.subr.mxu0 0.0
    %3479 = vmatpush1.msra.mxu0 0.0
    %3480 = vmatprep.subr.mxu0 0.0
    %3481 = vmatpush1.msra.mxu0 0.0
    %3482 = vmatprep.subr.mxu0 0.0
    %3483 = vmatpush1.msra.mxu0 0.0
    %3484 = vmatprep.subr.mxu0 0.0
    %3485 = vmatpush1.msra.mxu0 0.0
    %3486 = vmatprep.subr.mxu0 0.0
    %3487 = vmatpush1.msra.mxu0 0.0
    %3488 = vmatprep.subr.mxu0 0.0
    %3489 = vmatpush1.msra.mxu0 0.0
    %3490 = vmatprep.subr.mxu0 0.0
    %3491 = vmatpush1.msra.mxu0 0.0
    %3492 = vmatprep.subr.mxu0 0.0
    %3493 = vmatpush1.msra.mxu0 0.0
    %3494 = vmatprep.subr.mxu0 0.0
    %3495 = vmatpush1.msra.mxu0 0.0
    %3496 = vmatprep.subr.mxu0 0.0
    %3497 = vmatpush1.msra.mxu0 0.0
    %3498 = vmatprep.subr.mxu0 0.0
    %3499 = vmatpush1.msra.mxu0 0.0
    %3500 = vmatprep.mubr.f32.mxu0 0.0
    %3501 = vmatmul.mubr.f32.gmra.mrb[0].mxu0 %v3431
    %v3502 = vpop.f32.mrb[0].mxu0
    %v3503 = vadd.f32 %v3428, %v3502
    %v3504 = vpop.f32.mrb[0].mxu0
    %3505 = vmatprep.mubr.f32.mxu0 0.0
    %3506 = vmatmul.mubr.f32.gmra.mrb[0].mxu0 %v3434
    %v3507 = vpop.f32.mrb[0].mxu0
    %v3508 = vadd.f32 %v3428, %v3507
    %v3509 = vpop.f32.mrb[0].mxu0
    %3510 = vdwg.mxu0
    %v3511 = vadd.f32 %v1965, %v3503
    %v3512 = vadd.f32 %v1966, %v3508
    %s3513 = scalar_lea.vmem %s6, 1
    %v3514 = vld [vmem:[%s3513] sm:$0x1]
    %s3515 = scalar_lea.vmem %s7, 1
    %v3516 = vld [vmem:[%s3515] sm:$0x1]
    %v3517 = vsel %vm50, %v3511, 0.0
    %3518 = vadd.xlane.f32.xlu0 %v3517
    %v3519 = vpop.xlane.xlu0 %3518
    %v3520 = vsel %vm50, %v3512, 0.0
    %3521 = vadd.xlane.f32.xlu0 %v3520
    %v3522 = vpop.xlane.xlu0 %3521
    %v3523 = vmul.f32 %v3519, %v1693
    %v3524 = vmul.f32 %v3522, %v1693
    %v3525 = vsub.f32 %v3511, %v3523
    %v3526 = vsub.f32 %v3512, %v3524
    %v3527 = vmul.f32 %v3525, %v3525
    %v3528 = vmul.f32 %v3526, %v3526
    %v3529 = vsel %vm50, %v3527, 0.0
    %3530 = vadd.xlane.f32.xlu0 %v3529
    %v3531 = vpop.xlane.xlu0 %3530
    %v3532 = vsel %vm50, %v3528, 0.0
    %3533 = vadd.xlane.f32.xlu0 %v3532
    %v3534 = vpop.xlane.xlu0 %3533
    %v3535 = vmul.f32 %v3531, %v1693
    %v3536 = vmul.f32 %v3534, %v1693
    %v3537 = vadd.f32 %v3535, 1e-05
    %v3538 = vadd.f32 %v3536, 1e-05
    %v3539 = vrsqrt.pop %v3537
    %v3540 = vrsqrt.pop %v3538
    %v3541 = vmul.f32 %v3525, %v3539
    %v3542 = vmul.f32 %v3526, %v3540
    %v3544 = vlaneseq
    %v3545 = vshrl.u32 %v3544, 7
    %v3546 = vsub.s32 0, %v3545
    %v3547 = vrot.slane %v3514, %v3546
    %v3549 = vmul.f32 %v3541, %v3547
    %v3550 = vmul.f32 %v3542, %v3547
    %v3552 = vlaneseq
    %v3553 = vshrl.u32 %v3552, 7
    %v3554 = vsub.s32 0, %v3553
    %v3555 = vrot.slane %v3516, %v3554
    %v3557 = vadd.f32 %v3549, %v3555
    %v3558 = vadd.f32 %v3550, %v3555
    %s3559 = scalar_lea.vmem %s8, 32
    %v3560 = vld [vmem:[%s3559] sm:$0xff]
    %v3561 = vld [vmem:[%s3559 + $0x8] sm:$0xff]
    %v3562 = vld [vmem:[%s3559 + $0x10] sm:$0xff]
    %v3563 = vld [vmem:[%s3559 + $0x18] sm:$0xff]
    %s3564 = scalar_lea.vmem %s9, 1
    %v3565 = vld [vmem:[%s3564] sm:$0x1]
    %v3567 = vlaneseq
    %v3568 = vshrl.u32 %v3567, 7
    %v3569 = vsub.s32 0, %v3568
    %v3570 = vrot.slane %v3565, %v3569
    %v3573 = vsel %vm50, %v3557, 0
    %v3576 = vsel %vm50, %v3558, 0
    %3578 = vmatprep.subr.mxu0 0.0
    %3579 = vmatpush1.msra.mxu0 %v3560
    %3580 = vmatprep.subr.mxu0 0.0
    %3581 = vmatpush1.msra.mxu0 %v3561
    %3582 = vmatprep.subr.mxu0 0.0
    %3583 = vmatpush1.msra.mxu0 %v3562
    %3584 = vmatprep.subr.mxu0 0.0
    %3585 = vmatpush1.msra.mxu0 %v3563
    %3586 = vmatprep.subr.mxu0 0.0
    %3587 = vmatpush1.msra.mxu0 0.0
    %3588 = vmatprep.subr.mxu0 0.0
    %3589 = vmatpush1.msra.mxu0 0.0
    %3590 = vmatprep.subr.mxu0 0.0
    %3591 = vmatpush1.msra.mxu0 0.0
    %3592 = vmatprep.subr.mxu0 0.0
    %3593 = vmatpush1.msra.mxu0 0.0
    %3594 = vmatprep.subr.mxu0 0.0
    %3595 = vmatpush1.msra.mxu0 0.0
    %3596 = vmatprep.subr.mxu0 0.0
    %3597 = vmatpush1.msra.mxu0 0.0
    %3598 = vmatprep.subr.mxu0 0.0
    %3599 = vmatpush1.msra.mxu0 0.0
    %3600 = vmatprep.subr.mxu0 0.0
    %3601 = vmatpush1.msra.mxu0 0.0
    %3602 = vmatprep.subr.mxu0 0.0
    %3603 = vmatpush1.msra.mxu0 0.0
    %3604 = vmatprep.subr.mxu0 0.0
    %3605 = vmatpush1.msra.mxu0 0.0
    %3606 = vmatprep.subr.mxu0 0.0
    %3607 = vmatpush1.msra.mxu0 0.0
    %3608 = vmatprep.subr.mxu0 0.0
    %3609 = vmatpush1.msra.mxu0 0.0
    %3610 = vmatprep.subr.mxu0 0.0
    %3611 = vmatpush1.msra.mxu0 0.0
    %3612 = vmatprep.subr.mxu0 0.0
    %3613 = vmatpush1.msra.mxu0 0.0
    %3614 = vmatprep.subr.mxu0 0.0
    %3615 = vmatpush1.msra.mxu0 0.0
    %3616 = vmatprep.subr.mxu0 0.0
    %3617 = vmatpush1.msra.mxu0 0.0
    %3618 = vmatprep.subr.mxu0 0.0
    %3619 = vmatpush1.msra.mxu0 0.0
    %3620 = vmatprep.subr.mxu0 0.0
    %3621 = vmatpush1.msra.mxu0 0.0
    %3622 = vmatprep.subr.mxu0 0.0
    %3623 = vmatpush1.msra.mxu0 0.0
    %3624 = vmatprep.subr.mxu0 0.0
    %3625 = vmatpush1.msra.mxu0 0.0
    %3626 = vmatprep.subr.mxu0 0.0
    %3627 = vmatpush1.msra.mxu0 0.0
    %3628 = vmatprep.subr.mxu0 0.0
    %3629 = vmatpush1.msra.mxu0 0.0
    %3630 = vmatprep.subr.mxu0 0.0
    %3631 = vmatpush1.msra.mxu0 0.0
    %3632 = vmatprep.subr.mxu0 0.0
    %3633 = vmatpush1.msra.mxu0 0.0
    %3634 = vmatprep.subr.mxu0 0.0
    %3635 = vmatpush1.msra.mxu0 0.0
    %3636 = vmatprep.subr.mxu0 0.0
    %3637 = vmatpush1.msra.mxu0 0.0
    %3638 = vmatprep.subr.mxu0 0.0
    %3639 = vmatpush1.msra.mxu0 0.0
    %3640 = vmatprep.subr.mxu0 0.0
    %3641 = vmatpush1.msra.mxu0 0.0
    %3642 = vmatprep.mubr.f32.mxu0 0.0
    %3643 = vmatmul.mubr.f32.gmra.mrb[0].mxu0 %v3573
    %v3644 = vpop.f32.mrb[0].mxu0
    %v3645 = vadd.f32 %v3570, %v3644
    %v3646 = vpop.f32.mrb[0].mxu0
    %3647 = vmatprep.mubr.f32.mxu0 0.0
    %3648 = vmatmul.mubr.f32.gmra.mrb[0].mxu0 %v3576
    %v3649 = vpop.f32.mrb[0].mxu0
    %v3650 = vadd.f32 %v3570, %v3649
    %v3651 = vpop.f32.mrb[0].mxu0
    %3652 = vdwg.mxu0
    %v3653 = vmax.f32 %v3645, 0.0
    %v3654 = vmax.f32 %v3650, 0.0
    %s3655 = scalar_lea.vmem %s10, 64
    %v3656 = vld [vmem:[%s3655] sm:$0xff]
    %v3657 = vld [vmem:[%s3655 + $0x8] sm:$0xff]
    %v3658 = vld [vmem:[%s3655 + $0x10] sm:$0xff]
    %v3659 = vld [vmem:[%s3655 + $0x18] sm:$0xff]
    %v3660 = vld [vmem:[%s3655 + $0x20] sm:$0xff]
    %v3661 = vld [vmem:[%s3655 + $0x28] sm:$0xff]
    %v3662 = vld [vmem:[%s3655 + $0x30] sm:$0xff]
    %v3663 = vld [vmem:[%s3655 + $0x38] sm:$0xff]
    %s3664 = scalar_lea.vmem %s11, 1
    %v3665 = vld [vmem:[%s3664] sm:$0x1]
    %v3667 = vlaneseq
    %v3668 = vshrl.u32 %v3667, 7
    %v3669 = vsub.s32 0, %v3668
    %v3670 = vrot.slane %v3665, %v3669
    %v3673 = vsel %vm1839, %v3653, 0
    %v3676 = vsel %vm1839, %v3654, 0
    %3678 = vmatprep.subr.mxu0 0.0
    %3679 = vmatpush1.msra.mxu0 %v3656
    %3680 = vmatprep.subr.mxu0 0.0
    %3681 = vmatpush1.msra.mxu0 %v3657
    %3682 = vmatprep.subr.mxu0 0.0
    %3683 = vmatpush1.msra.mxu0 %v3658
    %3684 = vmatprep.subr.mxu0 0.0
    %3685 = vmatpush1.msra.mxu0 %v3659
    %3686 = vmatprep.subr.mxu0 0.0
    %3687 = vmatpush1.msra.mxu0 %v3660
    %3688 = vmatprep.subr.mxu0 0.0
    %3689 = vmatpush1.msra.mxu0 %v3661
    %3690 = vmatprep.subr.mxu0 0.0
    %3691 = vmatpush1.msra.mxu0 %v3662
    %3692 = vmatprep.subr.mxu0 0.0
    %3693 = vmatpush1.msra.mxu0 %v3663
    %3694 = vmatprep.subr.mxu0 0.0
    %3695 = vmatpush1.msra.mxu0 0.0
    %3696 = vmatprep.subr.mxu0 0.0
    %3697 = vmatpush1.msra.mxu0 0.0
    %3698 = vmatprep.subr.mxu0 0.0
    %3699 = vmatpush1.msra.mxu0 0.0
    %3700 = vmatprep.subr.mxu0 0.0
    %3701 = vmatpush1.msra.mxu0 0.0
    %3702 = vmatprep.subr.mxu0 0.0
    %3703 = vmatpush1.msra.mxu0 0.0
    %3704 = vmatprep.subr.mxu0 0.0
    %3705 = vmatpush1.msra.mxu0 0.0
    %3706 = vmatprep.subr.mxu0 0.0
    %3707 = vmatpush1.msra.mxu0 0.0
    %3708 = vmatprep.subr.mxu0 0.0
    %3709 = vmatpush1.msra.mxu0 0.0
    %3710 = vmatprep.subr.mxu0 0.0
    %3711 = vmatpush1.msra.mxu0 0.0
    %3712 = vmatprep.subr.mxu0 0.0
    %3713 = vmatpush1.msra.mxu0 0.0
    %3714 = vmatprep.subr.mxu0 0.0
    %3715 = vmatpush1.msra.mxu0 0.0
    %3716 = vmatprep.subr.mxu0 0.0
    %3717 = vmatpush1.msra.mxu0 0.0
    %3718 = vmatprep.subr.mxu0 0.0
    %3719 = vmatpush1.msra.mxu0 0.0
    %3720 = vmatprep.subr.mxu0 0.0
    %3721 = vmatpush1.msra.mxu0 0.0
    %3722 = vmatprep.subr.mxu0 0.0
    %3723 = vmatpush1.msra.mxu0 0.0
    %3724 = vmatprep.subr.mxu0 0.0
    %3725 = vmatpush1.msra.mxu0 0.0
    %3726 = vmatprep.subr.mxu0 0.0
    %3727 = vmatpush1.msra.mxu0 0.0
    %3728 = vmatprep.subr.mxu0 0.0
    %3729 = vmatpush1.msra.mxu0 0.0
    %3730 = vmatprep.subr.mxu0 0.0
    %3731 = vmatpush1.msra.mxu0 0.0
    %3732 = vmatprep.subr.mxu0 0.0
    %3733 = vmatpush1.msra.mxu0 0.0
    %3734 = vmatprep.subr.mxu0 0.0
    %3735 = vmatpush1.msra.mxu0 0.0
    %3736 = vmatprep.subr.mxu0 0.0
    %3737 = vmatpush1.msra.mxu0 0.0
    %3738 = vmatprep.subr.mxu0 0.0
    %3739 = vmatpush1.msra.mxu0 0.0
    %3740 = vmatprep.subr.mxu0 0.0
    %3741 = vmatpush1.msra.mxu0 0.0
    %3742 = vmatprep.mubr.f32.mxu0 0.0
    %3743 = vmatmul.mubr.f32.gmra.mrb[0].mxu0 %v3673
    %v3744 = vpop.f32.mrb[0].mxu0
    %v3745 = vadd.f32 %v3670, %v3744
    %v3746 = vpop.f32.mrb[0].mxu0
    %3747 = vmatprep.mubr.f32.mxu0 0.0
    %3748 = vmatmul.mubr.f32.gmra.mrb[0].mxu0 %v3676
    %v3749 = vpop.f32.mrb[0].mxu0
    %v3750 = vadd.f32 %v3670, %v3749
    %v3751 = vpop.f32.mrb[0].mxu0
    %3752 = vdwg.mxu0
    %v3753 = vadd.f32 %v3557, %v3745
    %v3754 = vadd.f32 %v3558, %v3750
    %s3755 = scalar_lea.vmem %s12, 1
    %v3756 = vld [vmem:[%s3755] sm:$0x1]
    %s3757 = scalar_lea.vmem %s13, 1
    %v3758 = vld [vmem:[%s3757] sm:$0x1]
    %v3759 = vsel %vm50, %v3753, 0.0
    %3760 = vadd.xlane.f32.xlu0 %v3759
    %v3761 = vpop.xlane.xlu0 %3760
    %v3762 = vsel %vm50, %v3754, 0.0
    %3763 = vadd.xlane.f32.xlu0 %v3762
    %v3764 = vpop.xlane.xlu0 %3763
    %v3765 = vmul.f32 %v3761, %v1693
    %v3766 = vmul.f32 %v3764, %v1693
    %v3767 = vsub.f32 %v3753, %v3765
    %v3768 = vsub.f32 %v3754, %v3766
    %v3769 = vmul.f32 %v3767, %v3767
    %v3770 = vmul.f32 %v3768, %v3768
    %v3771 = vsel %vm50, %v3769, 0.0
    %3772 = vadd.xlane.f32.xlu0 %v3771
    %v3773 = vpop.xlane.xlu0 %3772
    %v3774 = vsel %vm50, %v3770, 0.0
    %3775 = vadd.xlane.f32.xlu0 %v3774
    %v3776 = vpop.xlane.xlu0 %3775
    %v3777 = vmul.f32 %v3773, %v1693
    %v3778 = vmul.f32 %v3776, %v1693
    %v3779 = vadd.f32 %v3777, 1e-05
    %v3780 = vadd.f32 %v3778, 1e-05
    %v3781 = vrsqrt.pop %v3779
    %v3782 = vrsqrt.pop %v3780
    %v3783 = vmul.f32 %v3767, %v3781
    %v3784 = vmul.f32 %v3768, %v3782
    %v3786 = vlaneseq
    %v3787 = vshrl.u32 %v3786, 7
    %v3788 = vsub.s32 0, %v3787
    %v3789 = vrot.slane %v3756, %v3788
    %v3791 = vmul.f32 %v3783, %v3789
    %v3792 = vmul.f32 %v3784, %v3789
    %v3794 = vlaneseq
    %v3795 = vshrl.u32 %v3794, 7
    %v3796 = vsub.s32 0, %v3795
    %v3797 = vrot.slane %v3758, %v3796
    %v3799 = vadd.f32 %v3791, %v3797
    %v3800 = vadd.f32 %v3792, %v3797
    %v3801 = vsel %vm50, %v3799, -inf
    %v3802 = vrot.slane %v3801, 4
    %v3803 = vmax.f32 %v3801, %v3802
    %v3804 = vrot.slane %v3803, 2
    %v3805 = vmax.f32 %v3803, %v3804
    %v3806 = vrot.slane %v3805, 1
    %v3807 = vmax.f32 %v3805, %v3806
    %v3808 = vsel %vm50, %v3800, -inf
    %v3809 = vrot.slane %v3808, 4
    %v3810 = vmax.f32 %v3808, %v3809
    %v3811 = vrot.slane %v3810, 2
    %v3812 = vmax.f32 %v3810, %v3811
    %v3813 = vrot.slane %v3812, 1
    %v3814 = vmax.f32 %v3812, %v3813
    %vm3815 = vcmask 1040384
    %v3816 = vsel %vm3815, %v3807, %v3814
    %v3817 = vmul.f32 %v3816, %v3816
    %vm3818 = vcmask 254976
    %v3819 = vsel %vm3818, %v3817, 0.0
    %3820 = vadd.xlane.f32.xlu0 %v3819
    %v3821 = vpop.xlane.xlu0 %3820
    %v3822 = vmax.f32 %v3821, 1e-24
    %v3823 = vrsqrt.pop %v3822
    %v3824 = vmul.f32 %v3816, %v3823
    %3825 = vst.msk [vmem:[#allocation2] sm:$0x3] %vm3818, %v3824
    // Predicated region
    $region58: #{tpu_custom_call.1} parent=1 // pred_check
      _
    $region59: #{tpu_custom_call.1} parent=1 // pred_check_branch
      %3827 = sbr.rel (0) target = $region61
    $region60: #{tpu_custom_call.1} parent=1 // pred_region
      %s3829 = ssub.s32 32, 32
      %3830 = vsyncadd [#allocation3], %s3829
      %s3832 = sshll.u32 [#allocation2], 4
      %s3833 = int_to_ptr.vmem [resolvable:$true] %s3832
      %3835 = dma.vmem_to_hbm [thread:$0]  %s3833, 32, %s14, [#allocation3]
    $region61: #{tpu_custom_call.1} parent=1 // pred_fallthru
      _
    // Predicated region
    $region62: #{tpu_custom_call.1} parent=1 // pred_check
      _
    $region63: #{tpu_custom_call.1} parent=1 // pred_check_branch
      %3837 = sbr.rel (0) target = $region65
    $region64: #{tpu_custom_call.1} parent=1 // pred_region
      %3838 = dma.done [#allocation3], 32
    $region65: #{tpu_custom_call.1} parent=1 // pred_fallthru
      _
    %3839 = vsyncpa [#allocation3], 1

</llo_original>
